<compile_context>
chip_gen: v7x
topology: tpu7x:2x2x1
jax: 0.10.0
libtpu: 0.0.40
codegen_flags: <defaults>
</compile_context>

<pallas_src>
import math
import functools

import jax
import jax.numpy as jnp
from jax.experimental import pallas as pl
from jax.experimental.pallas import tpu as pltpu


_LN_EPS = 1e-5  # PyTorch LayerNorm default


@functools.lru_cache(maxsize=1)
def _vmem_limit():
    """~0.75x physical VMEM (96 MiB v5e/v6e, 48 MiB v7x); safe fallback."""
    try:
        cap = getattr(pltpu.get_tpu_info(), "vmem_capacity_bytes", None)
        if cap:
            return min(int(cap * 3 // 4), 96 * 1024 * 1024)
    except Exception:
        pass
    return 48 * 1024 * 1024


def _pick_tile(dim, target, align):
    """Largest tile <= target that divides `dim` and is a multiple of `align`;
    falls back to the full dim (full-dim blocks always satisfy layout rules)."""
    if dim <= target:
        return dim
    t = (target // align) * align
    while t >= align:
        if dim % t == 0:
            return t
        t -= align
    return dim


# ----------------------------------------------------------------------------
# Tiled dense:  o = act(x @ w + b)
# ----------------------------------------------------------------------------

def _dense_kernel(x_ref, w_ref, b_ref, o_ref, acc_ref, *, activation):
    @pl.when(pl.program_id(2) == 0)
    def _():
        acc_ref[...] = jnp.zeros_like(acc_ref)

    acc_ref[...] += jnp.dot(x_ref[...], w_ref[...],
                            preferred_element_type=jnp.float32)

    @pl.when(pl.program_id(2) == pl.num_programs(2) - 1)
    def _():
        acc = acc_ref[...] + b_ref[...].astype(jnp.float32)
        if activation == "relu":
            acc = jnp.maximum(acc, 0.0)
        o_ref[...] = acc.astype(o_ref.dtype)


def dense(x, w, b, activation=None, out_dtype=None,
          tm_target=1024, tn_target=512, tk_target=512):
    """x: (M, K), w: (K, N) pre-transposed, b: (N,). Returns (M, N)."""
    M, K = x.shape
    N = w.shape[1]
    out_dtype = out_dtype if out_dtype is not None else x.dtype
    tm = _pick_tile(M, tm_target, 16)   # bf16-friendly sublane packing
    tn = _pick_tile(N, tn_target, 128)
    tk = _pick_tile(K, tk_target, 128)
    grid = (M // tm, N // tn, K // tk)
    return pl.pallas_call(
        functools.partial(_dense_kernel, activation=activation),
        out_shape=jax.ShapeDtypeStruct((M, N), out_dtype),
        grid=grid,
        in_specs=[
            pl.BlockSpec((tm, tk), lambda i, j, k: (i, k)),
            pl.BlockSpec((tk, tn), lambda i, j, k: (k, j)),
            pl.BlockSpec((1, tn), lambda i, j, k: (0, j)),
        ],
        out_specs=pl.BlockSpec((tm, tn), lambda i, j, k: (i, j)),
        scratch_shapes=[pltpu.VMEM((tm, tn), jnp.float32)],
        compiler_params=pltpu.CompilerParams(
            dimension_semantics=("parallel", "parallel", "arbitrary"),
            vmem_limit_bytes=_vmem_limit()),
    )(x, w, b.reshape(1, N))


# ----------------------------------------------------------------------------
# Tiled dense with fused residual-add + LayerNorm epilogue:
#   o = LayerNorm(x @ w + b + residual)       (full feature dim per tile)
# ----------------------------------------------------------------------------

def _dense_res_ln_kernel(x_ref, w_ref, b_ref, r_ref, g_ref, bt_ref,
                         o_ref, acc_ref, *, eps):
    @pl.when(pl.program_id(1) == 0)
    def _():
        acc_ref[...] = jnp.zeros_like(acc_ref)

    acc_ref[...] += jnp.dot(x_ref[...], w_ref[...],
                            preferred_element_type=jnp.float32)

    @pl.when(pl.program_id(1) == pl.num_programs(1) - 1)
    def _():
        z = (acc_ref[...] + b_ref[...].astype(jnp.float32)
             + r_ref[...].astype(jnp.float32))
        mean = jnp.mean(z, axis=-1, keepdims=True)
        var = jnp.mean(jnp.square(z - mean), axis=-1, keepdims=True)
        zn = (z - mean) * jax.lax.rsqrt(var + eps)
        out = zn * g_ref[...].astype(jnp.float32) + bt_ref[...].astype(jnp.float32)
        o_ref[...] = out.astype(o_ref.dtype)


def dense_res_ln(x, w, b, residual, gamma, beta, eps=_LN_EPS,
                 tm_target=512, tk_target=512):
    """x: (M, K), w: (K, N), residual: (M, N). Returns LayerNorm(x@w+b+residual)."""
    M, K = x.shape
    N = w.shape[1]
    tm = _pick_tile(M, tm_target, 16)
    tk = _pick_tile(K, tk_target, 128)
    grid = (M // tm, K // tk)
    return pl.pallas_call(
        functools.partial(_dense_res_ln_kernel, eps=eps),
        out_shape=jax.ShapeDtypeStruct((M, N), residual.dtype),
        grid=grid,
        in_specs=[
            pl.BlockSpec((tm, tk), lambda i, k: (i, k)),
            pl.BlockSpec((tk, N), lambda i, k: (k, 0)),
            pl.BlockSpec((1, N), lambda i, k: (0, 0)),
            pl.BlockSpec((tm, N), lambda i, k: (i, 0)),
            pl.BlockSpec((1, N), lambda i, k: (0, 0)),
            pl.BlockSpec((1, N), lambda i, k: (0, 0)),
        ],
        out_specs=pl.BlockSpec((tm, N), lambda i, k: (i, 0)),
        scratch_shapes=[pltpu.VMEM((tm, N), jnp.float32)],
        compiler_params=pltpu.CompilerParams(
            dimension_semantics=("parallel", "arbitrary"),
            vmem_limit_bytes=_vmem_limit()),
    )(x, w, b.reshape(1, N), residual, gamma, beta)


# ----------------------------------------------------------------------------
# Fused multi-head-attention block (QKV proj + attention + out proj + residual
# + LayerNorm1), one grid step per batch element.
#   * QKV projection: ONE lane-dense (S, D) @ (D, 3D) matmul (scale folded
#     into the q columns at init).
#   * Per-head attention on 2-D static slices, bf16 MXU operands, f32 acc.
#   * Output projection: head-concat (S, D) @ (D, D) single matmul.
# ----------------------------------------------------------------------------

def _mha_ln_kernel(x_ref, wqkv_ref, bqkv_ref, wo_ref, bo_ref, g_ref, bt_ref,
                   o_ref, *, num_heads, eps):
    H = num_heads
    S = x_ref.shape[1]
    D = x_ref.shape[2]
    dh = D // H

    x = x_ref[0]                                            # (S, D), bf16

    # QKV projection: single lane-dense matmul, f32 accumulation.
    qkv = jnp.dot(x, wqkv_ref[...], preferred_element_type=jnp.float32)
    qkv = qkv + bqkv_ref[...].astype(jnp.float32)           # (S, 3D)
    qkv = qkv.astype(jnp.bfloat16)                          # bf16 MXU operands

    # Per-head scaled dot-product attention (softmax math in f32).
    # TODO(synk): for long sequences / many heads (v7x 64 MiB VMEM) this should
    # become a fori_loop / (B,H)-gridded online-softmax with KV tiling and
    # tiled QKV/out projections; fine at these sizes.
    head_outs = []
    for h in range(H):
        qh = qkv[:, h * dh:(h + 1) * dh]                    # (S, dh) pre-scaled
        kh = qkv[:, D + h * dh:D + (h + 1) * dh]            # (S, dh)
        vh = qkv[:, 2 * D + h * dh:2 * D + (h + 1) * dh]    # (S, dh)
        s = jax.lax.dot_general(qh, kh, (((1,), (1,)), ((), ())),
                                preferred_element_type=jnp.float32)  # (S, S)
        m = jnp.max(s, axis=-1, keepdims=True)
        p = jnp.exp(s - m)
        denom = jnp.sum(p, axis=-1, keepdims=True)
        oh = jnp.dot(p.astype(jnp.bfloat16), vh,
                     preferred_element_type=jnp.float32)              # (S, dh)
        # Normalize the (S, dh) output, not the (S, S) probabilities.
        oh = oh * pl.reciprocal(denom, approx=True)
        head_outs.append(oh)

    o_cat = jnp.concatenate(head_outs, axis=-1)             # (S, D) head concat

    # Output projection: single K=D lane-dense matmul.
    attn = jnp.dot(o_cat.astype(wo_ref.dtype), wo_ref[...],
                   preferred_element_type=jnp.float32)
    attn = attn + bo_ref[...].astype(jnp.float32)

    # Residual + LayerNorm1 (post-norm, f32 statistics).
    z = attn + x.astype(jnp.float32)
    mean = jnp.mean(z, axis=-1, keepdims=True)
    var = jnp.mean(jnp.square(z - mean), axis=-1, keepdims=True)
    zn = (z - mean) * jax.lax.rsqrt(var + eps)
    out = zn * g_ref[...].astype(jnp.float32) + bt_ref[...].astype(jnp.float32)
    o_ref[0] = out.astype(o_ref.dtype)


def mha_block(x, layer, num_heads, eps=_LN_EPS):
    """x: (B, S, D). Returns LayerNorm1(x + MHA(x)) : (B, S, D)."""
    B, S, D = x.shape
    return pl.pallas_call(
        functools.partial(_mha_ln_kernel, num_heads=num_heads, eps=eps),
        out_shape=jax.ShapeDtypeStruct((B, S, D), x.dtype),
        grid=(B,),
        in_specs=[
            pl.BlockSpec((1, S, D), lambda b: (b, 0, 0)),
            pl.BlockSpec((D, 3 * D), lambda b: (0, 0)),
            pl.BlockSpec((1, 3 * D), lambda b: (0, 0)),
            pl.BlockSpec((D, D), lambda b: (0, 0)),
            pl.BlockSpec((1, D), lambda b: (0, 0)),
            pl.BlockSpec((1, D), lambda b: (0, 0)),
            pl.BlockSpec((1, D), lambda b: (0, 0)),
        ],
        out_specs=pl.BlockSpec((1, S, D), lambda b: (b, 0, 0)),
        compiler_params=pltpu.CompilerParams(
            dimension_semantics=("parallel",),
            vmem_limit_bytes=_vmem_limit()),
    )(x, layer["wqkv"], layer["bqkv"], layer["wo"], layer["bo"],
      layer["ln1_g"], layer["ln1_b"])


# ----------------------------------------------------------------------------
# Parameter init (kernel-friendly, pre-transposed layouts, folded scales)
# ----------------------------------------------------------------------------

def init_params(key, num_layers, d_model, num_heads, d_ff, vocab_size,
                max_seq_len, dtype=jnp.bfloat16):
    std = 0.02
    dh = d_model // num_heads
    keys = jax.random.split(key, 2 + num_layers * 4)
    it = iter(keys)

    def normal(k, shape):
        return jax.random.normal(k, shape, jnp.float32) * std

    # sqrt(d_model) embedding scale folded into the table (removes a
    # bandwidth-bound scale kernel at runtime).
    emb = (normal(next(it), (vocab_size, d_model)) * math.sqrt(d_model)).astype(dtype)

    params = {
        "emb": emb,
        "pos": jnp.zeros((1, max_seq_len, d_model), dtype),
        "out_w": normal(next(it), (d_model, vocab_size)).astype(dtype),  # (K, N)
        "out_b": jnp.zeros((vocab_size,), dtype),
        "layers": [],
    }
    # 1/sqrt(dh) attention scale folded into the q columns of wqkv.
    qkv_scale = jnp.concatenate([
        jnp.full((d_model,), 1.0 / math.sqrt(dh), jnp.float32),
        jnp.ones((2 * d_model,), jnp.float32)])
    for _ in range(num_layers):
        # PyTorch layouts transformed once into kernel-friendly layouts.
        in_proj = normal(next(it), (3 * d_model, d_model))   # (3D, D): [Wq;Wk;Wv]
        wqkv = (in_proj.T * qkv_scale[None, :]).astype(dtype)  # (D, 3D) lane-dense
        out_proj = normal(next(it), (d_model, d_model))       # PyTorch (D, D)
        wo = out_proj.T.astype(dtype)                          # (D, D): x @ wo
        layer = {
            "wqkv": wqkv,
            "bqkv": jnp.zeros((1, 3 * d_model), dtype),
            "wo": wo,
            "bo": jnp.zeros((1, d_model), dtype),
            "w1": normal(next(it), (d_model, d_ff)).astype(dtype),   # (K, N)
            "b1": jnp.zeros((d_ff,), dtype),
            "w2": normal(next(it), (d_ff, d_model)).astype(dtype),   # (K, N)
            "b2": jnp.zeros((d_model,), dtype),
            "ln1_g": jnp.ones((1, d_model), jnp.float32),
            "ln1_b": jnp.zeros((1, d_model), jnp.float32),
            "ln2_g": jnp.ones((1, d_model), jnp.float32),
            "ln2_b": jnp.zeros((1, d_model), jnp.float32),
        }
        params["layers"].append(layer)
    return params


# ----------------------------------------------------------------------------
# Forward pass
# ----------------------------------------------------------------------------

def encoder_layer(x, layer, num_heads):
    """Post-LN TransformerEncoderLayer (PyTorch defaults, dropout = identity)."""
    B, S, D = x.shape
    # Fused: QKV proj + attention + out proj + residual + LN1.
    x1 = mha_block(x, layer, num_heads)                      # (B, S, D)
    x1_2d = x1.reshape(B * S, D)
    # FFN: linear1 + ReLU (tiled), linear2 fused with residual + LN2.
    h = dense(x1_2d, layer["w1"], layer["b1"], activation="relu")
    x2 = dense_res_ln(h, layer["w2"], layer["b2"], x1_2d,
                      layer["ln2_g"], layer["ln2_b"])
    return x2.reshape(B, S, D)


def transformer_forward(params, src, num_heads):
    """src: (B, S) int32 token ids -> (B, S, vocab_size) float32 logits."""
    B, S = src.shape
    D = params["emb"].shape[1]
    V = params["out_w"].shape[1]

    # Embedding gather (scale pre-folded into the table); XLA fuses the
    # positional add with the gather -> no extra HBM round trip.
    emb = jnp.take(params["emb"], src, axis=0)               # (B, S, D)
    x = emb + params["pos"][:, :S, :]

    for layer in params["layers"]:
        x = encoder_layer(x, layer, num_heads)

    # Lane-dense tiled vocab projection (largest mem-bound matmul: max tm so
    # the (D, V) weight is re-streamed as few times as possible), f32 logits.
    logits = dense(x.reshape(B * S, D), params["out_w"], params["out_b"],
                   out_dtype=jnp.float32, tm_target=1024)
    return logits.reshape(B, S, V)

# TODO(synk): dropout (p=0.1) is omitted (eval-mode semantics); src_mask /
# src_key_padding_mask are not plumbed into the attention kernel.


if __name__ == "__main__":
    # Small, self-consistent configuration (module defaults are far too large).
    NUM_LAYERS = 2
    D_MODEL = 128
    NUM_HEADS = 4
    D_FF = 256
    VOCAB_SIZE = 512
    MAX_SEQ_LEN = 16
    BATCH = 2
    SEQ = 8

    key = jax.random.PRNGKey(0)
    pkey, dkey = jax.random.split(key)

    params = init_params(pkey, NUM_LAYERS, D_MODEL, NUM_HEADS, D_FF,
                         VOCAB_SIZE, MAX_SEQ_LEN)
    src = jax.random.randint(dkey, (BATCH, SEQ), 0, VOCAB_SIZE, dtype=jnp.int32)

    fwd = jax.jit(functools.partial(transformer_forward, num_heads=NUM_HEADS))
    out = fwd(params, src)
    out = jax.block_until_ready(out)

    assert out.shape == (BATCH, SEQ, VOCAB_SIZE), out.shape
    assert out.dtype == jnp.float32
    assert bool(jnp.all(jnp.isfinite(out)))
    print("KERNEL_OK")
</pallas_src>

<mosaic_0001>
module attributes {stable_mosaic.version = 11 : i64} {
  func.func @_dense_res_ln_kernel(%arg0: i32, %arg1: i32, %arg2: memref<16x256xbf16, #tpu.memory_space<vmem>>, %arg3: memref<256x128xbf16, #tpu.memory_space<vmem>>, %arg4: memref<1x128xbf16, #tpu.memory_space<vmem>>, %arg5: memref<16x128xbf16, #tpu.memory_space<vmem>>, %arg6: memref<1x128xf32, #tpu.memory_space<vmem>>, %arg7: memref<1x128xf32, #tpu.memory_space<vmem>>, %arg8: memref<16x128xbf16, #tpu.memory_space<vmem>>, %arg9: memref<16x128xf32, #tpu.memory_space<vmem>>) attributes {dimension_semantics = [#tpu.dimension_semantics<parallel>, #tpu.dimension_semantics<arbitrary>], iteration_bounds = array<i64: 1, 1>, scalar_prefetch = 0 : i64, scratch_operands = 1 : i64, tpu.core_type = #tpu.core_type<tc>, window_params = [{transform_indices = @transform_0, window_bounds = array<i64: 16, 256>}, {transform_indices = @transform_1, window_bounds = array<i64: 256, 128>}, {pipeline_mode = #tpu.pipeline_mode<synchronous>, transform_indices = @transform_2, window_bounds = array<i64: 1, 128>}, {transform_indices = @transform_3, window_bounds = array<i64: 16, 128>}, {pipeline_mode = #tpu.pipeline_mode<synchronous>, transform_indices = @transform_4, window_bounds = array<i64: 1, 128>}, {pipeline_mode = #tpu.pipeline_mode<synchronous>, transform_indices = @transform_5, window_bounds = array<i64: 1, 128>}, {transform_indices = @transform_6, window_bounds = array<i64: 16, 128>}]} {
    %c0_i32 = arith.constant 0 : i32
    %0 = arith.cmpi eq, %arg1, %c0_i32 : i32
    %1 = arith.extui %0 : i1 to i32
    %c0_i32_0 = arith.constant 0 : i32
    %2 = arith.cmpi ne, %1, %c0_i32_0 : i32
    scf.if %2 {
      %cst_10 = arith.constant 0.000000e+00 : f32
      %12 = vector.broadcast %cst_10 : f32 to vector<16x128xf32>
      %c0_11 = arith.constant 0 : index
      %c0_12 = arith.constant 0 : index
      %13 = vector.load %arg9[%c0_11, %c0_12] : memref<16x128xf32, #tpu.memory_space<vmem>>, vector<16x128xf32>
      tpu.vector_store %arg9[%c0_11, %c0_12], %12 {strides = array<i32>} : memref<16x128xf32, #tpu.memory_space<vmem>>, vector<16x128xf32>,
    } else {
    }
    %c0 = arith.constant 0 : index
    %c0_1 = arith.constant 0 : index
    %3 = vector.load %arg9[%c0, %c0_1] : memref<16x128xf32, #tpu.memory_space<vmem>>, vector<16x128xf32>
    %c0_2 = arith.constant 0 : index
    %c0_3 = arith.constant 0 : index
    %4 = vector.load %arg2[%c0_2, %c0_3] : memref<16x256xbf16, #tpu.memory_space<vmem>>, vector<16x256xbf16>
    %c0_4 = arith.constant 0 : index
    %c0_5 = arith.constant 0 : index
    %5 = vector.load %arg3[%c0_4, %c0_5] : memref<256x128xbf16, #tpu.memory_space<vmem>>, vector<256x128xbf16>
    %cst = arith.constant dense<0.000000e+00> : vector<16x128xf32>
    %6 = tpu.matmul %4, %5, %cst {dimension_numbers = #tpu.dot_dimension_numbers<[1], [0], [0], [1], [0, 0, 1, 1], [], []>} : vector<16x256xbf16>, vector<256x128xbf16>, vector<16x128xf32> -> vector<16x128xf32>
    %7 = arith.addf %3, %6 : vector<16x128xf32>
    %c0_6 = arith.constant 0 : index
    %c0_7 = arith.constant 0 : index
    %8 = vector.load %arg9[%c0_6, %c0_7] : memref<16x128xf32, #tpu.memory_space<vmem>>, vector<16x128xf32>
    tpu.vector_store %arg9[%c0_6, %c0_7], %7 {strides = array<i32>} : memref<16x128xf32, #tpu.memory_space<vmem>>, vector<16x128xf32>,
    %c0_i32_8 = arith.constant 0 : i32
    %9 = arith.cmpi eq, %arg1, %c0_i32_8 : i32
    %10 = arith.extui %9 : i1 to i32
    %c0_i32_9 = arith.constant 0 : i32
    %11 = arith.cmpi ne, %10, %c0_i32_9 : i32
    scf.if %11 {
      %c0_10 = arith.constant 0 : index
      %c0_11 = arith.constant 0 : index
      %12 = vector.load %arg9[%c0_10, %c0_11] : memref<16x128xf32, #tpu.memory_space<vmem>>, vector<16x128xf32>
      %c0_12 = arith.constant 0 : index
      %c0_13 = arith.constant 0 : index
      %13 = vector.load %arg4[%c0_12, %c0_13] : memref<1x128xbf16, #tpu.memory_space<vmem>>, vector<1x128xbf16>
      %14 = arith.extf %13 : vector<1x128xbf16> to vector<1x128xf32>
      %15 = vector.broadcast %14 : vector<1x128xf32> to vector<16x128xf32>
      %16 = arith.addf %12, %15 : vector<16x128xf32>
      %c0_14 = arith.constant 0 : index
      %c0_15 = arith.constant 0 : index
      %17 = vector.load %arg5[%c0_14, %c0_15] : memref<16x128xbf16, #tpu.memory_space<vmem>>, vector<16x128xbf16>
      %18 = arith.extf %17 : vector<16x128xbf16> to vector<16x128xf32>
      %19 = arith.addf %16, %18 : vector<16x128xf32>
      %cst_16 = arith.constant dense<0.000000e+00> : vector<16xf32>
      %20 = vector.multi_reduction <add>, %19, %cst_16 [1] : vector<16x128xf32> to vector<16xf32>
      %21 = vector.shape_cast %20 : vector<16xf32> to vector<16x1xf32>
      %cst_17 = arith.constant 1.280000e+02 : f32
      %22 = vector.broadcast %cst_17 : f32 to vector<16x1xf32>
      %23 = arith.divf %21, %22 : vector<16x1xf32>
      %24 = vector.broadcast %23 : vector<16x1xf32> to vector<16x128xf32>
      %25 = arith.subf %19, %24 : vector<16x128xf32>
      %26 = arith.mulf %25, %25 : vector<16x128xf32>
      %cst_18 = arith.constant dense<0.000000e+00> : vector<16xf32>
      %27 = vector.multi_reduction <add>, %26, %cst_18 [1] : vector<16x128xf32> to vector<16xf32>
      %28 = vector.shape_cast %27 : vector<16xf32> to vector<16x1xf32>
      %cst_19 = arith.constant 1.280000e+02 : f32
      %29 = vector.broadcast %cst_19 : f32 to vector<16x1xf32>
      %30 = arith.divf %28, %29 : vector<16x1xf32>
      %31 = vector.broadcast %23 : vector<16x1xf32> to vector<16x128xf32>
      %32 = arith.subf %19, %31 : vector<16x128xf32>
      %cst_20 = arith.constant 9.99999974E-6 : f32
      %33 = vector.broadcast %cst_20 : f32 to vector<16x1xf32>
      %34 = arith.addf %30, %33 : vector<16x1xf32>
      %35 = math.rsqrt %34 : vector<16x1xf32>
      %36 = vector.broadcast %35 : vector<16x1xf32> to vector<16x128xf32>
      %37 = arith.mulf %32, %36 : vector<16x128xf32>
      %c0_21 = arith.constant 0 : index
      %c0_22 = arith.constant 0 : index
      %38 = vector.load %arg6[%c0_21, %c0_22] : memref<1x128xf32, #tpu.memory_space<vmem>>, vector<1x128xf32>
      %39 = vector.broadcast %38 : vector<1x128xf32> to vector<16x128xf32>
      %40 = arith.mulf %37, %39 : vector<16x128xf32>
      %c0_23 = arith.constant 0 : index
      %c0_24 = arith.constant 0 : index
      %41 = vector.load %arg7[%c0_23, %c0_24] : memref<1x128xf32, #tpu.memory_space<vmem>>, vector<1x128xf32>
      %42 = vector.broadcast %41 : vector<1x128xf32> to vector<16x128xf32>
      %43 = arith.addf %40, %42 : vector<16x128xf32>
      %44 = arith.truncf %43 : vector<16x128xf32> to vector<16x128xbf16>
      %c0_25 = arith.constant 0 : index
      %c0_26 = arith.constant 0 : index
      %45 = vector.load %arg8[%c0_25, %c0_26] : memref<16x128xbf16, #tpu.memory_space<vmem>>, vector<16x128xbf16>
      tpu.vector_store %arg8[%c0_25, %c0_26], %44 {strides = array<i32>} : memref<16x128xbf16, #tpu.memory_space<vmem>>, vector<16x128xbf16>,
    } else {
    }
    return
  }
  func.func @transform_0(%arg0: i32, %arg1: i32) -> (i32, i32) {
    %c0_i32 = arith.constant 0 : i32
    return %arg0, %arg1 : i32, i32
  }
  func.func @transform_1(%arg0: i32, %arg1: i32) -> (i32, i32) {
    %c0_i32 = arith.constant 0 : i32
    %c0_i32_0 = arith.constant 0 : i32
    return %arg1, %c0_i32 : i32, i32
  }
  func.func @transform_2(%arg0: i32, %arg1: i32) -> (i32, i32) {
    %c0_i32 = arith.constant 0 : i32
    %c0_i32_0 = arith.constant 0 : i32
    %c0_i32_1 = arith.constant 0 : i32
    return %c0_i32, %c0_i32_0 : i32, i32
  }
  func.func @transform_3(%arg0: i32, %arg1: i32) -> (i32, i32) {
    %c0_i32 = arith.constant 0 : i32
    %c0_i32_0 = arith.constant 0 : i32
    return %arg0, %c0_i32 : i32, i32
  }
  func.func @transform_4(%arg0: i32, %arg1: i32) -> (i32, i32) {
    %c0_i32 = arith.constant 0 : i32
    %c0_i32_0 = arith.constant 0 : i32
    %c0_i32_1 = arith.constant 0 : i32
    return %c0_i32, %c0_i32_0 : i32, i32
  }
  func.func @transform_5(%arg0: i32, %arg1: i32) -> (i32, i32) {
    %c0_i32 = arith.constant 0 : i32
    %c0_i32_0 = arith.constant 0 : i32
    %c0_i32_1 = arith.constant 0 : i32
    return %c0_i32, %c0_i32_0 : i32, i32
  }
  func.func @transform_6(%arg0: i32, %arg1: i32) -> (i32, i32) {
    %c0_i32 = arith.constant 0 : i32
    %c0_i32_0 = arith.constant 0 : i32
    return %arg0, %c0_i32 : i32, i32
  }
}

module attributes {stable_mosaic.version = 11 : i64} {
  func.func @_dense_kernel(%arg0: i32, %arg1: i32, %arg2: i32, %arg3: memref<16x128xbf16, #tpu.memory_space<vmem>>, %arg4: memref<128x256xbf16, #tpu.memory_space<vmem>>, %arg5: memref<1x256xbf16, #tpu.memory_space<vmem>>, %arg6: memref<16x256xbf16, #tpu.memory_space<vmem>>, %arg7: memref<16x256xf32, #tpu.memory_space<vmem>>) attributes {dimension_semantics = [#tpu.dimension_semantics<parallel>, #tpu.dimension_semantics<parallel>, #tpu.dimension_semantics<arbitrary>], iteration_bounds = array<i64: 1, 1, 1>, scalar_prefetch = 0 : i64, scratch_operands = 1 : i64, tpu.core_type = #tpu.core_type<tc>, window_params = [{transform_indices = @transform_0, window_bounds = array<i64: 16, 128>}, {transform_indices = @transform_1, window_bounds = array<i64: 128, 256>}, {transform_indices = @transform_2, window_bounds = array<i64: 1, 256>}, {transform_indices = @transform_3, window_bounds = array<i64: 16, 256>}]} {
    %c0_i32 = arith.constant 0 : i32
    %0 = arith.cmpi eq, %arg2, %c0_i32 : i32
    %1 = arith.extui %0 : i1 to i32
    %c0_i32_0 = arith.constant 0 : i32
    %2 = arith.cmpi ne, %1, %c0_i32_0 : i32
    scf.if %2 {
      %cst_10 = arith.constant 0.000000e+00 : f32
      %12 = vector.broadcast %cst_10 : f32 to vector<16x256xf32>
      %c0_11 = arith.constant 0 : index
      %c0_12 = arith.constant 0 : index
      %13 = vector.load %arg7[%c0_11, %c0_12] : memref<16x256xf32, #tpu.memory_space<vmem>>, vector<16x256xf32>
      tpu.vector_store %arg7[%c0_11, %c0_12], %12 {strides = array<i32>} : memref<16x256xf32, #tpu.memory_space<vmem>>, vector<16x256xf32>,
    } else {
    }
    %c0 = arith.constant 0 : index
    %c0_1 = arith.constant 0 : index
    %3 = vector.load %arg7[%c0, %c0_1] : memref<16x256xf32, #tpu.memory_space<vmem>>, vector<16x256xf32>
    %c0_2 = arith.constant 0 : index
    %c0_3 = arith.constant 0 : index
    %4 = vector.load %arg3[%c0_2, %c0_3] : memref<16x128xbf16, #tpu.memory_space<vmem>>, vector<16x128xbf16>
    %c0_4 = arith.constant 0 : index
    %c0_5 = arith.constant 0 : index
    %5 = vector.load %arg4[%c0_4, %c0_5] : memref<128x256xbf16, #tpu.memory_space<vmem>>, vector<128x256xbf16>
    %cst = arith.constant dense<0.000000e+00> : vector<16x256xf32>
    %6 = tpu.matmul %4, %5, %cst {dimension_numbers = #tpu.dot_dimension_numbers<[1], [0], [0], [1], [0, 0, 1, 1], [], []>} : vector<16x128xbf16>, vector<128x256xbf16>, vector<16x256xf32> -> vector<16x256xf32>
    %7 = arith.addf %3, %6 : vector<16x256xf32>
    %c0_6 = arith.constant 0 : index
    %c0_7 = arith.constant 0 : index
    %8 = vector.load %arg7[%c0_6, %c0_7] : memref<16x256xf32, #tpu.memory_space<vmem>>, vector<16x256xf32>
    tpu.vector_store %arg7[%c0_6, %c0_7], %7 {strides = array<i32>} : memref<16x256xf32, #tpu.memory_space<vmem>>, vector<16x256xf32>,
    %c0_i32_8 = arith.constant 0 : i32
    %9 = arith.cmpi eq, %arg2, %c0_i32_8 : i32
    %10 = arith.extui %9 : i1 to i32
    %c0_i32_9 = arith.constant 0 : i32
    %11 = arith.cmpi ne, %10, %c0_i32_9 : i32
    scf.if %11 {
      %c0_10 = arith.constant 0 : index
      %c0_11 = arith.constant 0 : index
      %12 = vector.load %arg7[%c0_10, %c0_11] : memref<16x256xf32, #tpu.memory_space<vmem>>, vector<16x256xf32>
      %c0_12 = arith.constant 0 : index
      %c0_13 = arith.constant 0 : index
      %13 = vector.load %arg5[%c0_12, %c0_13] : memref<1x256xbf16, #tpu.memory_space<vmem>>, vector<1x256xbf16>
      %14 = arith.extf %13 : vector<1x256xbf16> to vector<1x256xf32>
      %15 = vector.broadcast %14 : vector<1x256xf32> to vector<16x256xf32>
      %16 = arith.addf %12, %15 : vector<16x256xf32>
      %cst_14 = arith.constant 0.000000e+00 : f32
      %17 = vector.broadcast %cst_14 : f32 to vector<16x256xf32>
      %18 = arith.maximumf %16, %17 : vector<16x256xf32>
      %19 = arith.truncf %18 : vector<16x256xf32> to vector<16x256xbf16>
      %c0_15 = arith.constant 0 : index
      %c0_16 = arith.constant 0 : index
      %20 = vector.load %arg6[%c0_15, %c0_16] : memref<16x256xbf16, #tpu.memory_space<vmem>>, vector<16x256xbf16>
      tpu.vector_store %arg6[%c0_15, %c0_16], %19 {strides = array<i32>} : memref<16x256xbf16, #tpu.memory_space<vmem>>, vector<16x256xbf16>,
    } else {
    }
    return
  }
  func.func @transform_0(%arg0: i32, %arg1: i32, %arg2: i32) -> (i32, i32) {
    %c0_i32 = arith.constant 0 : i32
    return %arg0, %arg2 : i32, i32
  }
  func.func @transform_1(%arg0: i32, %arg1: i32, %arg2: i32) -> (i32, i32) {
    %c0_i32 = arith.constant 0 : i32
    return %arg2, %arg1 : i32, i32
  }
  func.func @transform_2(%arg0: i32, %arg1: i32, %arg2: i32) -> (i32, i32) {
    %c0_i32 = arith.constant 0 : i32
    %c0_i32_0 = arith.constant 0 : i32
    return %c0_i32, %arg1 : i32, i32
  }
  func.func @transform_3(%arg0: i32, %arg1: i32, %arg2: i32) -> (i32, i32) {
    %c0_i32 = arith.constant 0 : i32
    return %arg0, %arg1 : i32, i32
  }
}

module attributes {stable_mosaic.version = 11 : i64} {
  func.func @_mha_ln_kernel(%arg0: i32, %arg1: memref<1x8x128xbf16, #tpu.memory_space<vmem>>, %arg2: memref<128x384xbf16, #tpu.memory_space<vmem>>, %arg3: memref<1x384xbf16, #tpu.memory_space<vmem>>, %arg4: memref<128x128xbf16, #tpu.memory_space<vmem>>, %arg5: memref<1x128xbf16, #tpu.memory_space<vmem>>, %arg6: memref<1x128xf32, #tpu.memory_space<vmem>>, %arg7: memref<1x128xf32, #tpu.memory_space<vmem>>, %arg8: memref<1x8x128xbf16, #tpu.memory_space<vmem>>) attributes {dimension_semantics = [#tpu.dimension_semantics<parallel>], iteration_bounds = array<i64: 2>, scalar_prefetch = 0 : i64, scratch_operands = 0 : i64, tpu.core_type = #tpu.core_type<tc>, window_params = [{transform_indices = @transform_0, window_bounds = array<i64: 1, 8, 128>}, {pipeline_mode = #tpu.pipeline_mode<synchronous>, transform_indices = @transform_1, window_bounds = array<i64: 128, 384>}, {pipeline_mode = #tpu.pipeline_mode<synchronous>, transform_indices = @transform_2, window_bounds = array<i64: 1, 384>}, {pipeline_mode = #tpu.pipeline_mode<synchronous>, transform_indices = @transform_3, window_bounds = array<i64: 128, 128>}, {pipeline_mode = #tpu.pipeline_mode<synchronous>, transform_indices = @transform_4, window_bounds = array<i64: 1, 128>}, {pipeline_mode = #tpu.pipeline_mode<synchronous>, transform_indices = @transform_5, window_bounds = array<i64: 1, 128>}, {pipeline_mode = #tpu.pipeline_mode<synchronous>, transform_indices = @transform_6, window_bounds = array<i64: 1, 128>}, {transform_indices = @transform_7, window_bounds = array<i64: 1, 8, 128>}]} {
    %c0 = arith.constant 0 : index
    %c0_0 = arith.constant 0 : index
    %c0_1 = arith.constant 0 : index
    %0 = vector.load %arg1[%c0, %c0_0, %c0_1] : memref<1x8x128xbf16, #tpu.memory_space<vmem>>, vector<1x8x128xbf16>
    %1 = vector.shape_cast %0 : vector<1x8x128xbf16> to vector<8x128xbf16>
    %c0_2 = arith.constant 0 : index
    %c0_3 = arith.constant 0 : index
    %2 = vector.load %arg2[%c0_2, %c0_3] : memref<128x384xbf16, #tpu.memory_space<vmem>>, vector<128x384xbf16>
    %cst = arith.constant dense<0.000000e+00> : vector<8x384xf32>
    %3 = tpu.matmul %1, %2, %cst {dimension_numbers = #tpu.dot_dimension_numbers<[1], [0], [0], [1], [0, 0, 1, 1], [], []>} : vector<8x128xbf16>, vector<128x384xbf16>, vector<8x384xf32> -> vector<8x384xf32>
    %c0_4 = arith.constant 0 : index
    %c0_5 = arith.constant 0 : index
    %4 = vector.load %arg3[%c0_4, %c0_5] : memref<1x384xbf16, #tpu.memory_space<vmem>>, vector<1x384xbf16>
    %5 = arith.extf %4 : vector<1x384xbf16> to vector<1x384xf32>
    %6 = vector.broadcast %5 : vector<1x384xf32> to vector<8x384xf32>
    %7 = arith.addf %3, %6 : vector<8x384xf32>
    %8 = arith.truncf %7 : vector<8x384xf32> to vector<8x384xbf16>
    %9 = vector.extract_strided_slice %8 {offsets = [0, 0], sizes = [8, 32], strides = [1, 1]} : vector<8x384xbf16> to vector<8x32xbf16>
    %10 = vector.extract_strided_slice %8 {offsets = [0, 128], sizes = [8, 32], strides = [1, 1]} : vector<8x384xbf16> to vector<8x32xbf16>
    %11 = vector.extract_strided_slice %8 {offsets = [0, 256], sizes = [8, 32], strides = [1, 1]} : vector<8x384xbf16> to vector<8x32xbf16>
    %cst_6 = arith.constant dense<0.000000e+00> : vector<8x8xf32>
    %12 = tpu.matmul %9, %10, %cst_6 {dimension_numbers = #tpu.dot_dimension_numbers<[1], [1], [0], [0], [0, 0, 1, 0], [], []>} : vector<8x32xbf16>, vector<8x32xbf16>, vector<8x8xf32> -> vector<8x8xf32>
    %cst_7 = arith.constant dense<0xFF800000> : vector<8xf32>
    %13 = vector.multi_reduction <maximumf>, %12, %cst_7 [1] : vector<8x8xf32> to vector<8xf32>
    %14 = vector.shape_cast %13 : vector<8xf32> to vector<8x1xf32>
    %15 = vector.broadcast %14 : vector<8x1xf32> to vector<8x8xf32>
    %16 = arith.subf %12, %15 : vector<8x8xf32>
    %17 = math.exp %16 : vector<8x8xf32>
    %cst_8 = arith.constant dense<0.000000e+00> : vector<8xf32>
    %18 = vector.multi_reduction <add>, %17, %cst_8 [1] : vector<8x8xf32> to vector<8xf32>
    %19 = vector.shape_cast %18 : vector<8xf32> to vector<8x1xf32>
    %20 = arith.truncf %17 : vector<8x8xf32> to vector<8x8xbf16>
    %cst_9 = arith.constant dense<0.000000e+00> : vector<8x32xf32>
    %21 = tpu.matmul %20, %11, %cst_9 {dimension_numbers = #tpu.dot_dimension_numbers<[1], [0], [0], [1], [0, 0, 1, 1], [], []>} : vector<8x8xbf16>, vector<8x32xbf16>, vector<8x32xf32> -> vector<8x32xf32>
    %22 = tpu.reciprocal %19 {approx = true} : vector<8x1xf32> -> vector<8x1xf32>
    %23 = vector.broadcast %22 : vector<8x1xf32> to vector<8x32xf32>
    %24 = arith.mulf %21, %23 : vector<8x32xf32>
    %25 = vector.extract_strided_slice %8 {offsets = [0, 32], sizes = [8, 32], strides = [1, 1]} : vector<8x384xbf16> to vector<8x32xbf16>
    %26 = vector.extract_strided_slice %8 {offsets = [0, 160], sizes = [8, 32], strides = [1, 1]} : vector<8x384xbf16> to vector<8x32xbf16>
    %27 = vector.extract_strided_slice %8 {offsets = [0, 288], sizes = [8, 32], strides = [1, 1]} : vector<8x384xbf16> to vector<8x32xbf16>
    %cst_10 = arith.constant dense<0.000000e+00> : vector<8x8xf32>
    %28 = tpu.matmul %25, %26, %cst_10 {dimension_numbers = #tpu.dot_dimension_numbers<[1], [1], [0], [0], [0, 0, 1, 0], [], []>} : vector<8x32xbf16>, vector<8x32xbf16>, vector<8x8xf32> -> vector<8x8xf32>
    %cst_11 = arith.constant dense<0xFF800000> : vector<8xf32>
    %29 = vector.multi_reduction <maximumf>, %28, %cst_11 [1] : vector<8x8xf32> to vector<8xf32>
    %30 = vector.shape_cast %29 : vector<8xf32> to vector<8x1xf32>
    %31 = vector.broadcast %30 : vector<8x1xf32> to vector<8x8xf32>
    %32 = arith.subf %28, %31 : vector<8x8xf32>
    %33 = math.exp %32 : vector<8x8xf32>
    %cst_12 = arith.constant dense<0.000000e+00> : vector<8xf32>
    %34 = vector.multi_reduction <add>, %33, %cst_12 [1] : vector<8x8xf32> to vector<8xf32>
    %35 = vector.shape_cast %34 : vector<8xf32> to vector<8x1xf32>
    %36 = arith.truncf %33 : vector<8x8xf32> to vector<8x8xbf16>
    %cst_13 = arith.constant dense<0.000000e+00> : vector<8x32xf32>
    %37 = tpu.matmul %36, %27, %cst_13 {dimension_numbers = #tpu.dot_dimension_numbers<[1], [0], [0], [1], [0, 0, 1, 1], [], []>} : vector<8x8xbf16>, vector<8x32xbf16>, vector<8x32xf32> -> vector<8x32xf32>
    %38 = tpu.reciprocal %35 {approx = true} : vector<8x1xf32> -> vector<8x1xf32>
    %39 = vector.broadcast %38 : vector<8x1xf32> to vector<8x32xf32>
    %40 = arith.mulf %37, %39 : vector<8x32xf32>
    %41 = vector.extract_strided_slice %8 {offsets = [0, 64], sizes = [8, 32], strides = [1, 1]} : vector<8x384xbf16> to vector<8x32xbf16>
    %42 = vector.extract_strided_slice %8 {offsets = [0, 192], sizes = [8, 32], strides = [1, 1]} : vector<8x384xbf16> to vector<8x32xbf16>
    %43 = vector.extract_strided_slice %8 {offsets = [0, 320], sizes = [8, 32], strides = [1, 1]} : vector<8x384xbf16> to vector<8x32xbf16>
    %cst_14 = arith.constant dense<0.000000e+00> : vector<8x8xf32>
    %44 = tpu.matmul %41, %42, %cst_14 {dimension_numbers = #tpu.dot_dimension_numbers<[1], [1], [0], [0], [0, 0, 1, 0], [], []>} : vector<8x32xbf16>, vector<8x32xbf16>, vector<8x8xf32> -> vector<8x8xf32>
    %cst_15 = arith.constant dense<0xFF800000> : vector<8xf32>
    %45 = vector.multi_reduction <maximumf>, %44, %cst_15 [1] : vector<8x8xf32> to vector<8xf32>
    %46 = vector.shape_cast %45 : vector<8xf32> to vector<8x1xf32>
    %47 = vector.broadcast %46 : vector<8x1xf32> to vector<8x8xf32>
    %48 = arith.subf %44, %47 : vector<8x8xf32>
    %49 = math.exp %48 : vector<8x8xf32>
    %cst_16 = arith.constant dense<0.000000e+00> : vector<8xf32>
    %50 = vector.multi_reduction <add>, %49, %cst_16 [1] : vector<8x8xf32> to vector<8xf32>
    %51 = vector.shape_cast %50 : vector<8xf32> to vector<8x1xf32>
    %52 = arith.truncf %49 : vector<8x8xf32> to vector<8x8xbf16>
    %cst_17 = arith.constant dense<0.000000e+00> : vector<8x32xf32>
    %53 = tpu.matmul %52, %43, %cst_17 {dimension_numbers = #tpu.dot_dimension_numbers<[1], [0], [0], [1], [0, 0, 1, 1], [], []>} : vector<8x8xbf16>, vector<8x32xbf16>, vector<8x32xf32> -> vector<8x32xf32>
    %54 = tpu.reciprocal %51 {approx = true} : vector<8x1xf32> -> vector<8x1xf32>
    %55 = vector.broadcast %54 : vector<8x1xf32> to vector<8x32xf32>
    %56 = arith.mulf %53, %55 : vector<8x32xf32>
    %57 = vector.extract_strided_slice %8 {offsets = [0, 96], sizes = [8, 32], strides = [1, 1]} : vector<8x384xbf16> to vector<8x32xbf16>
    %58 = vector.extract_strided_slice %8 {offsets = [0, 224], sizes = [8, 32], strides = [1, 1]} : vector<8x384xbf16> to vector<8x32xbf16>
    %59 = vector.extract_strided_slice %8 {offsets = [0, 352], sizes = [8, 32], strides = [1, 1]} : vector<8x384xbf16> to vector<8x32xbf16>
    %cst_18 = arith.constant dense<0.000000e+00> : vector<8x8xf32>
    %60 = tpu.matmul %57, %58, %cst_18 {dimension_numbers = #tpu.dot_dimension_numbers<[1], [1], [0], [0], [0, 0, 1, 0], [], []>} : vector<8x32xbf16>, vector<8x32xbf16>, vector<8x8xf32> -> vector<8x8xf32>
    %cst_19 = arith.constant dense<0xFF800000> : vector<8xf32>
    %61 = vector.multi_reduction <maximumf>, %60, %cst_19 [1] : vector<8x8xf32> to vector<8xf32>
    %62 = vector.shape_cast %61 : vector<8xf32> to vector<8x1xf32>
    %63 = vector.broadcast %62 : vector<8x1xf32> to vector<8x8xf32>
    %64 = arith.subf %60, %63 : vector<8x8xf32>
    %65 = math.exp %64 : vector<8x8xf32>
    %cst_20 = arith.constant dense<0.000000e+00> : vector<8xf32>
    %66 = vector.multi_reduction <add>, %65, %cst_20 [1] : vector<8x8xf32> to vector<8xf32>
    %67 = vector.shape_cast %66 : vector<8xf32> to vector<8x1xf32>
    %68 = arith.truncf %65 : vector<8x8xf32> to vector<8x8xbf16>
    %cst_21 = arith.constant dense<0.000000e+00> : vector<8x32xf32>
    %69 = tpu.matmul %68, %59, %cst_21 {dimension_numbers = #tpu.dot_dimension_numbers<[1], [0], [0], [1], [0, 0, 1, 1], [], []>} : vector<8x8xbf16>, vector<8x32xbf16>, vector<8x32xf32> -> vector<8x32xf32>
    %70 = tpu.reciprocal %67 {approx = true} : vector<8x1xf32> -> vector<8x1xf32>
    %71 = vector.broadcast %70 : vector<8x1xf32> to vector<8x32xf32>
    %72 = arith.mulf %69, %71 : vector<8x32xf32>
    %73 = tpu.concatenate %24, %40, %56, %72 in 1 : vector<8x32xf32>, vector<8x32xf32>, vector<8x32xf32>, vector<8x32xf32> -> vector<8x128xf32>
    %74 = arith.truncf %73 : vector<8x128xf32> to vector<8x128xbf16>
    %c0_22 = arith.constant 0 : index
    %c0_23 = arith.constant 0 : index
    %75 = vector.load %arg4[%c0_22, %c0_23] : memref<128x128xbf16, #tpu.memory_space<vmem>>, vector<128x128xbf16>
    %cst_24 = arith.constant dense<0.000000e+00> : vector<8x128xf32>
    %76 = tpu.matmul %74, %75, %cst_24 {dimension_numbers = #tpu.dot_dimension_numbers<[1], [0], [0], [1], [0, 0, 1, 1], [], []>} : vector<8x128xbf16>, vector<128x128xbf16>, vector<8x128xf32> -> vector<8x128xf32>
    %c0_25 = arith.constant 0 : index
    %c0_26 = arith.constant 0 : index
    %77 = vector.load %arg5[%c0_25, %c0_26] : memref<1x128xbf16, #tpu.memory_space<vmem>>, vector<1x128xbf16>
    %78 = arith.extf %77 : vector<1x128xbf16> to vector<1x128xf32>
    %79 = vector.broadcast %78 : vector<1x128xf32> to vector<8x128xf32>
    %80 = arith.addf %76, %79 : vector<8x128xf32>
    %81 = arith.extf %1 : vector<8x128xbf16> to vector<8x128xf32>
    %82 = arith.addf %80, %81 : vector<8x128xf32>
    %cst_27 = arith.constant dense<0.000000e+00> : vector<8xf32>
    %83 = vector.multi_reduction <add>, %82, %cst_27 [1] : vector<8x128xf32> to vector<8xf32>
    %84 = vector.shape_cast %83 : vector<8xf32> to vector<8x1xf32>
    %cst_28 = arith.constant 1.280000e+02 : f32
    %85 = vector.broadcast %cst_28 : f32 to vector<8x1xf32>
    %86 = arith.divf %84, %85 : vector<8x1xf32>
    %87 = vector.broadcast %86 : vector<8x1xf32> to vector<8x128xf32>
    %88 = arith.subf %82, %87 : vector<8x128xf32>
    %89 = arith.mulf %88, %88 : vector<8x128xf32>
    %cst_29 = arith.constant dense<0.000000e+00> : vector<8xf32>
    %90 = vector.multi_reduction <add>, %89, %cst_29 [1] : vector<8x128xf32> to vector<8xf32>
    %91 = vector.shape_cast %90 : vector<8xf32> to vector<8x1xf32>
    %cst_30 = arith.constant 1.280000e+02 : f32
    %92 = vector.broadcast %cst_30 : f32 to vector<8x1xf32>
    %93 = arith.divf %91, %92 : vector<8x1xf32>
    %94 = vector.broadcast %86 : vector<8x1xf32> to vector<8x128xf32>
    %95 = arith.subf %82, %94 : vector<8x128xf32>
    %cst_31 = arith.constant 9.99999974E-6 : f32
    %96 = vector.broadcast %cst_31 : f32 to vector<8x1xf32>
    %97 = arith.addf %93, %96 : vector<8x1xf32>
    %98 = math.rsqrt %97 : vector<8x1xf32>
    %99 = vector.broadcast %98 : vector<8x1xf32> to vector<8x128xf32>
    %100 = arith.mulf %95, %99 : vector<8x128xf32>
    %c0_32 = arith.constant 0 : index
    %c0_33 = arith.constant 0 : index
    %101 = vector.load %arg6[%c0_32, %c0_33] : memref<1x128xf32, #tpu.memory_space<vmem>>, vector<1x128xf32>
    %102 = vector.broadcast %101 : vector<1x128xf32> to vector<8x128xf32>
    %103 = arith.mulf %100, %102 : vector<8x128xf32>
    %c0_34 = arith.constant 0 : index
    %c0_35 = arith.constant 0 : index
    %104 = vector.load %arg7[%c0_34, %c0_35] : memref<1x128xf32, #tpu.memory_space<vmem>>, vector<1x128xf32>
    %105 = vector.broadcast %104 : vector<1x128xf32> to vector<8x128xf32>
    %106 = arith.addf %103, %105 : vector<8x128xf32>
    %107 = arith.truncf %106 : vector<8x128xf32> to vector<8x128xbf16>
    %c0_36 = arith.constant 0 : index
    %c0_37 = arith.constant 0 : index
    %c0_38 = arith.constant 0 : index
    %108 = vector.load %arg8[%c0_36, %c0_37, %c0_38] : memref<1x8x128xbf16, #tpu.memory_space<vmem>>, vector<1x8x128xbf16>
    %109 = vector.shape_cast %108 : vector<1x8x128xbf16> to vector<8x128xbf16>
    %110 = vector.shape_cast %107 : vector<8x128xbf16> to vector<1x8x128xbf16>
    tpu.vector_store %arg8[%c0_36, %c0_37, %c0_38], %110 {strides = array<i32>} : memref<1x8x128xbf16, #tpu.memory_space<vmem>>, vector<1x8x128xbf16>,
    return
  }
  func.func @transform_0(%arg0: i32) -> (i32, i32, i32) {
    %c0_i32 = arith.constant 0 : i32
    %c0_i32_0 = arith.constant 0 : i32
    %c0_i32_1 = arith.constant 0 : i32
    return %arg0, %c0_i32, %c0_i32_0 : i32, i32, i32
  }
  func.func @transform_1(%arg0: i32) -> (i32, i32) {
    %c0_i32 = arith.constant 0 : i32
    %c0_i32_0 = arith.constant 0 : i32
    %c0_i32_1 = arith.constant 0 : i32
    return %c0_i32, %c0_i32_0 : i32, i32
  }
  func.func @transform_2(%arg0: i32) -> (i32, i32) {
    %c0_i32 = arith.constant 0 : i32
    %c0_i32_0 = arith.constant 0 : i32
    %c0_i32_1 = arith.constant 0 : i32
    return %c0_i32, %c0_i32_0 : i32, i32
  }
  func.func @transform_3(%arg0: i32) -> (i32, i32) {
    %c0_i32 = arith.constant 0 : i32
    %c0_i32_0 = arith.constant 0 : i32
    %c0_i32_1 = arith.constant 0 : i32
    return %c0_i32, %c0_i32_0 : i32, i32
  }
  func.func @transform_4(%arg0: i32) -> (i32, i32) {
    %c0_i32 = arith.constant 0 : i32
    %c0_i32_0 = arith.constant 0 : i32
    %c0_i32_1 = arith.constant 0 : i32
    return %c0_i32, %c0_i32_0 : i32, i32
  }
  func.func @transform_5(%arg0: i32) -> (i32, i32) {
    %c0_i32 = arith.constant 0 : i32
    %c0_i32_0 = arith.constant 0 : i32
    %c0_i32_1 = arith.constant 0 : i32
    return %c0_i32, %c0_i32_0 : i32, i32
  }
  func.func @transform_6(%arg0: i32) -> (i32, i32) {
    %c0_i32 = arith.constant 0 : i32
    %c0_i32_0 = arith.constant 0 : i32
    %c0_i32_1 = arith.constant 0 : i32
    return %c0_i32, %c0_i32_0 : i32, i32
  }
  func.func @transform_7(%arg0: i32) -> (i32, i32, i32) {
    %c0_i32 = arith.constant 0 : i32
    %c0_i32_0 = arith.constant 0 : i32
    %c0_i32_1 = arith.constant 0 : i32
    return %arg0, %c0_i32, %c0_i32_0 : i32, i32, i32
  }
}

module attributes {stable_mosaic.version = 11 : i64} {
  func.func @_mha_ln_kernel(%arg0: i32, %arg1: memref<1x8x128xbf16, #tpu.memory_space<vmem>>, %arg2: memref<128x384xbf16, #tpu.memory_space<vmem>>, %arg3: memref<1x384xbf16, #tpu.memory_space<vmem>>, %arg4: memref<128x128xbf16, #tpu.memory_space<vmem>>, %arg5: memref<1x128xbf16, #tpu.memory_space<vmem>>, %arg6: memref<1x128xf32, #tpu.memory_space<vmem>>, %arg7: memref<1x128xf32, #tpu.memory_space<vmem>>, %arg8: memref<1x8x128xbf16, #tpu.memory_space<vmem>>) attributes {dimension_semantics = [#tpu.dimension_semantics<parallel>], iteration_bounds = array<i64: 2>, scalar_prefetch = 0 : i64, scratch_operands = 0 : i64, tpu.core_type = #tpu.core_type<tc>, window_params = [{transform_indices = @transform_0, window_bounds = array<i64: 1, 8, 128>}, {pipeline_mode = #tpu.pipeline_mode<synchronous>, transform_indices = @transform_1, window_bounds = array<i64: 128, 384>}, {pipeline_mode = #tpu.pipeline_mode<synchronous>, transform_indices = @transform_2, window_bounds = array<i64: 1, 384>}, {pipeline_mode = #tpu.pipeline_mode<synchronous>, transform_indices = @transform_3, window_bounds = array<i64: 128, 128>}, {pipeline_mode = #tpu.pipeline_mode<synchronous>, transform_indices = @transform_4, window_bounds = array<i64: 1, 128>}, {pipeline_mode = #tpu.pipeline_mode<synchronous>, transform_indices = @transform_5, window_bounds = array<i64: 1, 128>}, {pipeline_mode = #tpu.pipeline_mode<synchronous>, transform_indices = @transform_6, window_bounds = array<i64: 1, 128>}, {transform_indices = @transform_7, window_bounds = array<i64: 1, 8, 128>}]} {
    %c0 = arith.constant 0 : index
    %c0_0 = arith.constant 0 : index
    %c0_1 = arith.constant 0 : index
    %0 = vector.load %arg1[%c0, %c0_0, %c0_1] : memref<1x8x128xbf16, #tpu.memory_space<vmem>>, vector<1x8x128xbf16>
    %1 = vector.shape_cast %0 : vector<1x8x128xbf16> to vector<8x128xbf16>
    %c0_2 = arith.constant 0 : index
    %c0_3 = arith.constant 0 : index
    %2 = vector.load %arg2[%c0_2, %c0_3] : memref<128x384xbf16, #tpu.memory_space<vmem>>, vector<128x384xbf16>
    %cst = arith.constant dense<0.000000e+00> : vector<8x384xf32>
    %3 = tpu.matmul %1, %2, %cst {dimension_numbers = #tpu.dot_dimension_numbers<[1], [0], [0], [1], [0, 0, 1, 1], [], []>} : vector<8x128xbf16>, vector<128x384xbf16>, vector<8x384xf32> -> vector<8x384xf32>
    %c0_4 = arith.constant 0 : index
    %c0_5 = arith.constant 0 : index
    %4 = vector.load %arg3[%c0_4, %c0_5] : memref<1x384xbf16, #tpu.memory_space<vmem>>, vector<1x384xbf16>
    %5 = arith.extf %4 : vector<1x384xbf16> to vector<1x384xf32>
    %6 = vector.broadcast %5 : vector<1x384xf32> to vector<8x384xf32>
    %7 = arith.addf %3, %6 : vector<8x384xf32>
    %8 = arith.truncf %7 : vector<8x384xf32> to vector<8x384xbf16>
    %9 = vector.extract_strided_slice %8 {offsets = [0, 0], sizes = [8, 32], strides = [1, 1]} : vector<8x384xbf16> to vector<8x32xbf16>
    %10 = vector.extract_strided_slice %8 {offsets = [0, 128], sizes = [8, 32], strides = [1, 1]} : vector<8x384xbf16> to vector<8x32xbf16>
    %11 = vector.extract_strided_slice %8 {offsets = [0, 256], sizes = [8, 32], strides = [1, 1]} : vector<8x384xbf16> to vector<8x32xbf16>
    %cst_6 = arith.constant dense<0.000000e+00> : vector<8x8xf32>
    %12 = tpu.matmul %9, %10, %cst_6 {dimension_numbers = #tpu.dot_dimension_numbers<[1], [1], [0], [0], [0, 0, 1, 0], [], []>} : vector<8x32xbf16>, vector<8x32xbf16>, vector<8x8xf32> -> vector<8x8xf32>
    %cst_7 = arith.constant dense<0xFF800000> : vector<8xf32>
    %13 = vector.multi_reduction <maximumf>, %12, %cst_7 [1] : vector<8x8xf32> to vector<8xf32>
    %14 = vector.shape_cast %13 : vector<8xf32> to vector<8x1xf32>
    %15 = vector.broadcast %14 : vector<8x1xf32> to vector<8x8xf32>
    %16 = arith.subf %12, %15 : vector<8x8xf32>
    %17 = math.exp %16 : vector<8x8xf32>
    %cst_8 = arith.constant dense<0.000000e+00> : vector<8xf32>
    %18 = vector.multi_reduction <add>, %17, %cst_8 [1] : vector<8x8xf32> to vector<8xf32>
    %19 = vector.shape_cast %18 : vector<8xf32> to vector<8x1xf32>
    %20 = arith.truncf %17 : vector<8x8xf32> to vector<8x8xbf16>
    %cst_9 = arith.constant dense<0.000000e+00> : vector<8x32xf32>
    %21 = tpu.matmul %20, %11, %cst_9 {dimension_numbers = #tpu.dot_dimension_numbers<[1], [0], [0], [1], [0, 0, 1, 1], [], []>} : vector<8x8xbf16>, vector<8x32xbf16>, vector<8x32xf32> -> vector<8x32xf32>
    %22 = tpu.reciprocal %19 {approx = true} : vector<8x1xf32> -> vector<8x1xf32>
    %23 = vector.broadcast %22 : vector<8x1xf32> to vector<8x32xf32>
    %24 = arith.mulf %21, %23 : vector<8x32xf32>
    %25 = vector.extract_strided_slice %8 {offsets = [0, 32], sizes = [8, 32], strides = [1, 1]} : vector<8x384xbf16> to vector<8x32xbf16>
    %26 = vector.extract_strided_slice %8 {offsets = [0, 160], sizes = [8, 32], strides = [1, 1]} : vector<8x384xbf16> to vector<8x32xbf16>
    %27 = vector.extract_strided_slice %8 {offsets = [0, 288], sizes = [8, 32], strides = [1, 1]} : vector<8x384xbf16> to vector<8x32xbf16>
    %cst_10 = arith.constant dense<0.000000e+00> : vector<8x8xf32>
    %28 = tpu.matmul %25, %26, %cst_10 {dimension_numbers = #tpu.dot_dimension_numbers<[1], [1], [0], [0], [0, 0, 1, 0], [], []>} : vector<8x32xbf16>, vector<8x32xbf16>, vector<8x8xf32> -> vector<8x8xf32>
    %cst_11 = arith.constant dense<0xFF800000> : vector<8xf32>
    %29 = vector.multi_reduction <maximumf>, %28, %cst_11 [1] : vector<8x8xf32> to vector<8xf32>
    %30 = vector.shape_cast %29 : vector<8xf32> to vector<8x1xf32>
    %31 = vector.broadcast %30 : vector<8x1xf32> to vector<8x8xf32>
    %32 = arith.subf %28, %31 : vector<8x8xf32>
    %33 = math.exp %32 : vector<8x8xf32>
    %cst_12 = arith.constant dense<0.000000e+00> : vector<8xf32>
    %34 = vector.multi_reduction <add>, %33, %cst_12 [1] : vector<8x8xf32> to vector<8xf32>
    %35 = vector.shape_cast %34 : vector<8xf32> to vector<8x1xf32>
    %36 = arith.truncf %33 : vector<8x8xf32> to vector<8x8xbf16>
    %cst_13 = arith.constant dense<0.000000e+00> : vector<8x32xf32>
    %37 = tpu.matmul %36, %27, %cst_13 {dimension_numbers = #tpu.dot_dimension_numbers<[1], [0], [0], [1], [0, 0, 1, 1], [], []>} : vector<8x8xbf16>, vector<8x32xbf16>, vector<8x32xf32> -> vector<8x32xf32>
    %38 = tpu.reciprocal %35 {approx = true} : vector<8x1xf32> -> vector<8x1xf32>
    %39 = vector.broadcast %38 : vector<8x1xf32> to vector<8x32xf32>
    %40 = arith.mulf %37, %39 : vector<8x32xf32>
    %41 = vector.extract_strided_slice %8 {offsets = [0, 64], sizes = [8, 32], strides = [1, 1]} : vector<8x384xbf16> to vector<8x32xbf16>
    %42 = vector.extract_strided_slice %8 {offsets = [0, 192], sizes = [8, 32], strides = [1, 1]} : vector<8x384xbf16> to vector<8x32xbf16>
    %43 = vector.extract_strided_slice %8 {offsets = [0, 320], sizes = [8, 32], strides = [1, 1]} : vector<8x384xbf16> to vector<8x32xbf16>
    %cst_14 = arith.constant dense<0.000000e+00> : vector<8x8xf32>
    %44 = tpu.matmul %41, %42, %cst_14 {dimension_numbers = #tpu.dot_dimension_numbers<[1], [1], [0], [0], [0, 0, 1, 0], [], []>} : vector<8x32xbf16>, vector<8x32xbf16>, vector<8x8xf32> -> vector<8x8xf32>
    %cst_15 = arith.constant dense<0xFF800000> : vector<8xf32>
    %45 = vector.multi_reduction <maximumf>, %44, %cst_15 [1] : vector<8x8xf32> to vector<8xf32>
    %46 = vector.shape_cast %45 : vector<8xf32> to vector<8x1xf32>
    %47 = vector.broadcast %46 : vector<8x1xf32> to vector<8x8xf32>
    %48 = arith.subf %44, %47 : vector<8x8xf32>
    %49 = math.exp %48 : vector<8x8xf32>
    %cst_16 = arith.constant dense<0.000000e+00> : vector<8xf32>
    %50 = vector.multi_reduction <add>, %49, %cst_16 [1] : vector<8x8xf32> to vector<8xf32>
    %51 = vector.shape_cast %50 : vector<8xf32> to vector<8x1xf32>
    %52 = arith.truncf %49 : vector<8x8xf32> to vector<8x8xbf16>
    %cst_17 = arith.constant dense<0.000000e+00> : vector<8x32xf32>
    %53 = tpu.matmul %52, %43, %cst_17 {dimension_numbers = #tpu.dot_dimension_numbers<[1], [0], [0], [1], [0, 0, 1, 1], [], []>} : vector<8x8xbf16>, vector<8x32xbf16>, vector<8x32xf32> -> vector<8x32xf32>
    %54 = tpu.reciprocal %51 {approx = true} : vector<8x1xf32> -> vector<8x1xf32>
    %55 = vector.broadcast %54 : vector<8x1xf32> to vector<8x32xf32>
    %56 = arith.mulf %53, %55 : vector<8x32xf32>
    %57 = vector.extract_strided_slice %8 {offsets = [0, 96], sizes = [8, 32], strides = [1, 1]} : vector<8x384xbf16> to vector<8x32xbf16>
    %58 = vector.extract_strided_slice %8 {offsets = [0, 224], sizes = [8, 32], strides = [1, 1]} : vector<8x384xbf16> to vector<8x32xbf16>
    %59 = vector.extract_strided_slice %8 {offsets = [0, 352], sizes = [8, 32], strides = [1, 1]} : vector<8x384xbf16> to vector<8x32xbf16>
    %cst_18 = arith.constant dense<0.000000e+00> : vector<8x8xf32>
    %60 = tpu.matmul %57, %58, %cst_18 {dimension_numbers = #tpu.dot_dimension_numbers<[1], [1], [0], [0], [0, 0, 1, 0], [], []>} : vector<8x32xbf16>, vector<8x32xbf16>, vector<8x8xf32> -> vector<8x8xf32>
    %cst_19 = arith.constant dense<0xFF800000> : vector<8xf32>
    %61 = vector.multi_reduction <maximumf>, %60, %cst_19 [1] : vector<8x8xf32> to vector<8xf32>
    %62 = vector.shape_cast %61 : vector<8xf32> to vector<8x1xf32>
    %63 = vector.broadcast %62 : vector<8x1xf32> to vector<8x8xf32>
    %64 = arith.subf %60, %63 : vector<8x8xf32>
    %65 = math.exp %64 : vector<8x8xf32>
    %cst_20 = arith.constant dense<0.000000e+00> : vector<8xf32>
    %66 = vector.multi_reduction <add>, %65, %cst_20 [1] : vector<8x8xf32> to vector<8xf32>
    %67 = vector.shape_cast %66 : vector<8xf32> to vector<8x1xf32>
    %68 = arith.truncf %65 : vector<8x8xf32> to vector<8x8xbf16>
    %cst_21 = arith.constant dense<0.000000e+00> : vector<8x32xf32>
    %69 = tpu.matmul %68, %59, %cst_21 {dimension_numbers = #tpu.dot_dimension_numbers<[1], [0], [0], [1], [0, 0, 1, 1], [], []>} : vector<8x8xbf16>, vector<8x32xbf16>, vector<8x32xf32> -> vector<8x32xf32>
    %70 = tpu.reciprocal %67 {approx = true} : vector<8x1xf32> -> vector<8x1xf32>
    %71 = vector.broadcast %70 : vector<8x1xf32> to vector<8x32xf32>
    %72 = arith.mulf %69, %71 : vector<8x32xf32>
    %73 = tpu.concatenate %24, %40, %56, %72 in 1 : vector<8x32xf32>, vector<8x32xf32>, vector<8x32xf32>, vector<8x32xf32> -> vector<8x128xf32>
    %74 = arith.truncf %73 : vector<8x128xf32> to vector<8x128xbf16>
    %c0_22 = arith.constant 0 : index
    %c0_23 = arith.constant 0 : index
    %75 = vector.load %arg4[%c0_22, %c0_23] : memref<128x128xbf16, #tpu.memory_space<vmem>>, vector<128x128xbf16>
    %cst_24 = arith.constant dense<0.000000e+00> : vector<8x128xf32>
    %76 = tpu.matmul %74, %75, %cst_24 {dimension_numbers = #tpu.dot_dimension_numbers<[1], [0], [0], [1], [0, 0, 1, 1], [], []>} : vector<8x128xbf16>, vector<128x128xbf16>, vector<8x128xf32> -> vector<8x128xf32>
    %c0_25 = arith.constant 0 : index
    %c0_26 = arith.constant 0 : index
    %77 = vector.load %arg5[%c0_25, %c0_26] : memref<1x128xbf16, #tpu.memory_space<vmem>>, vector<1x128xbf16>
    %78 = arith.extf %77 : vector<1x128xbf16> to vector<1x128xf32>
    %79 = vector.broadcast %78 : vector<1x128xf32> to vector<8x128xf32>
    %80 = arith.addf %76, %79 : vector<8x128xf32>
    %81 = arith.extf %1 : vector<8x128xbf16> to vector<8x128xf32>
    %82 = arith.addf %80, %81 : vector<8x128xf32>
    %cst_27 = arith.constant dense<0.000000e+00> : vector<8xf32>
    %83 = vector.multi_reduction <add>, %82, %cst_27 [1] : vector<8x128xf32> to vector<8xf32>
    %84 = vector.shape_cast %83 : vector<8xf32> to vector<8x1xf32>
    %cst_28 = arith.constant 1.280000e+02 : f32
    %85 = vector.broadcast %cst_28 : f32 to vector<8x1xf32>
    %86 = arith.divf %84, %85 : vector<8x1xf32>
    %87 = vector.broadcast %86 : vector<8x1xf32> to vector<8x128xf32>
    %88 = arith.subf %82, %87 : vector<8x128xf32>
    %89 = arith.mulf %88, %88 : vector<8x128xf32>
    %cst_29 = arith.constant dense<0.000000e+00> : vector<8xf32>
    %90 = vector.multi_reduction <add>, %89, %cst_29 [1] : vector<8x128xf32> to vector<8xf32>
    %91 = vector.shape_cast %90 : vector<8xf32> to vector<8x1xf32>
    %cst_30 = arith.constant 1.280000e+02 : f32
    %92 = vector.broadcast %cst_30 : f32 to vector<8x1xf32>
    %93 = arith.divf %91, %92 : vector<8x1xf32>
    %94 = vector.broadcast %86 : vector<8x1xf32> to vector<8x128xf32>
    %95 = arith.subf %82, %94 : vector<8x128xf32>
    %cst_31 = arith.constant 9.99999974E-6 : f32
    %96 = vector.broadcast %cst_31 : f32 to vector<8x1xf32>
    %97 = arith.addf %93, %96 : vector<8x1xf32>
    %98 = math.rsqrt %97 : vector<8x1xf32>
    %99 = vector.broadcast %98 : vector<8x1xf32> to vector<8x128xf32>
    %100 = arith.mulf %95, %99 : vector<8x128xf32>
    %c0_32 = arith.constant 0 : index
    %c0_33 = arith.constant 0 : index
    %101 = vector.load %arg6[%c0_32, %c0_33] : memref<1x128xf32, #tpu.memory_space<vmem>>, vector<1x128xf32>
    %102 = vector.broadcast %101 : vector<1x128xf32> to vector<8x128xf32>
    %103 = arith.mulf %100, %102 : vector<8x128xf32>
    %c0_34 = arith.constant 0 : index
    %c0_35 = arith.constant 0 : index
    %104 = vector.load %arg7[%c0_34, %c0_35] : memref<1x128xf32, #tpu.memory_space<vmem>>, vector<1x128xf32>
    %105 = vector.broadcast %104 : vector<1x128xf32> to vector<8x128xf32>
    %106 = arith.addf %103, %105 : vector<8x128xf32>
    %107 = arith.truncf %106 : vector<8x128xf32> to vector<8x128xbf16>
    %c0_36 = arith.constant 0 : index
    %c0_37 = arith.constant 0 : index
    %c0_38 = arith.constant 0 : index
    %108 = vector.load %arg8[%c0_36, %c0_37, %c0_38] : memref<1x8x128xbf16, #tpu.memory_space<vmem>>, vector<1x8x128xbf16>
    %109 = vector.shape_cast %108 : vector<1x8x128xbf16> to vector<8x128xbf16>
    %110 = vector.shape_cast %107 : vector<8x128xbf16> to vector<1x8x128xbf16>
    tpu.vector_store %arg8[%c0_36, %c0_37, %c0_38], %110 {strides = array<i32>} : memref<1x8x128xbf16, #tpu.memory_space<vmem>>, vector<1x8x128xbf16>,
    return
  }
  func.func @transform_0(%arg0: i32) -> (i32, i32, i32) {
    %c0_i32 = arith.constant 0 : i32
    %c0_i32_0 = arith.constant 0 : i32
    %c0_i32_1 = arith.constant 0 : i32
    return %arg0, %c0_i32, %c0_i32_0 : i32, i32, i32
  }
  func.func @transform_1(%arg0: i32) -> (i32, i32) {
    %c0_i32 = arith.constant 0 : i32
    %c0_i32_0 = arith.constant 0 : i32
    %c0_i32_1 = arith.constant 0 : i32
    return %c0_i32, %c0_i32_0 : i32, i32
  }
  func.func @transform_2(%arg0: i32) -> (i32, i32) {
    %c0_i32 = arith.constant 0 : i32
    %c0_i32_0 = arith.constant 0 : i32
    %c0_i32_1 = arith.constant 0 : i32
    return %c0_i32, %c0_i32_0 : i32, i32
  }
  func.func @transform_3(%arg0: i32) -> (i32, i32) {
    %c0_i32 = arith.constant 0 : i32
    %c0_i32_0 = arith.constant 0 : i32
    %c0_i32_1 = arith.constant 0 : i32
    return %c0_i32, %c0_i32_0 : i32, i32
  }
  func.func @transform_4(%arg0: i32) -> (i32, i32) {
    %c0_i32 = arith.constant 0 : i32
    %c0_i32_0 = arith.constant 0 : i32
    %c0_i32_1 = arith.constant 0 : i32
    return %c0_i32, %c0_i32_0 : i32, i32
  }
  func.func @transform_5(%arg0: i32) -> (i32, i32) {
    %c0_i32 = arith.constant 0 : i32
    %c0_i32_0 = arith.constant 0 : i32
    %c0_i32_1 = arith.constant 0 : i32
    return %c0_i32, %c0_i32_0 : i32, i32
  }
  func.func @transform_6(%arg0: i32) -> (i32, i32) {
    %c0_i32 = arith.constant 0 : i32
    %c0_i32_0 = arith.constant 0 : i32
    %c0_i32_1 = arith.constant 0 : i32
    return %c0_i32, %c0_i32_0 : i32, i32
  }
  func.func @transform_7(%arg0: i32) -> (i32, i32, i32) {
    %c0_i32 = arith.constant 0 : i32
    %c0_i32_0 = arith.constant 0 : i32
    %c0_i32_1 = arith.constant 0 : i32
    return %arg0, %c0_i32, %c0_i32_0 : i32, i32, i32
  }
}

module attributes {stable_mosaic.version = 11 : i64} {
  func.func @_dense_kernel(%arg0: i32, %arg1: i32, %arg2: i32, %arg3: memref<16x128xbf16, #tpu.memory_space<vmem>>, %arg4: memref<128x512xbf16, #tpu.memory_space<vmem>>, %arg5: memref<1x512xbf16, #tpu.memory_space<vmem>>, %arg6: memref<16x512xf32, #tpu.memory_space<vmem>>, %arg7: memref<16x512xf32, #tpu.memory_space<vmem>>) attributes {dimension_semantics = [#tpu.dimension_semantics<parallel>, #tpu.dimension_semantics<parallel>, #tpu.dimension_semantics<arbitrary>], iteration_bounds = array<i64: 1, 1, 1>, scalar_prefetch = 0 : i64, scratch_operands = 1 : i64, tpu.core_type = #tpu.core_type<tc>, window_params = [{transform_indices = @transform_0, window_bounds = array<i64: 16, 128>}, {transform_indices = @transform_1, window_bounds = array<i64: 128, 512>}, {transform_indices = @transform_2, window_bounds = array<i64: 1, 512>}, {transform_indices = @transform_3, window_bounds = array<i64: 16, 512>}]} {
    %c0_i32 = arith.constant 0 : i32
    %0 = arith.cmpi eq, %arg2, %c0_i32 : i32
    %1 = arith.extui %0 : i1 to i32
    %c0_i32_0 = arith.constant 0 : i32
    %2 = arith.cmpi ne, %1, %c0_i32_0 : i32
    scf.if %2 {
      %cst_10 = arith.constant 0.000000e+00 : f32
      %12 = vector.broadcast %cst_10 : f32 to vector<16x512xf32>
      %c0_11 = arith.constant 0 : index
      %c0_12 = arith.constant 0 : index
      %13 = vector.load %arg7[%c0_11, %c0_12] : memref<16x512xf32, #tpu.memory_space<vmem>>, vector<16x512xf32>
      tpu.vector_store %arg7[%c0_11, %c0_12], %12 {strides = array<i32>} : memref<16x512xf32, #tpu.memory_space<vmem>>, vector<16x512xf32>,
    } else {
    }
    %c0 = arith.constant 0 : index
    %c0_1 = arith.constant 0 : index
    %3 = vector.load %arg7[%c0, %c0_1] : memref<16x512xf32, #tpu.memory_space<vmem>>, vector<16x512xf32>
    %c0_2 = arith.constant 0 : index
    %c0_3 = arith.constant 0 : index
    %4 = vector.load %arg3[%c0_2, %c0_3] : memref<16x128xbf16, #tpu.memory_space<vmem>>, vector<16x128xbf16>
    %c0_4 = arith.constant 0 : index
    %c0_5 = arith.constant 0 : index
    %5 = vector.load %arg4[%c0_4, %c0_5] : memref<128x512xbf16, #tpu.memory_space<vmem>>, vector<128x512xbf16>
    %cst = arith.constant dense<0.000000e+00> : vector<16x512xf32>
    %6 = tpu.matmul %4, %5, %cst {dimension_numbers = #tpu.dot_dimension_numbers<[1], [0], [0], [1], [0, 0, 1, 1], [], []>} : vector<16x128xbf16>, vector<128x512xbf16>, vector<16x512xf32> -> vector<16x512xf32>
    %7 = arith.addf %3, %6 : vector<16x512xf32>
    %c0_6 = arith.constant 0 : index
    %c0_7 = arith.constant 0 : index
    %8 = vector.load %arg7[%c0_6, %c0_7] : memref<16x512xf32, #tpu.memory_space<vmem>>, vector<16x512xf32>
    tpu.vector_store %arg7[%c0_6, %c0_7], %7 {strides = array<i32>} : memref<16x512xf32, #tpu.memory_space<vmem>>, vector<16x512xf32>,
    %c0_i32_8 = arith.constant 0 : i32
    %9 = arith.cmpi eq, %arg2, %c0_i32_8 : i32
    %10 = arith.extui %9 : i1 to i32
    %c0_i32_9 = arith.constant 0 : i32
    %11 = arith.cmpi ne, %10, %c0_i32_9 : i32
    scf.if %11 {
      %c0_10 = arith.constant 0 : index
      %c0_11 = arith.constant 0 : index
      %12 = vector.load %arg7[%c0_10, %c0_11] : memref<16x512xf32, #tpu.memory_space<vmem>>, vector<16x512xf32>
      %c0_12 = arith.constant 0 : index
      %c0_13 = arith.constant 0 : index
      %13 = vector.load %arg5[%c0_12, %c0_13] : memref<1x512xbf16, #tpu.memory_space<vmem>>, vector<1x512xbf16>
      %14 = arith.extf %13 : vector<1x512xbf16> to vector<1x512xf32>
      %15 = vector.broadcast %14 : vector<1x512xf32> to vector<16x512xf32>
      %16 = arith.addf %12, %15 : vector<16x512xf32>
      %c0_14 = arith.constant 0 : index
      %c0_15 = arith.constant 0 : index
      %17 = vector.load %arg6[%c0_14, %c0_15] : memref<16x512xf32, #tpu.memory_space<vmem>>, vector<16x512xf32>
      tpu.vector_store %arg6[%c0_14, %c0_15], %16 {strides = array<i32>} : memref<16x512xf32, #tpu.memory_space<vmem>>, vector<16x512xf32>,
    } else {
    }
    return
  }
  func.func @transform_0(%arg0: i32, %arg1: i32, %arg2: i32) -> (i32, i32) {
    %c0_i32 = arith.constant 0 : i32
    return %arg0, %arg2 : i32, i32
  }
  func.func @transform_1(%arg0: i32, %arg1: i32, %arg2: i32) -> (i32, i32) {
    %c0_i32 = arith.constant 0 : i32
    return %arg2, %arg1 : i32, i32
  }
  func.func @transform_2(%arg0: i32, %arg1: i32, %arg2: i32) -> (i32, i32) {
    %c0_i32 = arith.constant 0 : i32
    %c0_i32_0 = arith.constant 0 : i32
    return %c0_i32, %arg1 : i32, i32
  }
  func.func @transform_3(%arg0: i32, %arg1: i32, %arg2: i32) -> (i32, i32) {
    %c0_i32 = arith.constant 0 : i32
    return %arg0, %arg1 : i32, i32
  }
}

</mosaic_0001>

<llo_original>
// kernel: transformer_forward.9
$region0: #{transformer_forward.9}
  #allocation0 [shape = 'u32[]', space=smem, size = 0x4, offset = 0x4, fixed_abs, tag = 'smem constant byte address 0x4 - core index']
  #allocation1 [shape = 'u32[144,128]{1,0:T(1,128)}', space=vmem, size = 0x12000, scoped, tag = 'internal scratch']
  #allocation2 [shape = 'f32[16,128]{1,0:T(8,128)}', space=vmem, size = 0x2000, scoped, tag = 'scratch operand']
  %s0 = inlined_call_operand.vmem [shape: bf16[16,256], index: 0, kind: input, shape index: {}]
  %s1 = inlined_call_operand.vmem [shape: bf16[256,128], index: 1, kind: input, shape index: {}]
  %s2 = inlined_call_operand.vmem [shape: bf16[1,128], index: 2, kind: input, shape index: {}]
  %s3 = inlined_call_operand.vmem [shape: bf16[16,128], index: 3, kind: input, shape index: {}]
  %s4 = inlined_call_operand.vmem [shape: f32[1,128], index: 4, kind: input, shape index: {}]
  %s5 = inlined_call_operand.vmem [shape: f32[1,128], index: 5, kind: input, shape index: {}]
  %s6 = inlined_call_operand.vmem [shape: bf16[16,128], index: 6, kind: output, shape index: {}]
  %s7 = sld [smem:[#allocation0]]
  $region42: #{transformer_forward.9} parent=0
    _
  %s9 = ssub.s32 1, %s7
  %s10 = scalar_select 0, %s9, %s7
  // Predicated region
  $region2: #{transformer_forward.9} parent=0 // pred_check
    _
  $region3: #{transformer_forward.9} parent=0 // pred_check_branch
    %12 = sbr.rel (0) target = $region5
  $region4: #{transformer_forward.9} parent=0 // pred_region
    _
  $region5: #{transformer_forward.9} parent=0 // pred_fallthru
    _
  // Predicated region
  $region6: #{transformer_forward.9} parent=0 // pred_check
    _
  $region7: #{transformer_forward.9} parent=0 // pred_check_branch
    %14 = sbr.rel (0) target = $region9
  $region8: #{transformer_forward.9} parent=0 // pred_region
    _
  $region9: #{transformer_forward.9} parent=0 // pred_fallthru
    _
  // Predicated region
  $region10: #{transformer_forward.9} parent=0 // pred_check
    _
  $region11: #{transformer_forward.9} parent=0 // pred_check_branch
    %16 = sbr.rel (0) target = $region13
  $region12: #{transformer_forward.9} parent=0 // pred_region
    _
  $region13: #{transformer_forward.9} parent=0 // pred_fallthru
    _
  // Predicated region
  $region14: #{transformer_forward.9} parent=0 // pred_check
    _
  $region15: #{transformer_forward.9} parent=0 // pred_check_branch
    %18 = sbr.rel (0) target = $region17
  $region16: #{transformer_forward.9} parent=0 // pred_region
    _
  $region17: #{transformer_forward.9} parent=0 // pred_fallthru
    _
  // Predicated region
  $region18: #{transformer_forward.9} parent=0 // pred_check
    _
  $region19: #{transformer_forward.9} parent=0 // pred_check_branch
    %20 = sbr.rel (0) target = $region21
  $region20: #{transformer_forward.9} parent=0 // pred_region
    _
  $region21: #{transformer_forward.9} parent=0 // pred_fallthru
    _
  // Predicated region
  $region22: #{transformer_forward.9} parent=0 // pred_check
    _
  $region23: #{transformer_forward.9} parent=0 // pred_check_branch
    %22 = sbr.rel (0) target = $region25
  $region24: #{transformer_forward.9} parent=0 // pred_region
    _
  $region25: #{transformer_forward.9} parent=0 // pred_fallthru
    _
  %p24 = scmp.eq.s32.totalorder 0, 0
  // Predicated region
  $region26: #{transformer_forward.9} parent=0 // pred_check
    %p25 = pneg %p24
  $region27: #{transformer_forward.9} parent=0 // pred_check_branch
    %27 = sbr.rel (%p25) target = $region29
  $region28: #{transformer_forward.9} parent=0 // pred_region
    %28 = vst [vmem:[#allocation2] sm:$0xff] 0.0
    %29 = vst [vmem:[#allocation2 + $0x8] sm:$0xff] 0.0
  $region29: #{transformer_forward.9} parent=0 // pred_fallthru
    _
  %v30 = vld [vmem:[#allocation2] sm:$0xff]
  %v31 = vld [vmem:[#allocation2 + $0x8] sm:$0xff]
  %v32 = vld [vmem:[%s0] sm:$0xff]
  %v33 = vld [vmem:[%s0 + $0x8] sm:$0xff]
  %v34 = vld [vmem:[%s1] sm:$0xf]
  %v35 = vld [vmem:[%s1 + $0x4] sm:$0xf]
  %v36 = vld [vmem:[%s1 + $0x8] sm:$0xf]
  %v37 = vld [vmem:[%s1 + $0xc] sm:$0xf]
  %v38 = vld [vmem:[%s1 + $0x10] sm:$0xf]
  %v39 = vld [vmem:[%s1 + $0x14] sm:$0xf]
  %v40 = vld [vmem:[%s1 + $0x18] sm:$0xf]
  %v41 = vld [vmem:[%s1 + $0x1c] sm:$0xf]
  %v42 = vld [vmem:[%s1 + $0x20] sm:$0xf]
  %v43 = vld [vmem:[%s1 + $0x24] sm:$0xf]
  %v44 = vld [vmem:[%s1 + $0x28] sm:$0xf]
  %v45 = vld [vmem:[%s1 + $0x2c] sm:$0xf]
  %v46 = vld [vmem:[%s1 + $0x30] sm:$0xf]
  %v47 = vld [vmem:[%s1 + $0x34] sm:$0xf]
  %v48 = vld [vmem:[%s1 + $0x38] sm:$0xf]
  %v49 = vld [vmem:[%s1 + $0x3c] sm:$0xf]
  %v50 = vld [vmem:[%s1 + $0x40] sm:$0xf]
  %v51 = vld [vmem:[%s1 + $0x44] sm:$0xf]
  %v52 = vld [vmem:[%s1 + $0x48] sm:$0xf]
  %v53 = vld [vmem:[%s1 + $0x4c] sm:$0xf]
  %v54 = vld [vmem:[%s1 + $0x50] sm:$0xf]
  %v55 = vld [vmem:[%s1 + $0x54] sm:$0xf]
  %v56 = vld [vmem:[%s1 + $0x58] sm:$0xf]
  %v57 = vld [vmem:[%s1 + $0x5c] sm:$0xf]
  %v58 = vld [vmem:[%s1 + $0x60] sm:$0xf]
  %v59 = vld [vmem:[%s1 + $0x64] sm:$0xf]
  %v60 = vld [vmem:[%s1 + $0x68] sm:$0xf]
  %v61 = vld [vmem:[%s1 + $0x6c] sm:$0xf]
  %v62 = vld [vmem:[%s1 + $0x70] sm:$0xf]
  %v63 = vld [vmem:[%s1 + $0x74] sm:$0xf]
  %v64 = vld [vmem:[%s1 + $0x78] sm:$0xf]
  %v65 = vld [vmem:[%s1 + $0x7c] sm:$0xf]
  %v68 = vunpack.c.l.b16 %v32
  %v69 = vunpack.c.h.b16 %v32
  %v70 = vunpack.c.l.b16 %v33
  %v71 = vunpack.c.h.b16 %v33
  %v72 = vpack.c.b16 %v70, %v68
  %v73 = vpack.c.b16 %v71, %v69
  %v108 = vunpack.c.l.b16 %v34
  %v109 = vunpack.c.l.b16 %v35
  %v110 = vunpack.c.l.b16 %v36
  %v111 = vunpack.c.l.b16 %v37
  %v112 = vunpack.c.l.b16 %v38
  %v113 = vunpack.c.l.b16 %v39
  %v114 = vunpack.c.l.b16 %v40
  %v115 = vunpack.c.l.b16 %v41
  %v116 = vunpack.c.l.b16 %v42
  %v117 = vunpack.c.l.b16 %v43
  %v118 = vunpack.c.l.b16 %v44
  %v119 = vunpack.c.l.b16 %v45
  %v120 = vunpack.c.l.b16 %v46
  %v121 = vunpack.c.l.b16 %v47
  %v122 = vunpack.c.l.b16 %v48
  %v123 = vunpack.c.l.b16 %v49
  %v124 = vunpack.c.l.b16 %v50
  %v125 = vunpack.c.l.b16 %v51
  %v126 = vunpack.c.l.b16 %v52
  %v127 = vunpack.c.l.b16 %v53
  %v128 = vunpack.c.l.b16 %v54
  %v129 = vunpack.c.l.b16 %v55
  %v130 = vunpack.c.l.b16 %v56
  %v131 = vunpack.c.l.b16 %v57
  %v132 = vunpack.c.l.b16 %v58
  %v133 = vunpack.c.l.b16 %v59
  %v134 = vunpack.c.l.b16 %v60
  %v135 = vunpack.c.l.b16 %v61
  %v136 = vunpack.c.l.b16 %v62
  %v137 = vunpack.c.l.b16 %v63
  %v138 = vunpack.c.l.b16 %v64
  %v139 = vunpack.c.l.b16 %v65
  %v140 = vpack.c.b16 %v109, %v108
  %v141 = vpack.c.b16 %v111, %v110
  %v142 = vpack.c.b16 %v113, %v112
  %v143 = vpack.c.b16 %v115, %v114
  %v144 = vpack.c.b16 %v117, %v116
  %v145 = vpack.c.b16 %v119, %v118
  %v146 = vpack.c.b16 %v121, %v120
  %v147 = vpack.c.b16 %v123, %v122
  %v148 = vpack.c.b16 %v125, %v124
  %v149 = vpack.c.b16 %v127, %v126
  %v150 = vpack.c.b16 %v129, %v128
  %v151 = vpack.c.b16 %v131, %v130
  %v152 = vpack.c.b16 %v133, %v132
  %v153 = vpack.c.b16 %v135, %v134
  %v154 = vpack.c.b16 %v137, %v136
  %v155 = vpack.c.b16 %v139, %v138
  %172 = vmatprep.subr.bf16.mxu0 0
  %173 = vmatpush1.bf16.msra.mxu0 %v140
  %174 = vmatprep.subr.bf16.mxu0 0
  %175 = vmatpush1.bf16.msra.mxu0 %v141
  %176 = vmatprep.subr.bf16.mxu0 0
  %177 = vmatpush1.bf16.msra.mxu0 %v142
  %178 = vmatprep.subr.bf16.mxu0 0
  %179 = vmatpush1.bf16.msra.mxu0 %v143
  %180 = vmatprep.subr.bf16.mxu0 0
  %181 = vmatpush1.bf16.msra.mxu0 %v144
  %182 = vmatprep.subr.bf16.mxu0 0
  %183 = vmatpush1.bf16.msra.mxu0 %v145
  %184 = vmatprep.subr.bf16.mxu0 0
  %185 = vmatpush1.bf16.msra.mxu0 %v146
  %186 = vmatprep.subr.bf16.mxu0 0
  %187 = vmatpush1.bf16.msra.mxu0 %v147
  %188 = vmatprep.subr.bf16.mxu0 0
  %189 = vmatpush1.bf16.msra.mxu0 %v148
  %190 = vmatprep.subr.bf16.mxu0 0
  %191 = vmatpush1.bf16.msra.mxu0 %v149
  %192 = vmatprep.subr.bf16.mxu0 0
  %193 = vmatpush1.bf16.msra.mxu0 %v150
  %194 = vmatprep.subr.bf16.mxu0 0
  %195 = vmatpush1.bf16.msra.mxu0 %v151
  %196 = vmatprep.subr.bf16.mxu0 0
  %197 = vmatpush1.bf16.msra.mxu0 %v152
  %198 = vmatprep.subr.bf16.mxu0 0
  %199 = vmatpush1.bf16.msra.mxu0 %v153
  %200 = vmatprep.subr.bf16.mxu0 0
  %201 = vmatpush1.bf16.msra.mxu0 %v154
  %202 = vmatprep.subr.bf16.mxu0 0
  %203 = vmatpush1.bf16.msra.mxu0 %v155
  %204 = vmatprep.mubr.bf16.mxu0 %v73
  %205 = vmatmul.mubr.bf16.gmra.mrb[0].mxu0 %v72
  %v206 = vpop.f32.mrb[0].mxu0
  %v207 = vadd.f32 0.0, %v206
  %v208 = vpop.f32.mrb[0].mxu0
  %v209 = vpop.f32.mrb[0].mxu0
  %v210 = vadd.f32 0.0, %v209
  %v211 = vpop.f32.mrb[0].mxu0
  %212 = vdwg.mxu0
  %v213 = vadd.f32 %v30, %v207
  %v214 = vadd.f32 %v31, %v210
  %215 = vst [vmem:[#allocation2] sm:$0xff] %v213
  %216 = vst [vmem:[#allocation2 + $0x8] sm:$0xff] %v214
  // Predicated region
  $region30: #{transformer_forward.9} parent=0 // pred_check
    %p217 = pneg %p24
  $region31: #{transformer_forward.9} parent=0 // pred_check_branch
    %219 = sbr.rel (%p217) target = $region33
  $region32: #{transformer_forward.9} parent=0 // pred_region
    %v220 = vld [vmem:[#allocation2] sm:$0xff]
    %v221 = vld [vmem:[#allocation2 + $0x8] sm:$0xff]
    %v222 = vld [vmem:[%s2] sm:$0x1]
    %v223 = vunpack.c.l.bf16 %v222
    %v224 = vlaneseq
    %v225 = vshrl.u32 %v224, 7
    %v226 = vsub.s32 0, %v225
    %v227 = vrot.slane %v223, %v226
    %v228 = vadd.f32 %v220, %v227
    %v229 = vadd.f32 %v221, %v227
    %v230 = vld [vmem:[%s3] sm:$0xf]
    %v231 = vld [vmem:[%s3 + $0x4] sm:$0xf]
    %v232 = vunpack.c.l.bf16 %v230
    %v233 = vunpack.c.l.bf16 %v231
    %v234 = vadd.f32 %v228, %v232
    %v235 = vadd.f32 %v229, %v233
    %236 = vadd.xlane.f32.xlu0 %v234
    %v237 = vpop.xlane.xlu0 %236
    %238 = vadd.xlane.f32.xlu0 %v235
    %v239 = vpop.xlane.xlu0 %238
    %v240 = vrcp.pop 128.0
    %v241 = vmul.f32 %v237, %v240
    %v242 = vmul.f32 %v239, %v240
    %v243 = vsub.f32 %v234, %v241
    %v244 = vsub.f32 %v235, %v242
    %v245 = vmul.f32 %v243, %v243
    %v246 = vmul.f32 %v244, %v244
    %247 = vadd.xlane.f32.xlu0 %v245
    %v248 = vpop.xlane.xlu0 %247
    %249 = vadd.xlane.f32.xlu0 %v246
    %v250 = vpop.xlane.xlu0 %249
    %v251 = vmul.f32 %v248, %v240
    %v252 = vmul.f32 %v250, %v240
    %v253 = vadd.f32 %v251, 1e-05
    %v254 = vadd.f32 %v252, 1e-05
    %v255 = vrsqrt.pop %v253
    %v256 = vrsqrt.pop %v254
    %v257 = vmul.f32 %v243, %v255
    %v258 = vmul.f32 %v244, %v256
    %v259 = vld [vmem:[%s4] sm:$0x1]
    %v261 = vlaneseq
    %v262 = vshrl.u32 %v261, 7
    %v263 = vsub.s32 0, %v262
    %v264 = vrot.slane %v259, %v263
    %v266 = vmul.f32 %v257, %v264
    %v267 = vmul.f32 %v258, %v264
    %v268 = vld [vmem:[%s5] sm:$0x1]
    %v270 = vlaneseq
    %v271 = vshrl.u32 %v270, 7
    %v272 = vsub.s32 0, %v271
    %v273 = vrot.slane %v268, %v272
    %v275 = vadd.f32 %v266, %v273
    %v276 = vadd.f32 %v267, %v273
    %v277 = vpack.c.bf16 %v276, %v275
    %v279 = vunpack.c.l.b16 %v277
    %v280 = vunpack.c.h.b16 %v277
    %v281 = vpack.c.b16 %v279, %v279
    %v282 = vpack.c.b16 %v280, %v280
    %285 = vst [vmem:[%s6] sm:$0xf] %v281
    %286 = vst [vmem:[%s6 + $0x4] sm:$0xf] %v282
  $region33: #{transformer_forward.9} parent=0 // pred_fallthru
    _
  // Predicated region
  $region34: #{transformer_forward.9} parent=0 // pred_check
    _
  $region35: #{transformer_forward.9} parent=0 // pred_check_branch
    %288 = sbr.rel (0) target = $region37
  $region36: #{transformer_forward.9} parent=0 // pred_region
    _
  $region37: #{transformer_forward.9} parent=0 // pred_fallthru
    _
  // Predicated region
  $region38: #{transformer_forward.9} parent=0 // pred_check
    _
  $region39: #{transformer_forward.9} parent=0 // pred_check_branch
    %290 = sbr.rel (0) target = $region41
  $region40: #{transformer_forward.9} parent=0 // pred_region
    _
  $region41: #{transformer_forward.9} parent=0 // pred_fallthru
    _

// kernel: transformer_forward.8
$region0: #{transformer_forward.8}
  #allocation0 [shape = 'u32[]', space=smem, size = 0x4, offset = 0x4, fixed_abs, tag = 'smem constant byte address 0x4 - core index']
  #allocation1 [shape = 'u32[144,128]{1,0:T(1,128)}', space=vmem, size = 0x12000, scoped, tag = 'internal scratch']
  #allocation2 [shape = 'f32[16,256]{1,0:T(8,128)}', space=vmem, size = 0x4000, scoped, tag = 'scratch operand']
  %s0 = inlined_call_operand.vmem [shape: bf16[16,128], index: 0, kind: input, shape index: {}]
  %s1 = inlined_call_operand.vmem [shape: bf16[128,256], index: 1, kind: input, shape index: {}]
  %s2 = inlined_call_operand.vmem [shape: bf16[1,256], index: 2, kind: input, shape index: {}]
  %s3 = inlined_call_operand.vmem [shape: bf16[16,256], index: 3, kind: output, shape index: {}]
  %s4 = sld [smem:[#allocation0]]
  $region30: #{transformer_forward.8} parent=0
    _
  %s6 = ssub.s32 1, %s4
  %s7 = scalar_select 0, %s6, %s4
  // Predicated region
  $region2: #{transformer_forward.8} parent=0 // pred_check
    _
  $region3: #{transformer_forward.8} parent=0 // pred_check_branch
    %9 = sbr.rel (0) target = $region5
  $region4: #{transformer_forward.8} parent=0 // pred_region
    _
  $region5: #{transformer_forward.8} parent=0 // pred_fallthru
    _
  // Predicated region
  $region6: #{transformer_forward.8} parent=0 // pred_check
    _
  $region7: #{transformer_forward.8} parent=0 // pred_check_branch
    %11 = sbr.rel (0) target = $region9
  $region8: #{transformer_forward.8} parent=0 // pred_region
    _
  $region9: #{transformer_forward.8} parent=0 // pred_fallthru
    _
  // Predicated region
  $region10: #{transformer_forward.8} parent=0 // pred_check
    _
  $region11: #{transformer_forward.8} parent=0 // pred_check_branch
    %13 = sbr.rel (0) target = $region13
  $region12: #{transformer_forward.8} parent=0 // pred_region
    _
  $region13: #{transformer_forward.8} parent=0 // pred_fallthru
    _
  %p15 = scmp.eq.s32.totalorder 0, 0
  // Predicated region
  $region14: #{transformer_forward.8} parent=0 // pred_check
    %p16 = pneg %p15
  $region15: #{transformer_forward.8} parent=0 // pred_check_branch
    %18 = sbr.rel (%p16) target = $region17
  $region16: #{transformer_forward.8} parent=0 // pred_region
    %19 = vst [vmem:[#allocation2] sm:$0xff] 0.0
    %20 = vst [vmem:[#allocation2 + $0x8] sm:$0xff] 0.0
    %21 = vst [vmem:[#allocation2 + $0x10] sm:$0xff] 0.0
    %22 = vst [vmem:[#allocation2 + $0x18] sm:$0xff] 0.0
  $region17: #{transformer_forward.8} parent=0 // pred_fallthru
    _
  %v23 = vld [vmem:[#allocation2] sm:$0xff]
  %v24 = vld [vmem:[#allocation2 + $0x8] sm:$0xff]
  %v25 = vld [vmem:[#allocation2 + $0x10] sm:$0xff]
  %v26 = vld [vmem:[#allocation2 + $0x18] sm:$0xff]
  %v27 = vld [vmem:[%s0] sm:$0xf]
  %v28 = vld [vmem:[%s0 + $0x4] sm:$0xf]
  %v29 = vld [vmem:[%s1] sm:$0xff]
  %v30 = vld [vmem:[%s1 + $0x8] sm:$0xff]
  %v31 = vld [vmem:[%s1 + $0x10] sm:$0xff]
  %v32 = vld [vmem:[%s1 + $0x18] sm:$0xff]
  %v33 = vld [vmem:[%s1 + $0x20] sm:$0xff]
  %v34 = vld [vmem:[%s1 + $0x28] sm:$0xff]
  %v35 = vld [vmem:[%s1 + $0x30] sm:$0xff]
  %v36 = vld [vmem:[%s1 + $0x38] sm:$0xff]
  %v37 = vld [vmem:[%s1 + $0x40] sm:$0xff]
  %v38 = vld [vmem:[%s1 + $0x48] sm:$0xff]
  %v39 = vld [vmem:[%s1 + $0x50] sm:$0xff]
  %v40 = vld [vmem:[%s1 + $0x58] sm:$0xff]
  %v41 = vld [vmem:[%s1 + $0x60] sm:$0xff]
  %v42 = vld [vmem:[%s1 + $0x68] sm:$0xff]
  %v43 = vld [vmem:[%s1 + $0x70] sm:$0xff]
  %v44 = vld [vmem:[%s1 + $0x78] sm:$0xff]
  %v47 = vunpack.c.l.b16 %v27
  %v48 = vunpack.c.l.b16 %v28
  %v49 = vpack.c.b16 %v48, %v47
  %v67 = vunpack.c.l.b16 %v29
  %v68 = vunpack.c.h.b16 %v29
  %v69 = vunpack.c.l.b16 %v30
  %v70 = vunpack.c.h.b16 %v30
  %v71 = vunpack.c.l.b16 %v31
  %v72 = vunpack.c.h.b16 %v31
  %v73 = vunpack.c.l.b16 %v32
  %v74 = vunpack.c.h.b16 %v32
  %v75 = vunpack.c.l.b16 %v33
  %v76 = vunpack.c.h.b16 %v33
  %v77 = vunpack.c.l.b16 %v34
  %v78 = vunpack.c.h.b16 %v34
  %v79 = vunpack.c.l.b16 %v35
  %v80 = vunpack.c.h.b16 %v35
  %v81 = vunpack.c.l.b16 %v36
  %v82 = vunpack.c.h.b16 %v36
  %v83 = vunpack.c.l.b16 %v37
  %v84 = vunpack.c.h.b16 %v37
  %v85 = vunpack.c.l.b16 %v38
  %v86 = vunpack.c.h.b16 %v38
  %v87 = vunpack.c.l.b16 %v39
  %v88 = vunpack.c.h.b16 %v39
  %v89 = vunpack.c.l.b16 %v40
  %v90 = vunpack.c.h.b16 %v40
  %v91 = vunpack.c.l.b16 %v41
  %v92 = vunpack.c.h.b16 %v41
  %v93 = vunpack.c.l.b16 %v42
  %v94 = vunpack.c.h.b16 %v42
  %v95 = vunpack.c.l.b16 %v43
  %v96 = vunpack.c.h.b16 %v43
  %v97 = vunpack.c.l.b16 %v44
  %v98 = vunpack.c.h.b16 %v44
  %v99 = vpack.c.b16 %v69, %v67
  %v100 = vpack.c.b16 %v70, %v68
  %v101 = vpack.c.b16 %v73, %v71
  %v102 = vpack.c.b16 %v74, %v72
  %v103 = vpack.c.b16 %v77, %v75
  %v104 = vpack.c.b16 %v78, %v76
  %v105 = vpack.c.b16 %v81, %v79
  %v106 = vpack.c.b16 %v82, %v80
  %v107 = vpack.c.b16 %v85, %v83
  %v108 = vpack.c.b16 %v86, %v84
  %v109 = vpack.c.b16 %v89, %v87
  %v110 = vpack.c.b16 %v90, %v88
  %v111 = vpack.c.b16 %v93, %v91
  %v112 = vpack.c.b16 %v94, %v92
  %v113 = vpack.c.b16 %v97, %v95
  %v114 = vpack.c.b16 %v98, %v96
  %131 = vmatprep.subr.bf16.mxu0 %v100
  %132 = vmatpush1.bf16.msra.mxu0 %v99
  %133 = vmatprep.subr.bf16.mxu0 %v102
  %134 = vmatpush1.bf16.msra.mxu0 %v101
  %135 = vmatprep.subr.bf16.mxu0 %v104
  %136 = vmatpush1.bf16.msra.mxu0 %v103
  %137 = vmatprep.subr.bf16.mxu0 %v106
  %138 = vmatpush1.bf16.msra.mxu0 %v105
  %139 = vmatprep.subr.bf16.mxu0 %v108
  %140 = vmatpush1.bf16.msra.mxu0 %v107
  %141 = vmatprep.subr.bf16.mxu0 %v110
  %142 = vmatpush1.bf16.msra.mxu0 %v109
  %143 = vmatprep.subr.bf16.mxu0 %v112
  %144 = vmatpush1.bf16.msra.mxu0 %v111
  %145 = vmatprep.subr.bf16.mxu0 %v114
  %146 = vmatpush1.bf16.msra.mxu0 %v113
  %147 = vmatprep.subr.bf16.mxu0 0
  %148 = vmatpush1.bf16.msra.mxu0 0
  %149 = vmatprep.subr.bf16.mxu0 0
  %150 = vmatpush1.bf16.msra.mxu0 0
  %151 = vmatprep.subr.bf16.mxu0 0
  %152 = vmatpush1.bf16.msra.mxu0 0
  %153 = vmatprep.subr.bf16.mxu0 0
  %154 = vmatpush1.bf16.msra.mxu0 0
  %155 = vmatprep.subr.bf16.mxu0 0
  %156 = vmatpush1.bf16.msra.mxu0 0
  %157 = vmatprep.subr.bf16.mxu0 0
  %158 = vmatpush1.bf16.msra.mxu0 0
  %159 = vmatprep.subr.bf16.mxu0 0
  %160 = vmatpush1.bf16.msra.mxu0 0
  %161 = vmatprep.subr.bf16.mxu0 0
  %162 = vmatpush1.bf16.msra.mxu0 0
  %163 = vmatprep.mubr.bf16.mxu0 0
  %164 = vmatmul.mubr.bf16.gmra.mrb[0].mxu0 %v49
  %v165 = vpop.f32.mrb[0].mxu0
  %v166 = vadd.f32 0.0, %v165
  %v167 = vpop.f32.mrb[0].mxu0
  %v168 = vadd.f32 0.0, %v167
  %v169 = vpop.f32.mrb[0].mxu0
  %v170 = vadd.f32 0.0, %v169
  %v171 = vpop.f32.mrb[0].mxu0
  %v172 = vadd.f32 0.0, %v171
  %173 = vdwg.mxu0
  %v174 = vadd.f32 %v23, %v166
  %v175 = vadd.f32 %v24, %v168
  %v176 = vadd.f32 %v25, %v170
  %v177 = vadd.f32 %v26, %v172
  %178 = vst [vmem:[#allocation2] sm:$0xff] %v174
  %179 = vst [vmem:[#allocation2 + $0x8] sm:$0xff] %v175
  %180 = vst [vmem:[#allocation2 + $0x10] sm:$0xff] %v176
  %181 = vst [vmem:[#allocation2 + $0x18] sm:$0xff] %v177
  // Predicated region
  $region18: #{transformer_forward.8} parent=0 // pred_check
    %p182 = pneg %p15
  $region19: #{transformer_forward.8} parent=0 // pred_check_branch
    %184 = sbr.rel (%p182) target = $region21
  $region20: #{transformer_forward.8} parent=0 // pred_region
    %v185 = vld [vmem:[#allocation2] sm:$0xff]
    %v186 = vld [vmem:[#allocation2 + $0x8] sm:$0xff]
    %v187 = vld [vmem:[#allocation2 + $0x10] sm:$0xff]
    %v188 = vld [vmem:[#allocation2 + $0x18] sm:$0xff]
    %v189 = vld [vmem:[%s2] sm:$0x3]
    %v190 = vunpack.c.l.bf16 %v189
    %v192 = vlaneseq
    %v193 = vshrl.u32 %v192, 7
    %v194 = vsub.s32 0, %v193
    %v195 = vrot.slane %v190, %v194
    %v196 = vlaneseq
    %v197 = vshrl.u32 %v196, 7
    %v198 = vsub.s32 2, %v197
    %v199 = vrot.slane %v190, %v198
    %v202 = vlaneseq
    %v203 = vshrl.u32 %v202, 7
    %v204 = vsub.s32 0, %v203
    %v205 = vrot.slane %v195, %v204
    %v206 = vlaneseq
    %v207 = vshrl.u32 %v206, 7
    %v208 = vsub.s32 0, %v207
    %v209 = vrot.slane %v199, %v208
    %v210 = vadd.f32 %v185, %v205
    %v211 = vadd.f32 %v186, %v209
    %v212 = vadd.f32 %v187, %v205
    %v213 = vadd.f32 %v188, %v209
    %v214 = vmax.f32 %v210, 0.0
    %v215 = vmax.f32 %v211, 0.0
    %v216 = vmax.f32 %v212, 0.0
    %v217 = vmax.f32 %v213, 0.0
    %v218 = vpack.c.bf16 %v216, %v214
    %v219 = vpack.c.bf16 %v217, %v215
    %v222 = vunpack.c.l.b16 %v218
    %v223 = vunpack.c.l.b16 %v219
    %v224 = vunpack.c.h.b16 %v218
    %v225 = vunpack.c.h.b16 %v219
    %v226 = vpack.c.b16 %v223, %v222
    %v227 = vpack.c.b16 %v225, %v224
    %230 = vst [vmem:[%s3] sm:$0xff] %v226
    %231 = vst [vmem:[%s3 + $0x8] sm:$0xff] %v227
  $region21: #{transformer_forward.8} parent=0 // pred_fallthru
    _
  // Predicated region
  $region22: #{transformer_forward.8} parent=0 // pred_check
    _
  $region23: #{transformer_forward.8} parent=0 // pred_check_branch
    %233 = sbr.rel (0) target = $region25
  $region24: #{transformer_forward.8} parent=0 // pred_region
    _
  $region25: #{transformer_forward.8} parent=0 // pred_fallthru
    _
  // Predicated region
  $region26: #{transformer_forward.8} parent=0 // pred_check
    _
  $region27: #{transformer_forward.8} parent=0 // pred_check_branch
    %235 = sbr.rel (0) target = $region29
  $region28: #{transformer_forward.8} parent=0 // pred_region
    _
  $region29: #{transformer_forward.8} parent=0 // pred_fallthru
    _

// kernel: transformer_forward.7
$region0: #{transformer_forward.7}
  #allocation0 [shape = 'u32[]', space=smem, size = 0x4, offset = 0x4, fixed_abs, tag = 'smem constant byte address 0x4 - core index']
  #allocation1 [shape = 'u32[144,128]{1,0:T(1,128)}', space=vmem, size = 0x12000, scoped, tag = 'internal scratch']
  %s0 = inlined_call_operand.vmem [shape: bf16[2,8,128], index: 0, kind: input, shape index: {}]
  %s1 = inlined_call_operand.hbm [shape: bf16[128,384], index: 1, kind: input, shape index: {}]
  %s2 = inlined_call_operand.vmem [shape: bf16[1,384], index: 2, kind: input, shape index: {}]
  %s3 = inlined_call_operand.vmem [shape: bf16[128,128], index: 3, kind: input, shape index: {}]
  %s4 = inlined_call_operand.vmem [shape: bf16[1,128], index: 4, kind: input, shape index: {}]
  %s5 = inlined_call_operand.vmem [shape: f32[1,128], index: 5, kind: input, shape index: {}]
  %s6 = inlined_call_operand.vmem [shape: f32[1,128], index: 6, kind: input, shape index: {}]
  %s7 = inlined_call_operand.vmem [shape: bf16[2,8,128], index: 7, kind: output, shape index: {}]
  %s8 = sld [smem:[#allocation0]]
  $region65: #{transformer_forward.7} parent=0
    _
  %s10 = ssub.s32 1, %s8
  %s11 = scalar_select 0, %s10, %s8
  $region1: #{transformer_forward.7} parent=0
    #allocation2 [shape = 'u8[98304]{0}', space=vmem, size = 0x18000, scoped, tag = 'input window, operand 1, single buffered']
    #allocation3 [shape = 's32[2]{0}', space=sflag, size = 0x8, scoped, tag = 'scoped memory for transformer_forward.7']
    %12 = vsyncpa [#allocation3], 0
    loop: start=0, step=1, limit=4
    $region2: #{transformer_forward.7} parent=1 // loop_pre_header
      _
    $region3: #{transformer_forward.7} parent=1 // loop_header
      %s14 = sphi 0, %s18
      %p15 = scmp.ge.s32.totalorder %s14, 4
      %s24 = sphi 0, %s26
      %s27 = sphi 0, %s24
      %s28 = sphi 0, %s27
      %s44 = sphi 0, %s28
      %s48 = sphi 0, %s48
      %s50 = sphi 0, %s48
      %s51 = sphi 0, %s50
      %s65 = sphi 0, %s51
      %s69 = sphi 0, %s69
      %s71 = sphi 0, %s69
      %s72 = sphi 0, %s71
      %s86 = sphi 0, %s72
      %s90 = sphi 0, %s90
      %s92 = sphi 0, %s90
      %s93 = sphi 0, %s92
      %s107 = sphi 0, %s93
      %s111 = sphi 0, %s111
      %s113 = sphi 0, %s111
      %s114 = sphi 0, %s113
      %s128 = sphi 0, %s114
      %s132 = sphi 0, %s132
      %s134 = sphi 0, %s132
      %s135 = sphi 0, %s134
      %s149 = sphi 0, %s135
      %s153 = sphi 0, %s153
      %s155 = sphi 0, %s153
      %s156 = sphi 0, %s155
      %s170 = sphi 0, %s156
      %s176 = sphi 0, %s178
      %s179 = sphi 0, %s176
      %s180 = sphi 0, %s179
      %s196 = sphi 0, %s180
    $region4: #{transformer_forward.7} parent=1 // loop_header_branch
      %17 = sbr.rel (%p15) target = $region8
    $region5: #{transformer_forward.7} parent=1 // loop_body
      %s19 = ssub.s32 %s14, 1
      %s20 = ssub.s32 %s14, 2
      %s21 = sadd.s32 %s14, 1
      %s22 = ssub.s32 %s14, %s21
      %p23 = scmp.eq.s32.totalorder %s22, 0
      %s25 = sadd.s32 %s24, 1
      %s26 = scalar_select %p23, %s24, %s25
      %p29 = pneg %p23
      %p30 = scmp.eq.s32.totalorder %s14, 1
      %p31 = por %p29, %p30
      %p32 = scmp.ne.s32.totalorder %s24, %s27
      %p33 = scmp.eq.s32.totalorder %s14, 0
      %p34 = por %p32, %p33
      %p35 = scmp.ne.s32.totalorder %s24, %s27
      %p36 = scmp.eq.s32.totalorder %s19, 1
      %p37 = por %p35, %p36
      %p38 = scmp.ne.s32.totalorder %s27, %s28
      %p39 = scmp.eq.s32.totalorder %s19, 0
      %p40 = por %p38, %p39
      %p41 = scmp.ne.s32.totalorder %s27, %s28
      %p42 = scmp.eq.s32.totalorder %s20, 1
      %p43 = por %p41, %p42
      %p45 = scmp.ne.s32.totalorder %s28, %s44
      %p46 = scmp.eq.s32.totalorder %s20, 0
      %p47 = por %p45, %p46
      %s49 = sadd.s32 %s48, 1
      %p52 = scmp.eq.s32.totalorder %s14, 1
      %p53 = scmp.ne.s32.totalorder %s48, %s50
      %p54 = scmp.eq.s32.totalorder %s14, 0
      %p55 = por %p53, %p54
      %p56 = scmp.ne.s32.totalorder %s48, %s50
      %p57 = scmp.eq.s32.totalorder %s19, 1
      %p58 = por %p56, %p57
      %p59 = scmp.ne.s32.totalorder %s50, %s51
      %p60 = scmp.eq.s32.totalorder %s19, 0
      %p61 = por %p59, %p60
      %p62 = scmp.ne.s32.totalorder %s50, %s51
      %p63 = scmp.eq.s32.totalorder %s20, 1
      %p64 = por %p62, %p63
      %p66 = scmp.ne.s32.totalorder %s51, %s65
      %p67 = scmp.eq.s32.totalorder %s20, 0
      %p68 = por %p66, %p67
      %s70 = sadd.s32 %s69, 1
      %p73 = scmp.eq.s32.totalorder %s14, 1
      %p74 = scmp.ne.s32.totalorder %s69, %s71
      %p75 = scmp.eq.s32.totalorder %s14, 0
      %p76 = por %p74, %p75
      %p77 = scmp.ne.s32.totalorder %s69, %s71
      %p78 = scmp.eq.s32.totalorder %s19, 1
      %p79 = por %p77, %p78
      %p80 = scmp.ne.s32.totalorder %s71, %s72
      %p81 = scmp.eq.s32.totalorder %s19, 0
      %p82 = por %p80, %p81
      %p83 = scmp.ne.s32.totalorder %s71, %s72
      %p84 = scmp.eq.s32.totalorder %s20, 1
      %p85 = por %p83, %p84
      %p87 = scmp.ne.s32.totalorder %s72, %s86
      %p88 = scmp.eq.s32.totalorder %s20, 0
      %p89 = por %p87, %p88
      %s91 = sadd.s32 %s90, 1
      %p94 = scmp.eq.s32.totalorder %s14, 1
      %p95 = scmp.ne.s32.totalorder %s90, %s92
      %p96 = scmp.eq.s32.totalorder %s14, 0
      %p97 = por %p95, %p96
      %p98 = scmp.ne.s32.totalorder %s90, %s92
      %p99 = scmp.eq.s32.totalorder %s19, 1
      %p100 = por %p98, %p99
      %p101 = scmp.ne.s32.totalorder %s92, %s93
      %p102 = scmp.eq.s32.totalorder %s19, 0
      %p103 = por %p101, %p102
      %p104 = scmp.ne.s32.totalorder %s92, %s93
      %p105 = scmp.eq.s32.totalorder %s20, 1
      %p106 = por %p104, %p105
      %p108 = scmp.ne.s32.totalorder %s93, %s107
      %p109 = scmp.eq.s32.totalorder %s20, 0
      %p110 = por %p108, %p109
      %s112 = sadd.s32 %s111, 1
      %p115 = scmp.eq.s32.totalorder %s14, 1
      %p116 = scmp.ne.s32.totalorder %s111, %s113
      %p117 = scmp.eq.s32.totalorder %s14, 0
      %p118 = por %p116, %p117
      %p119 = scmp.ne.s32.totalorder %s111, %s113
      %p120 = scmp.eq.s32.totalorder %s19, 1
      %p121 = por %p119, %p120
      %p122 = scmp.ne.s32.totalorder %s113, %s114
      %p123 = scmp.eq.s32.totalorder %s19, 0
      %p124 = por %p122, %p123
      %p125 = scmp.ne.s32.totalorder %s113, %s114
      %p126 = scmp.eq.s32.totalorder %s20, 1
      %p127 = por %p125, %p126
      %p129 = scmp.ne.s32.totalorder %s114, %s128
      %p130 = scmp.eq.s32.totalorder %s20, 0
      %p131 = por %p129, %p130
      %s133 = sadd.s32 %s132, 1
      %p136 = scmp.eq.s32.totalorder %s14, 1
      %p137 = scmp.ne.s32.totalorder %s132, %s134
      %p138 = scmp.eq.s32.totalorder %s14, 0
      %p139 = por %p137, %p138
      %p140 = scmp.ne.s32.totalorder %s132, %s134
      %p141 = scmp.eq.s32.totalorder %s19, 1
      %p142 = por %p140, %p141
      %p143 = scmp.ne.s32.totalorder %s134, %s135
      %p144 = scmp.eq.s32.totalorder %s19, 0
      %p145 = por %p143, %p144
      %p146 = scmp.ne.s32.totalorder %s134, %s135
      %p147 = scmp.eq.s32.totalorder %s20, 1
      %p148 = por %p146, %p147
      %p150 = scmp.ne.s32.totalorder %s135, %s149
      %p151 = scmp.eq.s32.totalorder %s20, 0
      %p152 = por %p150, %p151
      %s154 = sadd.s32 %s153, 1
      %p157 = scmp.eq.s32.totalorder %s14, 1
      %p158 = scmp.ne.s32.totalorder %s153, %s155
      %p159 = scmp.eq.s32.totalorder %s14, 0
      %p160 = por %p158, %p159
      %p161 = scmp.ne.s32.totalorder %s153, %s155
      %p162 = scmp.eq.s32.totalorder %s19, 1
      %p163 = por %p161, %p162
      %p164 = scmp.ne.s32.totalorder %s155, %s156
      %p165 = scmp.eq.s32.totalorder %s19, 0
      %p166 = por %p164, %p165
      %p167 = scmp.ne.s32.totalorder %s155, %s156
      %p168 = scmp.eq.s32.totalorder %s20, 1
      %p169 = por %p167, %p168
      %p171 = scmp.ne.s32.totalorder %s156, %s170
      %p172 = scmp.eq.s32.totalorder %s20, 0
      %p173 = por %p171, %p172
      %s174 = ssub.s32 %s14, %s21
      %p175 = scmp.eq.s32.totalorder %s174, 0
      %s177 = sadd.s32 %s176, 1
      %s178 = scalar_select %p175, %s176, %s177
      %p181 = pneg %p175
      %p182 = scmp.eq.s32.totalorder %s14, 1
      %p183 = por %p181, %p182
      %p184 = scmp.ne.s32.totalorder %s176, %s179
      %p185 = scmp.eq.s32.totalorder %s14, 0
      %p186 = por %p184, %p185
      %p187 = scmp.ne.s32.totalorder %s176, %s179
      %p188 = scmp.eq.s32.totalorder %s19, 1
      %p189 = por %p187, %p188
      %p190 = scmp.ne.s32.totalorder %s179, %s180
      %p191 = scmp.eq.s32.totalorder %s19, 0
      %p192 = por %p190, %p191
      %p193 = scmp.ne.s32.totalorder %s179, %s180
      %p194 = scmp.eq.s32.totalorder %s20, 1
      %p195 = por %p193, %p194
      %p197 = scmp.ne.s32.totalorder %s180, %s196
      %p198 = scmp.eq.s32.totalorder %s20, 0
      %p199 = por %p197, %p198
      %p200 = scmp.le.s32.totalorder 1, %s14
      %p201 = scmp.lt.s32.totalorder %s14, 3
      %p202 = pnand %p200, %p201
      %p203 = pneg %p202
      // Predicated region
      $region9: #{transformer_forward.7} parent=5 // pred_check
        _
      $region10: #{transformer_forward.7} parent=5 // pred_check_branch
        %205 = sbr.rel (%p202) target = $region12
      $region11: #{transformer_forward.7} parent=5 // pred_region
        %s206 = ssub.s32 %s14, 1
        // Predicated region
        $region13: #{transformer_forward.7} parent=11 // pred_check
          %p207 = pneg %p61
        $region14: #{transformer_forward.7} parent=11 // pred_check_branch
          %209 = sbr.rel (%p207) target = $region16
        $region15: #{transformer_forward.7} parent=11 // pred_region
          %s211 = ssub.s32 3072, 3072
          %212 = vsyncadd [#allocation3], %s211
          %s213 = sshll.u32 [#allocation2], 4
          %s214 = int_to_ptr.vmem [resolvable:$true] %s213
          %219 = dma.hbm_to_vmem [thread:$0]  %s1, 3072, %s214, [#allocation3], 192, 192, 12
        $region16: #{transformer_forward.7} parent=11 // pred_fallthru
          _
        // Predicated region
        $region17: #{transformer_forward.7} parent=11 // pred_check
          %p220 = pneg %p82
        $region18: #{transformer_forward.7} parent=11 // pred_check_branch
          %222 = sbr.rel (%p220) target = $region20
        $region19: #{transformer_forward.7} parent=11 // pred_region
          _
        $region20: #{transformer_forward.7} parent=11 // pred_fallthru
          _
        // Predicated region
        $region21: #{transformer_forward.7} parent=11 // pred_check
          %p223 = pneg %p103
        $region22: #{transformer_forward.7} parent=11 // pred_check_branch
          %225 = sbr.rel (%p223) target = $region24
        $region23: #{transformer_forward.7} parent=11 // pred_region
          _
        $region24: #{transformer_forward.7} parent=11 // pred_fallthru
          _
        // Predicated region
        $region25: #{transformer_forward.7} parent=11 // pred_check
          %p226 = pneg %p124
        $region26: #{transformer_forward.7} parent=11 // pred_check_branch
          %228 = sbr.rel (%p226) target = $region28
        $region27: #{transformer_forward.7} parent=11 // pred_region
          _
        $region28: #{transformer_forward.7} parent=11 // pred_fallthru
          _
        // Predicated region
        $region29: #{transformer_forward.7} parent=11 // pred_check
          %p229 = pneg %p145
        $region30: #{transformer_forward.7} parent=11 // pred_check_branch
          %231 = sbr.rel (%p229) target = $region32
        $region31: #{transformer_forward.7} parent=11 // pred_region
          _
        $region32: #{transformer_forward.7} parent=11 // pred_fallthru
          _
        // Predicated region
        $region33: #{transformer_forward.7} parent=11 // pred_check
          %p232 = pneg %p166
        $region34: #{transformer_forward.7} parent=11 // pred_check_branch
          %234 = sbr.rel (%p232) target = $region36
        $region35: #{transformer_forward.7} parent=11 // pred_region
          _
        $region36: #{transformer_forward.7} parent=11 // pred_fallthru
          _
      $region12: #{transformer_forward.7} parent=5 // pred_fallthru
        _
      %p235 = scmp.lt.s32.totalorder %s14, 2
      // Predicated region
      $region37: #{transformer_forward.7} parent=5 // pred_check
        %p236 = pneg %p235
      $region38: #{transformer_forward.7} parent=5 // pred_check_branch
        %238 = sbr.rel (%p236) target = $region40
      $region39: #{transformer_forward.7} parent=5 // pred_region
        // Predicated region
        $region41: #{transformer_forward.7} parent=39 // pred_check
          %p239 = pneg %p34
        $region42: #{transformer_forward.7} parent=39 // pred_check_branch
          %241 = sbr.rel (%p239) target = $region44
        $region43: #{transformer_forward.7} parent=39 // pred_region
          %p242 = scmp.lt.s32.totalorder %s14, 1
          %s243 = scalar_select %p242, %s14, 1
          %s244 = smul.addr %s243, 4
          %s245 = scalar_lea.vmem %s0, %s244
        $region44: #{transformer_forward.7} parent=39 // pred_fallthru
          _
      $region40: #{transformer_forward.7} parent=5 // pred_fallthru
        _
      %p246 = scmp.le.s32.totalorder 1, %s14
      %p247 = scmp.lt.s32.totalorder %s14, 3
      %p248 = pnand %p246, %p247
      %p249 = pneg %p248
      // Predicated region
      $region45: #{transformer_forward.7} parent=5 // pred_check
        _
      $region46: #{transformer_forward.7} parent=5 // pred_check_branch
        %251 = sbr.rel (%p248) target = $region48
      $region47: #{transformer_forward.7} parent=5 // pred_region
        %s252 = ssub.s32 %s14, 1
        // Predicated region
        $region49: #{transformer_forward.7} parent=47 // pred_check
          %p253 = pneg %p61
        $region50: #{transformer_forward.7} parent=47 // pred_check_branch
          %255 = sbr.rel (%p253) target = $region52
        $region51: #{transformer_forward.7} parent=47 // pred_region
          %256 = dma.done [#allocation3], 3072
        $region52: #{transformer_forward.7} parent=47 // pred_fallthru
          _
        %p257 = scmp.lt.s32.totalorder %s19, 1
        %s258 = scalar_select %p257, %s19, 1
        %s259 = smul.addr %s258, 4
        %s260 = scalar_lea.vmem %s0, %s259
        %p261 = pneg %p40
        %p262 = pneg %p37
        %p263 = pneg %p61
        %p264 = pneg %p58
        %p265 = pneg %p82
        %p266 = pneg %p79
        %p267 = pneg %p103
        %p268 = pneg %p100
        %p269 = pneg %p124
        %p270 = pneg %p121
        %p271 = pneg %p145
        %p272 = pneg %p142
        %p273 = pneg %p166
        %p274 = pneg %p163
        %p275 = pneg %p192
        %p276 = pneg %p189
        %p277 = scmp.lt.s32.totalorder %s19, 1
        %s278 = scalar_select %p277, %s19, 1
        %s279 = smul.addr %s278, 4
        %s280 = scalar_lea.vmem %s7, %s279
        %p281 = scmp.lt.s32.totalorder %s19, 1
        %s282 = scalar_select %p281, %s19, 1
        %s283 = smul.addr %s282, 4
        %s284 = scalar_lea.vmem %s0, %s283
        %p285 = scmp.lt.s32.totalorder %s19, 1
        %s286 = scalar_select %p285, %s19, 1
        %s287 = smul.addr %s286, 4
        %s288 = scalar_lea.vmem %s7, %s287
        %v290 = vld [vmem:[%s284] sm:$0xf]
        %v291 = vld [vmem:[#allocation2] sm:$0xff]
        %v292 = vld [vmem:[#allocation2 + $0x8] sm:$0xf]
        %v293 = vld [vmem:[#allocation2 + $0xc] sm:$0xff]
        %v294 = vld [vmem:[#allocation2 + $0x14] sm:$0xf]
        %v295 = vld [vmem:[#allocation2 + $0x18] sm:$0xff]
        %v296 = vld [vmem:[#allocation2 + $0x20] sm:$0xf]
        %v297 = vld [vmem:[#allocation2 + $0x24] sm:$0xff]
        %v298 = vld [vmem:[#allocation2 + $0x2c] sm:$0xf]
        %v299 = vld [vmem:[#allocation2 + $0x30] sm:$0xff]
        %v300 = vld [vmem:[#allocation2 + $0x38] sm:$0xf]
        %v301 = vld [vmem:[#allocation2 + $0x3c] sm:$0xff]
        %v302 = vld [vmem:[#allocation2 + $0x44] sm:$0xf]
        %v303 = vld [vmem:[#allocation2 + $0x48] sm:$0xff]
        %v304 = vld [vmem:[#allocation2 + $0x50] sm:$0xf]
        %v305 = vld [vmem:[#allocation2 + $0x54] sm:$0xff]
        %v306 = vld [vmem:[#allocation2 + $0x5c] sm:$0xf]
        %v307 = vld [vmem:[#allocation2 + $0x60] sm:$0xff]
        %v308 = vld [vmem:[#allocation2 + $0x68] sm:$0xf]
        %v309 = vld [vmem:[#allocation2 + $0x6c] sm:$0xff]
        %v310 = vld [vmem:[#allocation2 + $0x74] sm:$0xf]
        %v311 = vld [vmem:[#allocation2 + $0x78] sm:$0xff]
        %v312 = vld [vmem:[#allocation2 + $0x80] sm:$0xf]
        %v313 = vld [vmem:[#allocation2 + $0x84] sm:$0xff]
        %v314 = vld [vmem:[#allocation2 + $0x8c] sm:$0xf]
        %v315 = vld [vmem:[#allocation2 + $0x90] sm:$0xff]
        %v316 = vld [vmem:[#allocation2 + $0x98] sm:$0xf]
        %v317 = vld [vmem:[#allocation2 + $0x9c] sm:$0xff]
        %v318 = vld [vmem:[#allocation2 + $0xa4] sm:$0xf]
        %v319 = vld [vmem:[#allocation2 + $0xa8] sm:$0xff]
        %v320 = vld [vmem:[#allocation2 + $0xb0] sm:$0xf]
        %v321 = vld [vmem:[#allocation2 + $0xb4] sm:$0xff]
        %v322 = vld [vmem:[#allocation2 + $0xbc] sm:$0xf]
        %v323 = vld [vmem:[%s2] sm:$0x7]
        %v324 = vunpack.c.l.bf16 %v323
        %v326 = vlaneseq
        %v327 = vshrl.u32 %v326, 7
        %v328 = vsub.s32 0, %v327
        %v329 = vrot.slane %v324, %v328
        %v330 = vlaneseq
        %v331 = vshrl.u32 %v330, 7
        %v332 = vsub.s32 2, %v331
        %v333 = vrot.slane %v324, %v332
        %v334 = vlaneseq
        %v335 = vshrl.u32 %v334, 7
        %v336 = vsub.s32 4, %v335
        %v337 = vrot.slane %v324, %v336
        %v341 = vlaneseq
        %v342 = vshrl.u32 %v341, 7
        %v343 = vsub.s32 0, %v342
        %v344 = vrot.slane %v329, %v343
        %v345 = vlaneseq
        %v346 = vshrl.u32 %v345, 7
        %v347 = vsub.s32 0, %v346
        %v348 = vrot.slane %v333, %v347
        %v349 = vlaneseq
        %v350 = vshrl.u32 %v349, 7
        %v351 = vsub.s32 0, %v350
        %v352 = vrot.slane %v337, %v351
        %v385 = vunpack.c.l.b16 %v291
        %v386 = vunpack.c.h.b16 %v291
        %v387 = vunpack.c.l.b16 %v292
        %v388 = vunpack.c.l.b16 %v293
        %v389 = vunpack.c.h.b16 %v293
        %v390 = vunpack.c.l.b16 %v294
        %v391 = vunpack.c.l.b16 %v295
        %v392 = vunpack.c.h.b16 %v295
        %v393 = vunpack.c.l.b16 %v296
        %v394 = vunpack.c.l.b16 %v297
        %v395 = vunpack.c.h.b16 %v297
        %v396 = vunpack.c.l.b16 %v298
        %v397 = vunpack.c.l.b16 %v299
        %v398 = vunpack.c.h.b16 %v299
        %v399 = vunpack.c.l.b16 %v300
        %v400 = vunpack.c.l.b16 %v301
        %v401 = vunpack.c.h.b16 %v301
        %v402 = vunpack.c.l.b16 %v302
        %v403 = vunpack.c.l.b16 %v303
        %v404 = vunpack.c.h.b16 %v303
        %v405 = vunpack.c.l.b16 %v304
        %v406 = vunpack.c.l.b16 %v305
        %v407 = vunpack.c.h.b16 %v305
        %v408 = vunpack.c.l.b16 %v306
        %v409 = vunpack.c.l.b16 %v307
        %v410 = vunpack.c.h.b16 %v307
        %v411 = vunpack.c.l.b16 %v308
        %v412 = vunpack.c.l.b16 %v309
        %v413 = vunpack.c.h.b16 %v309
        %v414 = vunpack.c.l.b16 %v310
        %v415 = vunpack.c.l.b16 %v311
        %v416 = vunpack.c.h.b16 %v311
        %v417 = vunpack.c.l.b16 %v312
        %v418 = vunpack.c.l.b16 %v313
        %v419 = vunpack.c.h.b16 %v313
        %v420 = vunpack.c.l.b16 %v314
        %v421 = vunpack.c.l.b16 %v315
        %v422 = vunpack.c.h.b16 %v315
        %v423 = vunpack.c.l.b16 %v316
        %v424 = vunpack.c.l.b16 %v317
        %v425 = vunpack.c.h.b16 %v317
        %v426 = vunpack.c.l.b16 %v318
        %v427 = vunpack.c.l.b16 %v319
        %v428 = vunpack.c.h.b16 %v319
        %v429 = vunpack.c.l.b16 %v320
        %v430 = vunpack.c.l.b16 %v321
        %v431 = vunpack.c.h.b16 %v321
        %v432 = vunpack.c.l.b16 %v322
        %v433 = vpack.c.b16 %v388, %v385
        %v434 = vpack.c.b16 %v389, %v386
        %v435 = vpack.c.b16 %v390, %v387
        %v436 = vpack.c.b16 %v394, %v391
        %v437 = vpack.c.b16 %v395, %v392
        %v438 = vpack.c.b16 %v396, %v393
        %v439 = vpack.c.b16 %v400, %v397
        %v440 = vpack.c.b16 %v401, %v398
        %v441 = vpack.c.b16 %v402, %v399
        %v442 = vpack.c.b16 %v406, %v403
        %v443 = vpack.c.b16 %v407, %v404
        %v444 = vpack.c.b16 %v408, %v405
        %v445 = vpack.c.b16 %v412, %v409
        %v446 = vpack.c.b16 %v413, %v410
        %v447 = vpack.c.b16 %v414, %v411
        %v448 = vpack.c.b16 %v418, %v415
        %v449 = vpack.c.b16 %v419, %v416
        %v450 = vpack.c.b16 %v420, %v417
        %v451 = vpack.c.b16 %v424, %v421
        %v452 = vpack.c.b16 %v425, %v422
        %v453 = vpack.c.b16 %v426, %v423
        %v454 = vpack.c.b16 %v430, %v427
        %v455 = vpack.c.b16 %v431, %v428
        %v456 = vpack.c.b16 %v432, %v429
        %481 = vmatprep.subr.bf16.mxu0 %v434
        %482 = vmatpush1.bf16.msra.mxu0 %v433
        %483 = vmatprep.subr.bf16.mxu0 %v437
        %484 = vmatpush1.bf16.msra.mxu0 %v436
        %485 = vmatprep.subr.bf16.mxu0 %v440
        %486 = vmatpush1.bf16.msra.mxu0 %v439
        %487 = vmatprep.subr.bf16.mxu0 %v443
        %488 = vmatpush1.bf16.msra.mxu0 %v442
        %489 = vmatprep.subr.bf16.mxu0 %v446
        %490 = vmatpush1.bf16.msra.mxu0 %v445
        %491 = vmatprep.subr.bf16.mxu0 %v449
        %492 = vmatpush1.bf16.msra.mxu0 %v448
        %493 = vmatprep.subr.bf16.mxu0 %v452
        %494 = vmatpush1.bf16.msra.mxu0 %v451
        %495 = vmatprep.subr.bf16.mxu0 %v455
        %496 = vmatpush1.bf16.msra.mxu0 %v454
        %497 = vmatprep.subr.bf16.mxu0 0
        %498 = vmatpush1.bf16.msra.mxu0 0
        %499 = vmatprep.subr.bf16.mxu0 0
        %500 = vmatpush1.bf16.msra.mxu0 0
        %501 = vmatprep.subr.bf16.mxu0 0
        %502 = vmatpush1.bf16.msra.mxu0 0
        %503 = vmatprep.subr.bf16.mxu0 0
        %504 = vmatpush1.bf16.msra.mxu0 0
        %505 = vmatprep.subr.bf16.mxu0 0
        %506 = vmatpush1.bf16.msra.mxu0 0
        %507 = vmatprep.subr.bf16.mxu0 0
        %508 = vmatpush1.bf16.msra.mxu0 0
        %509 = vmatprep.subr.bf16.mxu0 0
        %510 = vmatpush1.bf16.msra.mxu0 0
        %511 = vmatprep.subr.bf16.mxu0 0
        %512 = vmatpush1.bf16.msra.mxu0 0
        %513 = vmatprep.mubr.bf16.mxu0 0
        %514 = vmatmul.mubr.bf16.gmra.mrb[0].mxu0 %v290
        %v515 = vpop.f32.mrb[0].mxu0
        %v516 = vadd.f32 %v344, %v515
        %v517 = vpop.f32.mrb[0].mxu0
        %v518 = vadd.f32 %v348, %v517
        %v519 = vpop.f32.mrb[0].mxu0
        %v520 = vpop.f32.mrb[0].mxu0
        %521 = vdwg.mxu0
        %522 = vmatprep.subr.bf16.mxu0 0
        %523 = vmatpush1.bf16.msra.mxu0 %v435
        %524 = vmatprep.subr.bf16.mxu0 0
        %525 = vmatpush1.bf16.msra.mxu0 %v438
        %526 = vmatprep.subr.bf16.mxu0 0
        %527 = vmatpush1.bf16.msra.mxu0 %v441
        %528 = vmatprep.subr.bf16.mxu0 0
        %529 = vmatpush1.bf16.msra.mxu0 %v444
        %530 = vmatprep.subr.bf16.mxu0 0
        %531 = vmatpush1.bf16.msra.mxu0 %v447
        %532 = vmatprep.subr.bf16.mxu0 0
        %533 = vmatpush1.bf16.msra.mxu0 %v450
        %534 = vmatprep.subr.bf16.mxu0 0
        %535 = vmatpush1.bf16.msra.mxu0 %v453
        %536 = vmatprep.subr.bf16.mxu0 0
        %537 = vmatpush1.bf16.msra.mxu0 %v456
        %538 = vmatprep.subr.bf16.mxu0 0
        %539 = vmatpush1.bf16.msra.mxu0 0
        %540 = vmatprep.subr.bf16.mxu0 0
        %541 = vmatpush1.bf16.msra.mxu0 0
        %542 = vmatprep.subr.bf16.mxu0 0
        %543 = vmatpush1.bf16.msra.mxu0 0
        %544 = vmatprep.subr.bf16.mxu0 0
        %545 = vmatpush1.bf16.msra.mxu0 0
        %546 = vmatprep.subr.bf16.mxu0 0
        %547 = vmatpush1.bf16.msra.mxu0 0
        %548 = vmatprep.subr.bf16.mxu0 0
        %549 = vmatpush1.bf16.msra.mxu0 0
        %550 = vmatprep.subr.bf16.mxu0 0
        %551 = vmatpush1.bf16.msra.mxu0 0
        %552 = vmatprep.subr.bf16.mxu0 0
        %553 = vmatpush1.bf16.msra.mxu0 0
        %554 = vmatprep.mubr.bf16.mxu0 0
        %555 = vmatmul.mubr.bf16.gmra.mrb[0].mxu0 %v290
        %v556 = vpop.f32.mrb[0].mxu0
        %v557 = vadd.f32 %v352, %v556
        %v558 = vpop.f32.mrb[0].mxu0
        %v559 = vpop.f32.mrb[0].mxu0
        %v560 = vpop.f32.mrb[0].mxu0
        %561 = vdwg.mxu0
        %v562 = vpack.c.bf16 %v516, %v516
        %v563 = vpack.c.bf16 %v518, %v518
        %v564 = vpack.c.bf16 %v557, %v557
        %vm565 = vcmask 261120
        %v567 = vsel %vm565, %v562, 0
        %v570 = vsel %vm565, %v563, 0
        %572 = vmatprep.subr.bf16.mxu0 0
        %573 = vmatpush1.bf16.xpose.msra.mxu0 %v570
        %574 = vmatprep.subr.bf16.mxu0 0
        %575 = vmatpush1.bf16.xpose.msra.mxu0 0
        %576 = vmatprep.subr.bf16.mxu0 0
        %577 = vmatpush1.bf16.xpose.msra.mxu0 0
        %578 = vmatprep.subr.bf16.mxu0 0
        %579 = vmatpush1.bf16.xpose.msra.mxu0 0
        %580 = vmatprep.subr.bf16.mxu0 0
        %581 = vmatpush1.bf16.xpose.msra.mxu0 0
        %582 = vmatprep.subr.bf16.mxu0 0
        %583 = vmatpush1.bf16.xpose.msra.mxu0 0
        %584 = vmatprep.subr.bf16.mxu0 0
        %585 = vmatpush1.bf16.xpose.msra.mxu0 0
        %586 = vmatprep.subr.bf16.mxu0 0
        %587 = vmatpush1.bf16.xpose.msra.mxu0 0
        %588 = vmatprep.subr.bf16.mxu0 0
        %589 = vmatpush1.bf16.xpose.msra.mxu0 0
        %590 = vmatprep.subr.bf16.mxu0 0
        %591 = vmatpush1.bf16.xpose.msra.mxu0 0
        %592 = vmatprep.subr.bf16.mxu0 0
        %593 = vmatpush1.bf16.xpose.msra.mxu0 0
        %594 = vmatprep.subr.bf16.mxu0 0
        %595 = vmatpush1.bf16.xpose.msra.mxu0 0
        %596 = vmatprep.subr.bf16.mxu0 0
        %597 = vmatpush1.bf16.xpose.msra.mxu0 0
        %598 = vmatprep.subr.bf16.mxu0 0
        %599 = vmatpush1.bf16.xpose.msra.mxu0 0
        %600 = vmatprep.subr.bf16.mxu0 0
        %601 = vmatpush1.bf16.xpose.msra.mxu0 0
        %602 = vmatprep.subr.bf16.mxu0 0
        %603 = vmatpush1.bf16.xpose.msra.mxu0 0
        %604 = vmatprep.mubr.bf16.mxu0 0
        %605 = vmatmul.mubr.bf16.gmra.mrb[0].mxu0 %v567
        %v606 = vpop.f32.mrb[0].mxu0
        %v607 = vadd.f32 0.0, %v606
        %v608 = vpop.f32.mrb[0].mxu0
        %v609 = vpop.f32.mrb[0].mxu0
        %v610 = vpop.f32.mrb[0].mxu0
        %611 = vdwg.mxu0
        %vm612 = vcmask 64512
        %v613 = vsel %vm612, %v607, -inf
        %614 = vmax.xlane.f32.xlu0 %v613
        %v615 = vpop.xlane.xlu0 %614
        %v616 = vsub.f32 %v607, %v615
        %v617 = vmul.f32 %v616, 1.442695
        %v618 = vpow.pop %v617
        %v619 = vsel %vm612, %v618, 0.0
        %620 = vadd.xlane.f32.xlu0 %v619
        %v621 = vpop.xlane.xlu0 %620
        %v622 = vpack.c.bf16 %v618, %v618
        %v624 = vsel %vm612, %v622, 0
        %vm626 = vcmask 1043456
        %v628 = vsel %vm626, %v564, 0
        %630 = vmatprep.subr.bf16.mxu0 0
        %631 = vmatpush1.bf16.msra.mxu0 %v628
        %632 = vmatprep.subr.bf16.mxu0 0
        %633 = vmatpush1.bf16.msra.mxu0 0
        %634 = vmatprep.subr.bf16.mxu0 0
        %635 = vmatpush1.bf16.msra.mxu0 0
        %636 = vmatprep.subr.bf16.mxu0 0
        %637 = vmatpush1.bf16.msra.mxu0 0
        %638 = vmatprep.subr.bf16.mxu0 0
        %639 = vmatpush1.bf16.msra.mxu0 0
        %640 = vmatprep.subr.bf16.mxu0 0
        %641 = vmatpush1.bf16.msra.mxu0 0
        %642 = vmatprep.subr.bf16.mxu0 0
        %643 = vmatpush1.bf16.msra.mxu0 0
        %644 = vmatprep.subr.bf16.mxu0 0
        %645 = vmatpush1.bf16.msra.mxu0 0
        %646 = vmatprep.subr.bf16.mxu0 0
        %647 = vmatpush1.bf16.msra.mxu0 0
        %648 = vmatprep.subr.bf16.mxu0 0
        %649 = vmatpush1.bf16.msra.mxu0 0
        %650 = vmatprep.subr.bf16.mxu0 0
        %651 = vmatpush1.bf16.msra.mxu0 0
        %652 = vmatprep.subr.bf16.mxu0 0
        %653 = vmatpush1.bf16.msra.mxu0 0
        %654 = vmatprep.subr.bf16.mxu0 0
        %655 = vmatpush1.bf16.msra.mxu0 0
        %656 = vmatprep.subr.bf16.mxu0 0
        %657 = vmatpush1.bf16.msra.mxu0 0
        %658 = vmatprep.subr.bf16.mxu0 0
        %659 = vmatpush1.bf16.msra.mxu0 0
        %660 = vmatprep.subr.bf16.mxu0 0
        %661 = vmatpush1.bf16.msra.mxu0 0
        %662 = vmatprep.mubr.bf16.mxu0 0
        %663 = vmatmul.mubr.bf16.gmra.mrb[0].mxu0 %v624
        %v664 = vpop.f32.mrb[0].mxu0
        %v665 = vadd.f32 0.0, %v664
        %v666 = vpop.f32.mrb[0].mxu0
        %v667 = vpop.f32.mrb[0].mxu0
        %v668 = vpop.f32.mrb[0].mxu0
        %669 = vdwg.mxu0
        %v670 = vrcp.pop %v621
        %v671 = vmul.f32 %v665, %v670
        %673 = vrot.lane.b32.xlu0 %v562, 96
        %v674 = vpop.permute.xlu0 %673
        %676 = vrot.lane.b32.xlu0 %v563, 96
        %v677 = vpop.permute.xlu0 %676
        %v679 = vsel %vm565, %v674, 0
        %v682 = vsel %vm565, %v677, 0
        %684 = vmatprep.subr.bf16.mxu0 0
        %685 = vmatpush1.bf16.xpose.msra.mxu0 %v682
        %686 = vmatprep.subr.bf16.mxu0 0
        %687 = vmatpush1.bf16.xpose.msra.mxu0 0
        %688 = vmatprep.subr.bf16.mxu0 0
        %689 = vmatpush1.bf16.xpose.msra.mxu0 0
        %690 = vmatprep.subr.bf16.mxu0 0
        %691 = vmatpush1.bf16.xpose.msra.mxu0 0
        %692 = vmatprep.subr.bf16.mxu0 0
        %693 = vmatpush1.bf16.xpose.msra.mxu0 0
        %694 = vmatprep.subr.bf16.mxu0 0
        %695 = vmatpush1.bf16.xpose.msra.mxu0 0
        %696 = vmatprep.subr.bf16.mxu0 0
        %697 = vmatpush1.bf16.xpose.msra.mxu0 0
        %698 = vmatprep.subr.bf16.mxu0 0
        %699 = vmatpush1.bf16.xpose.msra.mxu0 0
        %700 = vmatprep.subr.bf16.mxu0 0
        %701 = vmatpush1.bf16.xpose.msra.mxu0 0
        %702 = vmatprep.subr.bf16.mxu0 0
        %703 = vmatpush1.bf16.xpose.msra.mxu0 0
        %704 = vmatprep.subr.bf16.mxu0 0
        %705 = vmatpush1.bf16.xpose.msra.mxu0 0
        %706 = vmatprep.subr.bf16.mxu0 0
        %707 = vmatpush1.bf16.xpose.msra.mxu0 0
        %708 = vmatprep.subr.bf16.mxu0 0
        %709 = vmatpush1.bf16.xpose.msra.mxu0 0
        %710 = vmatprep.subr.bf16.mxu0 0
        %711 = vmatpush1.bf16.xpose.msra.mxu0 0
        %712 = vmatprep.subr.bf16.mxu0 0
        %713 = vmatpush1.bf16.xpose.msra.mxu0 0
        %714 = vmatprep.subr.bf16.mxu0 0
        %715 = vmatpush1.bf16.xpose.msra.mxu0 0
        %716 = vmatprep.mubr.bf16.mxu0 0
        %717 = vmatmul.mubr.bf16.gmra.mrb[0].mxu0 %v679
        %v718 = vpop.f32.mrb[0].mxu0
        %v719 = vadd.f32 0.0, %v718
        %v720 = vpop.f32.mrb[0].mxu0
        %v721 = vpop.f32.mrb[0].mxu0
        %v722 = vpop.f32.mrb[0].mxu0
        %723 = vdwg.mxu0
        %v724 = vsel %vm612, %v719, -inf
        %725 = vmax.xlane.f32.xlu0 %v724
        %v726 = vpop.xlane.xlu0 %725
        %v727 = vsub.f32 %v719, %v726
        %v728 = vmul.f32 %v727, 1.442695
        %v729 = vpow.pop %v728
        %v730 = vsel %vm612, %v729, 0.0
        %731 = vadd.xlane.f32.xlu0 %v730
        %v732 = vpop.xlane.xlu0 %731
        %v733 = vpack.c.bf16 %v729, %v729
        %735 = vrot.lane.b32.xlu0 %v564, 96
        %v736 = vpop.permute.xlu0 %735
        %v738 = vsel %vm612, %v733, 0
        %v741 = vsel %vm626, %v736, 0
        %743 = vmatprep.subr.bf16.mxu0 0
        %744 = vmatpush1.bf16.msra.mxu0 %v741
        %745 = vmatprep.subr.bf16.mxu0 0
        %746 = vmatpush1.bf16.msra.mxu0 0
        %747 = vmatprep.subr.bf16.mxu0 0
        %748 = vmatpush1.bf16.msra.mxu0 0
        %749 = vmatprep.subr.bf16.mxu0 0
        %750 = vmatpush1.bf16.msra.mxu0 0
        %751 = vmatprep.subr.bf16.mxu0 0
        %752 = vmatpush1.bf16.msra.mxu0 0
        %753 = vmatprep.subr.bf16.mxu0 0
        %754 = vmatpush1.bf16.msra.mxu0 0
        %755 = vmatprep.subr.bf16.mxu0 0
        %756 = vmatpush1.bf16.msra.mxu0 0
        %757 = vmatprep.subr.bf16.mxu0 0
        %758 = vmatpush1.bf16.msra.mxu0 0
        %759 = vmatprep.subr.bf16.mxu0 0
        %760 = vmatpush1.bf16.msra.mxu0 0
        %761 = vmatprep.subr.bf16.mxu0 0
        %762 = vmatpush1.bf16.msra.mxu0 0
        %763 = vmatprep.subr.bf16.mxu0 0
        %764 = vmatpush1.bf16.msra.mxu0 0
        %765 = vmatprep.subr.bf16.mxu0 0
        %766 = vmatpush1.bf16.msra.mxu0 0
        %767 = vmatprep.subr.bf16.mxu0 0
        %768 = vmatpush1.bf16.msra.mxu0 0
        %769 = vmatprep.subr.bf16.mxu0 0
        %770 = vmatpush1.bf16.msra.mxu0 0
        %771 = vmatprep.subr.bf16.mxu0 0
        %772 = vmatpush1.bf16.msra.mxu0 0
        %773 = vmatprep.subr.bf16.mxu0 0
        %774 = vmatpush1.bf16.msra.mxu0 0
        %775 = vmatprep.mubr.bf16.mxu0 0
        %776 = vmatmul.mubr.bf16.gmra.mrb[0].mxu0 %v738
        %v777 = vpop.f32.mrb[0].mxu0
        %v778 = vadd.f32 0.0, %v777
        %v779 = vpop.f32.mrb[0].mxu0
        %v780 = vpop.f32.mrb[0].mxu0
        %v781 = vpop.f32.mrb[0].mxu0
        %782 = vdwg.mxu0
        %v783 = vrcp.pop %v732
        %v784 = vmul.f32 %v778, %v783
        %785 = vrot.lane.b32.xlu0 %v562, 64
        %v786 = vpop.permute.xlu0 %785
        %787 = vrot.lane.b32.xlu0 %v563, 64
        %v788 = vpop.permute.xlu0 %787
        %v790 = vsel %vm565, %v786, 0
        %v793 = vsel %vm565, %v788, 0
        %795 = vmatprep.subr.bf16.mxu0 0
        %796 = vmatpush1.bf16.xpose.msra.mxu0 %v793
        %797 = vmatprep.subr.bf16.mxu0 0
        %798 = vmatpush1.bf16.xpose.msra.mxu0 0
        %799 = vmatprep.subr.bf16.mxu0 0
        %800 = vmatpush1.bf16.xpose.msra.mxu0 0
        %801 = vmatprep.subr.bf16.mxu0 0
        %802 = vmatpush1.bf16.xpose.msra.mxu0 0
        %803 = vmatprep.subr.bf16.mxu0 0
        %804 = vmatpush1.bf16.xpose.msra.mxu0 0
        %805 = vmatprep.subr.bf16.mxu0 0
        %806 = vmatpush1.bf16.xpose.msra.mxu0 0
        %807 = vmatprep.subr.bf16.mxu0 0
        %808 = vmatpush1.bf16.xpose.msra.mxu0 0
        %809 = vmatprep.subr.bf16.mxu0 0
        %810 = vmatpush1.bf16.xpose.msra.mxu0 0
        %811 = vmatprep.subr.bf16.mxu0 0
        %812 = vmatpush1.bf16.xpose.msra.mxu0 0
        %813 = vmatprep.subr.bf16.mxu0 0
        %814 = vmatpush1.bf16.xpose.msra.mxu0 0
        %815 = vmatprep.subr.bf16.mxu0 0
        %816 = vmatpush1.bf16.xpose.msra.mxu0 0
        %817 = vmatprep.subr.bf16.mxu0 0
        %818 = vmatpush1.bf16.xpose.msra.mxu0 0
        %819 = vmatprep.subr.bf16.mxu0 0
        %820 = vmatpush1.bf16.xpose.msra.mxu0 0
        %821 = vmatprep.subr.bf16.mxu0 0
        %822 = vmatpush1.bf16.xpose.msra.mxu0 0
        %823 = vmatprep.subr.bf16.mxu0 0
        %824 = vmatpush1.bf16.xpose.msra.mxu0 0
        %825 = vmatprep.subr.bf16.mxu0 0
        %826 = vmatpush1.bf16.xpose.msra.mxu0 0
        %827 = vmatprep.mubr.bf16.mxu0 0
        %828 = vmatmul.mubr.bf16.gmra.mrb[0].mxu0 %v790
        %v829 = vpop.f32.mrb[0].mxu0
        %v830 = vadd.f32 0.0, %v829
        %v831 = vpop.f32.mrb[0].mxu0
        %v832 = vpop.f32.mrb[0].mxu0
        %v833 = vpop.f32.mrb[0].mxu0
        %834 = vdwg.mxu0
        %v835 = vsel %vm612, %v830, -inf
        %836 = vmax.xlane.f32.xlu0 %v835
        %v837 = vpop.xlane.xlu0 %836
        %v838 = vsub.f32 %v830, %v837
        %v839 = vmul.f32 %v838, 1.442695
        %v840 = vpow.pop %v839
        %v841 = vsel %vm612, %v840, 0.0
        %842 = vadd.xlane.f32.xlu0 %v841
        %v843 = vpop.xlane.xlu0 %842
        %v844 = vpack.c.bf16 %v840, %v840
        %845 = vrot.lane.b32.xlu0 %v564, 64
        %v846 = vpop.permute.xlu0 %845
        %v848 = vsel %vm612, %v844, 0
        %v851 = vsel %vm626, %v846, 0
        %853 = vmatprep.subr.bf16.mxu0 0
        %854 = vmatpush1.bf16.msra.mxu0 %v851
        %855 = vmatprep.subr.bf16.mxu0 0
        %856 = vmatpush1.bf16.msra.mxu0 0
        %857 = vmatprep.subr.bf16.mxu0 0
        %858 = vmatpush1.bf16.msra.mxu0 0
        %859 = vmatprep.subr.bf16.mxu0 0
        %860 = vmatpush1.bf16.msra.mxu0 0
        %861 = vmatprep.subr.bf16.mxu0 0
        %862 = vmatpush1.bf16.msra.mxu0 0
        %863 = vmatprep.subr.bf16.mxu0 0
        %864 = vmatpush1.bf16.msra.mxu0 0
        %865 = vmatprep.subr.bf16.mxu0 0
        %866 = vmatpush1.bf16.msra.mxu0 0
        %867 = vmatprep.subr.bf16.mxu0 0
        %868 = vmatpush1.bf16.msra.mxu0 0
        %869 = vmatprep.subr.bf16.mxu0 0
        %870 = vmatpush1.bf16.msra.mxu0 0
        %871 = vmatprep.subr.bf16.mxu0 0
        %872 = vmatpush1.bf16.msra.mxu0 0
        %873 = vmatprep.subr.bf16.mxu0 0
        %874 = vmatpush1.bf16.msra.mxu0 0
        %875 = vmatprep.subr.bf16.mxu0 0
        %876 = vmatpush1.bf16.msra.mxu0 0
        %877 = vmatprep.subr.bf16.mxu0 0
        %878 = vmatpush1.bf16.msra.mxu0 0
        %879 = vmatprep.subr.bf16.mxu0 0
        %880 = vmatpush1.bf16.msra.mxu0 0
        %881 = vmatprep.subr.bf16.mxu0 0
        %882 = vmatpush1.bf16.msra.mxu0 0
        %883 = vmatprep.subr.bf16.mxu0 0
        %884 = vmatpush1.bf16.msra.mxu0 0
        %885 = vmatprep.mubr.bf16.mxu0 0
        %886 = vmatmul.mubr.bf16.gmra.mrb[0].mxu0 %v848
        %v887 = vpop.f32.mrb[0].mxu0
        %v888 = vadd.f32 0.0, %v887
        %v889 = vpop.f32.mrb[0].mxu0
        %v890 = vpop.f32.mrb[0].mxu0
        %v891 = vpop.f32.mrb[0].mxu0
        %892 = vdwg.mxu0
        %v893 = vrcp.pop %v843
        %v894 = vmul.f32 %v888, %v893
        %895 = vrot.lane.b32.xlu0 %v562, 32
        %v896 = vpop.permute.xlu0 %895
        %897 = vrot.lane.b32.xlu0 %v563, 32
        %v898 = vpop.permute.xlu0 %897
        %v900 = vsel %vm565, %v896, 0
        %v903 = vsel %vm565, %v898, 0
        %905 = vmatprep.subr.bf16.mxu0 0
        %906 = vmatpush1.bf16.xpose.msra.mxu0 %v903
        %907 = vmatprep.subr.bf16.mxu0 0
        %908 = vmatpush1.bf16.xpose.msra.mxu0 0
        %909 = vmatprep.subr.bf16.mxu0 0
        %910 = vmatpush1.bf16.xpose.msra.mxu0 0
        %911 = vmatprep.subr.bf16.mxu0 0
        %912 = vmatpush1.bf16.xpose.msra.mxu0 0
        %913 = vmatprep.subr.bf16.mxu0 0
        %914 = vmatpush1.bf16.xpose.msra.mxu0 0
        %915 = vmatprep.subr.bf16.mxu0 0
        %916 = vmatpush1.bf16.xpose.msra.mxu0 0
        %917 = vmatprep.subr.bf16.mxu0 0
        %918 = vmatpush1.bf16.xpose.msra.mxu0 0
        %919 = vmatprep.subr.bf16.mxu0 0
        %920 = vmatpush1.bf16.xpose.msra.mxu0 0
        %921 = vmatprep.subr.bf16.mxu0 0
        %922 = vmatpush1.bf16.xpose.msra.mxu0 0
        %923 = vmatprep.subr.bf16.mxu0 0
        %924 = vmatpush1.bf16.xpose.msra.mxu0 0
        %925 = vmatprep.subr.bf16.mxu0 0
        %926 = vmatpush1.bf16.xpose.msra.mxu0 0
        %927 = vmatprep.subr.bf16.mxu0 0
        %928 = vmatpush1.bf16.xpose.msra.mxu0 0
        %929 = vmatprep.subr.bf16.mxu0 0
        %930 = vmatpush1.bf16.xpose.msra.mxu0 0
        %931 = vmatprep.subr.bf16.mxu0 0
        %932 = vmatpush1.bf16.xpose.msra.mxu0 0
        %933 = vmatprep.subr.bf16.mxu0 0
        %934 = vmatpush1.bf16.xpose.msra.mxu0 0
        %935 = vmatprep.subr.bf16.mxu0 0
        %936 = vmatpush1.bf16.xpose.msra.mxu0 0
        %937 = vmatprep.mubr.bf16.mxu0 0
        %938 = vmatmul.mubr.bf16.gmra.mrb[0].mxu0 %v900
        %v939 = vpop.f32.mrb[0].mxu0
        %v940 = vadd.f32 0.0, %v939
        %v941 = vpop.f32.mrb[0].mxu0
        %v942 = vpop.f32.mrb[0].mxu0
        %v943 = vpop.f32.mrb[0].mxu0
        %944 = vdwg.mxu0
        %v945 = vsel %vm612, %v940, -inf
        %946 = vmax.xlane.f32.xlu0 %v945
        %v947 = vpop.xlane.xlu0 %946
        %v948 = vsub.f32 %v940, %v947
        %v949 = vmul.f32 %v948, 1.442695
        %v950 = vpow.pop %v949
        %v951 = vsel %vm612, %v950, 0.0
        %952 = vadd.xlane.f32.xlu0 %v951
        %v953 = vpop.xlane.xlu0 %952
        %v954 = vpack.c.bf16 %v950, %v950
        %955 = vrot.lane.b32.xlu0 %v564, 32
        %v956 = vpop.permute.xlu0 %955
        %v958 = vsel %vm612, %v954, 0
        %v961 = vsel %vm626, %v956, 0
        %963 = vmatprep.subr.bf16.mxu0 0
        %964 = vmatpush1.bf16.msra.mxu0 %v961
        %965 = vmatprep.subr.bf16.mxu0 0
        %966 = vmatpush1.bf16.msra.mxu0 0
        %967 = vmatprep.subr.bf16.mxu0 0
        %968 = vmatpush1.bf16.msra.mxu0 0
        %969 = vmatprep.subr.bf16.mxu0 0
        %970 = vmatpush1.bf16.msra.mxu0 0
        %971 = vmatprep.subr.bf16.mxu0 0
        %972 = vmatpush1.bf16.msra.mxu0 0
        %973 = vmatprep.subr.bf16.mxu0 0
        %974 = vmatpush1.bf16.msra.mxu0 0
        %975 = vmatprep.subr.bf16.mxu0 0
        %976 = vmatpush1.bf16.msra.mxu0 0
        %977 = vmatprep.subr.bf16.mxu0 0
        %978 = vmatpush1.bf16.msra.mxu0 0
        %979 = vmatprep.subr.bf16.mxu0 0
        %980 = vmatpush1.bf16.msra.mxu0 0
        %981 = vmatprep.subr.bf16.mxu0 0
        %982 = vmatpush1.bf16.msra.mxu0 0
        %983 = vmatprep.subr.bf16.mxu0 0
        %984 = vmatpush1.bf16.msra.mxu0 0
        %985 = vmatprep.subr.bf16.mxu0 0
        %986 = vmatpush1.bf16.msra.mxu0 0
        %987 = vmatprep.subr.bf16.mxu0 0
        %988 = vmatpush1.bf16.msra.mxu0 0
        %989 = vmatprep.subr.bf16.mxu0 0
        %990 = vmatpush1.bf16.msra.mxu0 0
        %991 = vmatprep.subr.bf16.mxu0 0
        %992 = vmatpush1.bf16.msra.mxu0 0
        %993 = vmatprep.subr.bf16.mxu0 0
        %994 = vmatpush1.bf16.msra.mxu0 0
        %995 = vmatprep.mubr.bf16.mxu0 0
        %996 = vmatmul.mubr.bf16.gmra.mrb[0].mxu0 %v958
        %v997 = vpop.f32.mrb[0].mxu0
        %v998 = vadd.f32 0.0, %v997
        %v999 = vpop.f32.mrb[0].mxu0
        %v1000 = vpop.f32.mrb[0].mxu0
        %v1001 = vpop.f32.mrb[0].mxu0
        %1002 = vdwg.mxu0
        %v1003 = vrcp.pop %v953
        %v1004 = vmul.f32 %v998, %v1003
        %1006 = vrot.lane.b32.xlu0 %v784, 32
        %v1007 = vpop.permute.xlu0 %1006
        %1010 = vrot.lane.b32.xlu0 %v894, 64
        %v1011 = vpop.permute.xlu0 %1010
        %1014 = vrot.lane.b32.xlu0 %v1004, 96
        %v1015 = vpop.permute.xlu0 %1014
        %v1017 = vsel %vm565, %v671, %v1007
        %vm1018 = vcmask 523264
        %v1019 = vsel %vm1018, %v1017, %v1011
        %vm1020 = vcmask 785408
        %v1021 = vsel %vm1020, %v1019, %v1015
        %v1022 = vpack.c.bf16 %v1021, %v1021
        %v1023 = vld [vmem:[%s3] sm:$0xf]
        %v1024 = vld [vmem:[%s3 + $0x4] sm:$0xf]
        %v1025 = vld [vmem:[%s3 + $0x8] sm:$0xf]
        %v1026 = vld [vmem:[%s3 + $0xc] sm:$0xf]
        %v1027 = vld [vmem:[%s3 + $0x10] sm:$0xf]
        %v1028 = vld [vmem:[%s3 + $0x14] sm:$0xf]
        %v1029 = vld [vmem:[%s3 + $0x18] sm:$0xf]
        %v1030 = vld [vmem:[%s3 + $0x1c] sm:$0xf]
        %v1031 = vld [vmem:[%s3 + $0x20] sm:$0xf]
        %v1032 = vld [vmem:[%s3 + $0x24] sm:$0xf]
        %v1033 = vld [vmem:[%s3 + $0x28] sm:$0xf]
        %v1034 = vld [vmem:[%s3 + $0x2c] sm:$0xf]
        %v1035 = vld [vmem:[%s3 + $0x30] sm:$0xf]
        %v1036 = vld [vmem:[%s3 + $0x34] sm:$0xf]
        %v1037 = vld [vmem:[%s3 + $0x38] sm:$0xf]
        %v1038 = vld [vmem:[%s3 + $0x3c] sm:$0xf]
        %v1039 = vld [vmem:[%s4] sm:$0x1]
        %v1040 = vunpack.c.l.bf16 %v1039
        %v1041 = vlaneseq
        %v1042 = vshrl.u32 %v1041, 7
        %v1043 = vsub.s32 0, %v1042
        %v1044 = vrot.slane %v1040, %v1043
        %v1061 = vunpack.c.l.b16 %v1023
        %v1062 = vunpack.c.l.b16 %v1024
        %v1063 = vunpack.c.l.b16 %v1025
        %v1064 = vunpack.c.l.b16 %v1026
        %v1065 = vunpack.c.l.b16 %v1027
        %v1066 = vunpack.c.l.b16 %v1028
        %v1067 = vunpack.c.l.b16 %v1029
        %v1068 = vunpack.c.l.b16 %v1030
        %v1069 = vunpack.c.l.b16 %v1031
        %v1070 = vunpack.c.l.b16 %v1032
        %v1071 = vunpack.c.l.b16 %v1033
        %v1072 = vunpack.c.l.b16 %v1034
        %v1073 = vunpack.c.l.b16 %v1035
        %v1074 = vunpack.c.l.b16 %v1036
        %v1075 = vunpack.c.l.b16 %v1037
        %v1076 = vunpack.c.l.b16 %v1038
        %v1077 = vpack.c.b16 %v1062, %v1061
        %v1078 = vpack.c.b16 %v1064, %v1063
        %v1079 = vpack.c.b16 %v1066, %v1065
        %v1080 = vpack.c.b16 %v1068, %v1067
        %v1081 = vpack.c.b16 %v1070, %v1069
        %v1082 = vpack.c.b16 %v1072, %v1071
        %v1083 = vpack.c.b16 %v1074, %v1073
        %v1084 = vpack.c.b16 %v1076, %v1075
        %1093 = vmatprep.subr.bf16.mxu0 0
        %1094 = vmatpush1.bf16.msra.mxu0 %v1077
        %1095 = vmatprep.subr.bf16.mxu0 0
        %1096 = vmatpush1.bf16.msra.mxu0 %v1078
        %1097 = vmatprep.subr.bf16.mxu0 0
        %1098 = vmatpush1.bf16.msra.mxu0 %v1079
        %1099 = vmatprep.subr.bf16.mxu0 0
        %1100 = vmatpush1.bf16.msra.mxu0 %v1080
        %1101 = vmatprep.subr.bf16.mxu0 0
        %1102 = vmatpush1.bf16.msra.mxu0 %v1081
        %1103 = vmatprep.subr.bf16.mxu0 0
        %1104 = vmatpush1.bf16.msra.mxu0 %v1082
        %1105 = vmatprep.subr.bf16.mxu0 0
        %1106 = vmatpush1.bf16.msra.mxu0 %v1083
        %1107 = vmatprep.subr.bf16.mxu0 0
        %1108 = vmatpush1.bf16.msra.mxu0 %v1084
        %1109 = vmatprep.subr.bf16.mxu0 0
        %1110 = vmatpush1.bf16.msra.mxu0 0
        %1111 = vmatprep.subr.bf16.mxu0 0
        %1112 = vmatpush1.bf16.msra.mxu0 0
        %1113 = vmatprep.subr.bf16.mxu0 0
        %1114 = vmatpush1.bf16.msra.mxu0 0
        %1115 = vmatprep.subr.bf16.mxu0 0
        %1116 = vmatpush1.bf16.msra.mxu0 0
        %1117 = vmatprep.subr.bf16.mxu0 0
        %1118 = vmatpush1.bf16.msra.mxu0 0
        %1119 = vmatprep.subr.bf16.mxu0 0
        %1120 = vmatpush1.bf16.msra.mxu0 0
        %1121 = vmatprep.subr.bf16.mxu0 0
        %1122 = vmatpush1.bf16.msra.mxu0 0
        %1123 = vmatprep.subr.bf16.mxu0 0
        %1124 = vmatpush1.bf16.msra.mxu0 0
        %1125 = vmatprep.mubr.bf16.mxu0 0
        %1126 = vmatmul.mubr.bf16.gmra.mrb[0].mxu0 %v1022
        %v1127 = vpop.f32.mrb[0].mxu0
        %v1128 = vadd.f32 %v1044, %v1127
        %v1129 = vpop.f32.mrb[0].mxu0
        %v1130 = vpop.f32.mrb[0].mxu0
        %v1131 = vpop.f32.mrb[0].mxu0
        %1132 = vdwg.mxu0
        %v1133 = vunpack.c.l.bf16 %v290
        %v1134 = vadd.f32 %v1128, %v1133
        %1135 = vadd.xlane.f32.xlu0 %v1134
        %v1136 = vpop.xlane.xlu0 %1135
        %v1137 = vrcp.pop 128.0
        %v1138 = vmul.f32 %v1136, %v1137
        %v1139 = vsub.f32 %v1134, %v1138
        %v1140 = vmul.f32 %v1139, %v1139
        %1141 = vadd.xlane.f32.xlu0 %v1140
        %v1142 = vpop.xlane.xlu0 %1141
        %v1143 = vmul.f32 %v1142, %v1137
        %v1144 = vadd.f32 %v1143, 1e-05
        %v1145 = vrsqrt.pop %v1144
        %v1146 = vmul.f32 %v1139, %v1145
        %v1147 = vld [vmem:[%s5] sm:$0x1]
        %v1149 = vlaneseq
        %v1150 = vshrl.u32 %v1149, 7
        %v1151 = vsub.s32 0, %v1150
        %v1152 = vrot.slane %v1147, %v1151
        %v1154 = vmul.f32 %v1146, %v1152
        %v1155 = vld [vmem:[%s6] sm:$0x1]
        %v1157 = vlaneseq
        %v1158 = vshrl.u32 %v1157, 7
        %v1159 = vsub.s32 0, %v1158
        %v1160 = vrot.slane %v1155, %v1159
        %v1162 = vadd.f32 %v1154, %v1160
        %v1163 = vpack.c.bf16 %v1162, %v1162
        %1164 = vst [vmem:[%s288] sm:$0xf] %v1163
        %p1165 = scmp.lt.s32.totalorder %s19, 1
        %s1166 = scalar_select %p1165, %s19, 1
        %s1167 = smul.addr %s1166, 4
        %s1168 = scalar_lea.vmem %s7, %s1167
        // Predicated region
        $region53: #{transformer_forward.7} parent=47 // pred_check
          %p1169 = pneg %p189
        $region54: #{transformer_forward.7} parent=47 // pred_check_branch
          %1171 = sbr.rel (%p1169) target = $region56
        $region55: #{transformer_forward.7} parent=47 // pred_region
          _
        $region56: #{transformer_forward.7} parent=47 // pred_fallthru
          _
      $region48: #{transformer_forward.7} parent=5 // pred_fallthru
        _
      %p1172 = scmp.le.s32.totalorder 2, %s14
      // Predicated region
      $region57: #{transformer_forward.7} parent=5 // pred_check
        %p1173 = pneg %p1172
      $region58: #{transformer_forward.7} parent=5 // pred_check_branch
        %1175 = sbr.rel (%p1173) target = $region60
      $region59: #{transformer_forward.7} parent=5 // pred_region
        %s1176 = ssub.s32 %s14, 2
        // Predicated region
        $region61: #{transformer_forward.7} parent=59 // pred_check
          %p1177 = pneg %p195
        $region62: #{transformer_forward.7} parent=59 // pred_check_branch
          %1179 = sbr.rel (%p1177) target = $region64
        $region63: #{transformer_forward.7} parent=59 // pred_region
          %p1180 = scmp.lt.s32.totalorder %s20, 1
          %s1181 = scalar_select %p1180, %s20, 1
          %s1182 = smul.addr %s1181, 4
          %s1183 = scalar_lea.vmem %s7, %s1182
        $region64: #{transformer_forward.7} parent=59 // pred_fallthru
          _
      $region60: #{transformer_forward.7} parent=5 // pred_fallthru
        _
    $region6: #{transformer_forward.7} parent=1 // loop_footer
      %s18 = sadd.s32 1, %s14
    $region7: #{transformer_forward.7} parent=1 // loop_footer_branch
      %13 = sbr.rel target = $region3
    $region8: #{transformer_forward.7} parent=1 // loop_exit
      _
    %1184 = vsyncpa [#allocation3], 1
    %s1185 = scalar_lea.sflag [#allocation3], 1
    %1186 = vsyncpa %s1185, 1

// kernel: transformer_forward.10
$region0: #{transformer_forward.10}
  #allocation0 [shape = 'u32[]', space=smem, size = 0x4, offset = 0x4, fixed_abs, tag = 'smem constant byte address 0x4 - core index']
  #allocation1 [shape = 'u32[144,128]{1,0:T(1,128)}', space=vmem, size = 0x12000, scoped, tag = 'internal scratch']
  %s0 = inlined_call_operand.vmem [shape: bf16[2,8,128], index: 0, kind: input, shape index: {}]
  %s1 = inlined_call_operand.vmem [shape: bf16[128,384], index: 1, kind: input, shape index: {}]
  %s2 = inlined_call_operand.vmem [shape: bf16[1,384], index: 2, kind: input, shape index: {}]
  %s3 = inlined_call_operand.vmem [shape: bf16[128,128], index: 3, kind: input, shape index: {}]
  %s4 = inlined_call_operand.vmem [shape: bf16[1,128], index: 4, kind: input, shape index: {}]
  %s5 = inlined_call_operand.vmem [shape: f32[1,128], index: 5, kind: input, shape index: {}]
  %s6 = inlined_call_operand.vmem [shape: f32[1,128], index: 6, kind: input, shape index: {}]
  %s7 = inlined_call_operand.vmem [shape: bf16[2,8,128], index: 7, kind: output, shape index: {}]
  %s8 = sld [smem:[#allocation0]]
  $region61: #{transformer_forward.10} parent=0
    _
  %s10 = ssub.s32 1, %s8
  %s11 = scalar_select 0, %s10, %s8
  loop: start=0, step=1, limit=4
  $region2: #{transformer_forward.10} parent=0 // loop_pre_header
    _
  $region3: #{transformer_forward.10} parent=0 // loop_header
    %s13 = sphi 0, %s17
    %p14 = scmp.ge.s32.totalorder %s13, 4
    %s23 = sphi 0, %s25
    %s26 = sphi 0, %s23
    %s27 = sphi 0, %s26
    %s43 = sphi 0, %s27
    %s47 = sphi 0, %s47
    %s49 = sphi 0, %s47
    %s50 = sphi 0, %s49
    %s64 = sphi 0, %s50
    %s68 = sphi 0, %s68
    %s70 = sphi 0, %s68
    %s71 = sphi 0, %s70
    %s85 = sphi 0, %s71
    %s89 = sphi 0, %s89
    %s91 = sphi 0, %s89
    %s92 = sphi 0, %s91
    %s106 = sphi 0, %s92
    %s110 = sphi 0, %s110
    %s112 = sphi 0, %s110
    %s113 = sphi 0, %s112
    %s127 = sphi 0, %s113
    %s131 = sphi 0, %s131
    %s133 = sphi 0, %s131
    %s134 = sphi 0, %s133
    %s148 = sphi 0, %s134
    %s152 = sphi 0, %s152
    %s154 = sphi 0, %s152
    %s155 = sphi 0, %s154
    %s169 = sphi 0, %s155
    %s175 = sphi 0, %s177
    %s178 = sphi 0, %s175
    %s179 = sphi 0, %s178
    %s195 = sphi 0, %s179
  $region4: #{transformer_forward.10} parent=0 // loop_header_branch
    %16 = sbr.rel (%p14) target = $region8
  $region5: #{transformer_forward.10} parent=0 // loop_body
    %s18 = ssub.s32 %s13, 1
    %s19 = ssub.s32 %s13, 2
    %s20 = sadd.s32 %s13, 1
    %s21 = ssub.s32 %s13, %s20
    %p22 = scmp.eq.s32.totalorder %s21, 0
    %s24 = sadd.s32 %s23, 1
    %s25 = scalar_select %p22, %s23, %s24
    %p28 = pneg %p22
    %p29 = scmp.eq.s32.totalorder %s13, 1
    %p30 = por %p28, %p29
    %p31 = scmp.ne.s32.totalorder %s23, %s26
    %p32 = scmp.eq.s32.totalorder %s13, 0
    %p33 = por %p31, %p32
    %p34 = scmp.ne.s32.totalorder %s23, %s26
    %p35 = scmp.eq.s32.totalorder %s18, 1
    %p36 = por %p34, %p35
    %p37 = scmp.ne.s32.totalorder %s26, %s27
    %p38 = scmp.eq.s32.totalorder %s18, 0
    %p39 = por %p37, %p38
    %p40 = scmp.ne.s32.totalorder %s26, %s27
    %p41 = scmp.eq.s32.totalorder %s19, 1
    %p42 = por %p40, %p41
    %p44 = scmp.ne.s32.totalorder %s27, %s43
    %p45 = scmp.eq.s32.totalorder %s19, 0
    %p46 = por %p44, %p45
    %s48 = sadd.s32 %s47, 1
    %p51 = scmp.eq.s32.totalorder %s13, 1
    %p52 = scmp.ne.s32.totalorder %s47, %s49
    %p53 = scmp.eq.s32.totalorder %s13, 0
    %p54 = por %p52, %p53
    %p55 = scmp.ne.s32.totalorder %s47, %s49
    %p56 = scmp.eq.s32.totalorder %s18, 1
    %p57 = por %p55, %p56
    %p58 = scmp.ne.s32.totalorder %s49, %s50
    %p59 = scmp.eq.s32.totalorder %s18, 0
    %p60 = por %p58, %p59
    %p61 = scmp.ne.s32.totalorder %s49, %s50
    %p62 = scmp.eq.s32.totalorder %s19, 1
    %p63 = por %p61, %p62
    %p65 = scmp.ne.s32.totalorder %s50, %s64
    %p66 = scmp.eq.s32.totalorder %s19, 0
    %p67 = por %p65, %p66
    %s69 = sadd.s32 %s68, 1
    %p72 = scmp.eq.s32.totalorder %s13, 1
    %p73 = scmp.ne.s32.totalorder %s68, %s70
    %p74 = scmp.eq.s32.totalorder %s13, 0
    %p75 = por %p73, %p74
    %p76 = scmp.ne.s32.totalorder %s68, %s70
    %p77 = scmp.eq.s32.totalorder %s18, 1
    %p78 = por %p76, %p77
    %p79 = scmp.ne.s32.totalorder %s70, %s71
    %p80 = scmp.eq.s32.totalorder %s18, 0
    %p81 = por %p79, %p80
    %p82 = scmp.ne.s32.totalorder %s70, %s71
    %p83 = scmp.eq.s32.totalorder %s19, 1
    %p84 = por %p82, %p83
    %p86 = scmp.ne.s32.totalorder %s71, %s85
    %p87 = scmp.eq.s32.totalorder %s19, 0
    %p88 = por %p86, %p87
    %s90 = sadd.s32 %s89, 1
    %p93 = scmp.eq.s32.totalorder %s13, 1
    %p94 = scmp.ne.s32.totalorder %s89, %s91
    %p95 = scmp.eq.s32.totalorder %s13, 0
    %p96 = por %p94, %p95
    %p97 = scmp.ne.s32.totalorder %s89, %s91
    %p98 = scmp.eq.s32.totalorder %s18, 1
    %p99 = por %p97, %p98
    %p100 = scmp.ne.s32.totalorder %s91, %s92
    %p101 = scmp.eq.s32.totalorder %s18, 0
    %p102 = por %p100, %p101
    %p103 = scmp.ne.s32.totalorder %s91, %s92
    %p104 = scmp.eq.s32.totalorder %s19, 1
    %p105 = por %p103, %p104
    %p107 = scmp.ne.s32.totalorder %s92, %s106
    %p108 = scmp.eq.s32.totalorder %s19, 0
    %p109 = por %p107, %p108
    %s111 = sadd.s32 %s110, 1
    %p114 = scmp.eq.s32.totalorder %s13, 1
    %p115 = scmp.ne.s32.totalorder %s110, %s112
    %p116 = scmp.eq.s32.totalorder %s13, 0
    %p117 = por %p115, %p116
    %p118 = scmp.ne.s32.totalorder %s110, %s112
    %p119 = scmp.eq.s32.totalorder %s18, 1
    %p120 = por %p118, %p119
    %p121 = scmp.ne.s32.totalorder %s112, %s113
    %p122 = scmp.eq.s32.totalorder %s18, 0
    %p123 = por %p121, %p122
    %p124 = scmp.ne.s32.totalorder %s112, %s113
    %p125 = scmp.eq.s32.totalorder %s19, 1
    %p126 = por %p124, %p125
    %p128 = scmp.ne.s32.totalorder %s113, %s127
    %p129 = scmp.eq.s32.totalorder %s19, 0
    %p130 = por %p128, %p129
    %s132 = sadd.s32 %s131, 1
    %p135 = scmp.eq.s32.totalorder %s13, 1
    %p136 = scmp.ne.s32.totalorder %s131, %s133
    %p137 = scmp.eq.s32.totalorder %s13, 0
    %p138 = por %p136, %p137
    %p139 = scmp.ne.s32.totalorder %s131, %s133
    %p140 = scmp.eq.s32.totalorder %s18, 1
    %p141 = por %p139, %p140
    %p142 = scmp.ne.s32.totalorder %s133, %s134
    %p143 = scmp.eq.s32.totalorder %s18, 0
    %p144 = por %p142, %p143
    %p145 = scmp.ne.s32.totalorder %s133, %s134
    %p146 = scmp.eq.s32.totalorder %s19, 1
    %p147 = por %p145, %p146
    %p149 = scmp.ne.s32.totalorder %s134, %s148
    %p150 = scmp.eq.s32.totalorder %s19, 0
    %p151 = por %p149, %p150
    %s153 = sadd.s32 %s152, 1
    %p156 = scmp.eq.s32.totalorder %s13, 1
    %p157 = scmp.ne.s32.totalorder %s152, %s154
    %p158 = scmp.eq.s32.totalorder %s13, 0
    %p159 = por %p157, %p158
    %p160 = scmp.ne.s32.totalorder %s152, %s154
    %p161 = scmp.eq.s32.totalorder %s18, 1
    %p162 = por %p160, %p161
    %p163 = scmp.ne.s32.totalorder %s154, %s155
    %p164 = scmp.eq.s32.totalorder %s18, 0
    %p165 = por %p163, %p164
    %p166 = scmp.ne.s32.totalorder %s154, %s155
    %p167 = scmp.eq.s32.totalorder %s19, 1
    %p168 = por %p166, %p167
    %p170 = scmp.ne.s32.totalorder %s155, %s169
    %p171 = scmp.eq.s32.totalorder %s19, 0
    %p172 = por %p170, %p171
    %s173 = ssub.s32 %s13, %s20
    %p174 = scmp.eq.s32.totalorder %s173, 0
    %s176 = sadd.s32 %s175, 1
    %s177 = scalar_select %p174, %s175, %s176
    %p180 = pneg %p174
    %p181 = scmp.eq.s32.totalorder %s13, 1
    %p182 = por %p180, %p181
    %p183 = scmp.ne.s32.totalorder %s175, %s178
    %p184 = scmp.eq.s32.totalorder %s13, 0
    %p185 = por %p183, %p184
    %p186 = scmp.ne.s32.totalorder %s175, %s178
    %p187 = scmp.eq.s32.totalorder %s18, 1
    %p188 = por %p186, %p187
    %p189 = scmp.ne.s32.totalorder %s178, %s179
    %p190 = scmp.eq.s32.totalorder %s18, 0
    %p191 = por %p189, %p190
    %p192 = scmp.ne.s32.totalorder %s178, %s179
    %p193 = scmp.eq.s32.totalorder %s19, 1
    %p194 = por %p192, %p193
    %p196 = scmp.ne.s32.totalorder %s179, %s195
    %p197 = scmp.eq.s32.totalorder %s19, 0
    %p198 = por %p196, %p197
    %p199 = scmp.le.s32.totalorder 1, %s13
    %p200 = scmp.lt.s32.totalorder %s13, 3
    %p201 = pnand %p199, %p200
    %p202 = pneg %p201
    // Predicated region
    $region9: #{transformer_forward.10} parent=5 // pred_check
      _
    $region10: #{transformer_forward.10} parent=5 // pred_check_branch
      %204 = sbr.rel (%p201) target = $region12
    $region11: #{transformer_forward.10} parent=5 // pred_region
      %s205 = ssub.s32 %s13, 1
      // Predicated region
      $region13: #{transformer_forward.10} parent=11 // pred_check
        %p206 = pneg %p60
      $region14: #{transformer_forward.10} parent=11 // pred_check_branch
        %208 = sbr.rel (%p206) target = $region16
      $region15: #{transformer_forward.10} parent=11 // pred_region
        _
      $region16: #{transformer_forward.10} parent=11 // pred_fallthru
        _
      // Predicated region
      $region17: #{transformer_forward.10} parent=11 // pred_check
        %p209 = pneg %p81
      $region18: #{transformer_forward.10} parent=11 // pred_check_branch
        %211 = sbr.rel (%p209) target = $region20
      $region19: #{transformer_forward.10} parent=11 // pred_region
        _
      $region20: #{transformer_forward.10} parent=11 // pred_fallthru
        _
      // Predicated region
      $region21: #{transformer_forward.10} parent=11 // pred_check
        %p212 = pneg %p102
      $region22: #{transformer_forward.10} parent=11 // pred_check_branch
        %214 = sbr.rel (%p212) target = $region24
      $region23: #{transformer_forward.10} parent=11 // pred_region
        _
      $region24: #{transformer_forward.10} parent=11 // pred_fallthru
        _
      // Predicated region
      $region25: #{transformer_forward.10} parent=11 // pred_check
        %p215 = pneg %p123
      $region26: #{transformer_forward.10} parent=11 // pred_check_branch
        %217 = sbr.rel (%p215) target = $region28
      $region27: #{transformer_forward.10} parent=11 // pred_region
        _
      $region28: #{transformer_forward.10} parent=11 // pred_fallthru
        _
      // Predicated region
      $region29: #{transformer_forward.10} parent=11 // pred_check
        %p218 = pneg %p144
      $region30: #{transformer_forward.10} parent=11 // pred_check_branch
        %220 = sbr.rel (%p218) target = $region32
      $region31: #{transformer_forward.10} parent=11 // pred_region
        _
      $region32: #{transformer_forward.10} parent=11 // pred_fallthru
        _
      // Predicated region
      $region33: #{transformer_forward.10} parent=11 // pred_check
        %p221 = pneg %p165
      $region34: #{transformer_forward.10} parent=11 // pred_check_branch
        %223 = sbr.rel (%p221) target = $region36
      $region35: #{transformer_forward.10} parent=11 // pred_region
        _
      $region36: #{transformer_forward.10} parent=11 // pred_fallthru
        _
    $region12: #{transformer_forward.10} parent=5 // pred_fallthru
      _
    %p224 = scmp.lt.s32.totalorder %s13, 2
    // Predicated region
    $region37: #{transformer_forward.10} parent=5 // pred_check
      %p225 = pneg %p224
    $region38: #{transformer_forward.10} parent=5 // pred_check_branch
      %227 = sbr.rel (%p225) target = $region40
    $region39: #{transformer_forward.10} parent=5 // pred_region
      // Predicated region
      $region41: #{transformer_forward.10} parent=39 // pred_check
        %p228 = pneg %p33
      $region42: #{transformer_forward.10} parent=39 // pred_check_branch
        %230 = sbr.rel (%p228) target = $region44
      $region43: #{transformer_forward.10} parent=39 // pred_region
        %p231 = scmp.lt.s32.totalorder %s13, 1
        %s232 = scalar_select %p231, %s13, 1
        %s233 = smul.addr %s232, 4
        %s234 = scalar_lea.vmem %s0, %s233
      $region44: #{transformer_forward.10} parent=39 // pred_fallthru
        _
    $region40: #{transformer_forward.10} parent=5 // pred_fallthru
      _
    %p235 = scmp.le.s32.totalorder 1, %s13
    %p236 = scmp.lt.s32.totalorder %s13, 3
    %p237 = pnand %p235, %p236
    %p238 = pneg %p237
    // Predicated region
    $region45: #{transformer_forward.10} parent=5 // pred_check
      _
    $region46: #{transformer_forward.10} parent=5 // pred_check_branch
      %240 = sbr.rel (%p237) target = $region48
    $region47: #{transformer_forward.10} parent=5 // pred_region
      %s241 = ssub.s32 %s13, 1
      %p242 = scmp.lt.s32.totalorder %s18, 1
      %s243 = scalar_select %p242, %s18, 1
      %s244 = smul.addr %s243, 4
      %s245 = scalar_lea.vmem %s0, %s244
      %p246 = pneg %p39
      %p247 = pneg %p36
      %p248 = pneg %p60
      %p249 = pneg %p57
      %p250 = pneg %p81
      %p251 = pneg %p78
      %p252 = pneg %p102
      %p253 = pneg %p99
      %p254 = pneg %p123
      %p255 = pneg %p120
      %p256 = pneg %p144
      %p257 = pneg %p141
      %p258 = pneg %p165
      %p259 = pneg %p162
      %p260 = pneg %p191
      %p261 = pneg %p188
      %p262 = scmp.lt.s32.totalorder %s18, 1
      %s263 = scalar_select %p262, %s18, 1
      %s264 = smul.addr %s263, 4
      %s265 = scalar_lea.vmem %s7, %s264
      %p266 = scmp.lt.s32.totalorder %s18, 1
      %s267 = scalar_select %p266, %s18, 1
      %s268 = smul.addr %s267, 4
      %s269 = scalar_lea.vmem %s0, %s268
      %p270 = scmp.lt.s32.totalorder %s18, 1
      %s271 = scalar_select %p270, %s18, 1
      %s272 = smul.addr %s271, 4
      %s273 = scalar_lea.vmem %s7, %s272
      %v275 = vld [vmem:[%s269] sm:$0xf]
      %v276 = vld [vmem:[%s1] sm:$0xff]
      %v277 = vld [vmem:[%s1 + $0x8] sm:$0xf]
      %v278 = vld [vmem:[%s1 + $0xc] sm:$0xff]
      %v279 = vld [vmem:[%s1 + $0x14] sm:$0xf]
      %v280 = vld [vmem:[%s1 + $0x18] sm:$0xff]
      %v281 = vld [vmem:[%s1 + $0x20] sm:$0xf]
      %v282 = vld [vmem:[%s1 + $0x24] sm:$0xff]
      %v283 = vld [vmem:[%s1 + $0x2c] sm:$0xf]
      %v284 = vld [vmem:[%s1 + $0x30] sm:$0xff]
      %v285 = vld [vmem:[%s1 + $0x38] sm:$0xf]
      %v286 = vld [vmem:[%s1 + $0x3c] sm:$0xff]
      %v287 = vld [vmem:[%s1 + $0x44] sm:$0xf]
      %v288 = vld [vmem:[%s1 + $0x48] sm:$0xff]
      %v289 = vld [vmem:[%s1 + $0x50] sm:$0xf]
      %v290 = vld [vmem:[%s1 + $0x54] sm:$0xff]
      %v291 = vld [vmem:[%s1 + $0x5c] sm:$0xf]
      %v292 = vld [vmem:[%s1 + $0x60] sm:$0xff]
      %v293 = vld [vmem:[%s1 + $0x68] sm:$0xf]
      %v294 = vld [vmem:[%s1 + $0x6c] sm:$0xff]
      %v295 = vld [vmem:[%s1 + $0x74] sm:$0xf]
      %v296 = vld [vmem:[%s1 + $0x78] sm:$0xff]
      %v297 = vld [vmem:[%s1 + $0x80] sm:$0xf]
      %v298 = vld [vmem:[%s1 + $0x84] sm:$0xff]
      %v299 = vld [vmem:[%s1 + $0x8c] sm:$0xf]
      %v300 = vld [vmem:[%s1 + $0x90] sm:$0xff]
      %v301 = vld [vmem:[%s1 + $0x98] sm:$0xf]
      %v302 = vld [vmem:[%s1 + $0x9c] sm:$0xff]
      %v303 = vld [vmem:[%s1 + $0xa4] sm:$0xf]
      %v304 = vld [vmem:[%s1 + $0xa8] sm:$0xff]
      %v305 = vld [vmem:[%s1 + $0xb0] sm:$0xf]
      %v306 = vld [vmem:[%s1 + $0xb4] sm:$0xff]
      %v307 = vld [vmem:[%s1 + $0xbc] sm:$0xf]
      %v308 = vld [vmem:[%s2] sm:$0x7]
      %v309 = vunpack.c.l.bf16 %v308
      %v311 = vlaneseq
      %v312 = vshrl.u32 %v311, 7
      %v313 = vsub.s32 0, %v312
      %v314 = vrot.slane %v309, %v313
      %v315 = vlaneseq
      %v316 = vshrl.u32 %v315, 7
      %v317 = vsub.s32 2, %v316
      %v318 = vrot.slane %v309, %v317
      %v319 = vlaneseq
      %v320 = vshrl.u32 %v319, 7
      %v321 = vsub.s32 4, %v320
      %v322 = vrot.slane %v309, %v321
      %v326 = vlaneseq
      %v327 = vshrl.u32 %v326, 7
      %v328 = vsub.s32 0, %v327
      %v329 = vrot.slane %v314, %v328
      %v330 = vlaneseq
      %v331 = vshrl.u32 %v330, 7
      %v332 = vsub.s32 0, %v331
      %v333 = vrot.slane %v318, %v332
      %v334 = vlaneseq
      %v335 = vshrl.u32 %v334, 7
      %v336 = vsub.s32 0, %v335
      %v337 = vrot.slane %v322, %v336
      %v370 = vunpack.c.l.b16 %v276
      %v371 = vunpack.c.h.b16 %v276
      %v372 = vunpack.c.l.b16 %v277
      %v373 = vunpack.c.l.b16 %v278
      %v374 = vunpack.c.h.b16 %v278
      %v375 = vunpack.c.l.b16 %v279
      %v376 = vunpack.c.l.b16 %v280
      %v377 = vunpack.c.h.b16 %v280
      %v378 = vunpack.c.l.b16 %v281
      %v379 = vunpack.c.l.b16 %v282
      %v380 = vunpack.c.h.b16 %v282
      %v381 = vunpack.c.l.b16 %v283
      %v382 = vunpack.c.l.b16 %v284
      %v383 = vunpack.c.h.b16 %v284
      %v384 = vunpack.c.l.b16 %v285
      %v385 = vunpack.c.l.b16 %v286
      %v386 = vunpack.c.h.b16 %v286
      %v387 = vunpack.c.l.b16 %v287
      %v388 = vunpack.c.l.b16 %v288
      %v389 = vunpack.c.h.b16 %v288
      %v390 = vunpack.c.l.b16 %v289
      %v391 = vunpack.c.l.b16 %v290
      %v392 = vunpack.c.h.b16 %v290
      %v393 = vunpack.c.l.b16 %v291
      %v394 = vunpack.c.l.b16 %v292
      %v395 = vunpack.c.h.b16 %v292
      %v396 = vunpack.c.l.b16 %v293
      %v397 = vunpack.c.l.b16 %v294
      %v398 = vunpack.c.h.b16 %v294
      %v399 = vunpack.c.l.b16 %v295
      %v400 = vunpack.c.l.b16 %v296
      %v401 = vunpack.c.h.b16 %v296
      %v402 = vunpack.c.l.b16 %v297
      %v403 = vunpack.c.l.b16 %v298
      %v404 = vunpack.c.h.b16 %v298
      %v405 = vunpack.c.l.b16 %v299
      %v406 = vunpack.c.l.b16 %v300
      %v407 = vunpack.c.h.b16 %v300
      %v408 = vunpack.c.l.b16 %v301
      %v409 = vunpack.c.l.b16 %v302
      %v410 = vunpack.c.h.b16 %v302
      %v411 = vunpack.c.l.b16 %v303
      %v412 = vunpack.c.l.b16 %v304
      %v413 = vunpack.c.h.b16 %v304
      %v414 = vunpack.c.l.b16 %v305
      %v415 = vunpack.c.l.b16 %v306
      %v416 = vunpack.c.h.b16 %v306
      %v417 = vunpack.c.l.b16 %v307
      %v418 = vpack.c.b16 %v373, %v370
      %v419 = vpack.c.b16 %v374, %v371
      %v420 = vpack.c.b16 %v375, %v372
      %v421 = vpack.c.b16 %v379, %v376
      %v422 = vpack.c.b16 %v380, %v377
      %v423 = vpack.c.b16 %v381, %v378
      %v424 = vpack.c.b16 %v385, %v382
      %v425 = vpack.c.b16 %v386, %v383
      %v426 = vpack.c.b16 %v387, %v384
      %v427 = vpack.c.b16 %v391, %v388
      %v428 = vpack.c.b16 %v392, %v389
      %v429 = vpack.c.b16 %v393, %v390
      %v430 = vpack.c.b16 %v397, %v394
      %v431 = vpack.c.b16 %v398, %v395
      %v432 = vpack.c.b16 %v399, %v396
      %v433 = vpack.c.b16 %v403, %v400
      %v434 = vpack.c.b16 %v404, %v401
      %v435 = vpack.c.b16 %v405, %v402
      %v436 = vpack.c.b16 %v409, %v406
      %v437 = vpack.c.b16 %v410, %v407
      %v438 = vpack.c.b16 %v411, %v408
      %v439 = vpack.c.b16 %v415, %v412
      %v440 = vpack.c.b16 %v416, %v413
      %v441 = vpack.c.b16 %v417, %v414
      %466 = vmatprep.subr.bf16.mxu0 %v419
      %467 = vmatpush1.bf16.msra.mxu0 %v418
      %468 = vmatprep.subr.bf16.mxu0 %v422
      %469 = vmatpush1.bf16.msra.mxu0 %v421
      %470 = vmatprep.subr.bf16.mxu0 %v425
      %471 = vmatpush1.bf16.msra.mxu0 %v424
      %472 = vmatprep.subr.bf16.mxu0 %v428
      %473 = vmatpush1.bf16.msra.mxu0 %v427
      %474 = vmatprep.subr.bf16.mxu0 %v431
      %475 = vmatpush1.bf16.msra.mxu0 %v430
      %476 = vmatprep.subr.bf16.mxu0 %v434
      %477 = vmatpush1.bf16.msra.mxu0 %v433
      %478 = vmatprep.subr.bf16.mxu0 %v437
      %479 = vmatpush1.bf16.msra.mxu0 %v436
      %480 = vmatprep.subr.bf16.mxu0 %v440
      %481 = vmatpush1.bf16.msra.mxu0 %v439
      %482 = vmatprep.subr.bf16.mxu0 0
      %483 = vmatpush1.bf16.msra.mxu0 0
      %484 = vmatprep.subr.bf16.mxu0 0
      %485 = vmatpush1.bf16.msra.mxu0 0
      %486 = vmatprep.subr.bf16.mxu0 0
      %487 = vmatpush1.bf16.msra.mxu0 0
      %488 = vmatprep.subr.bf16.mxu0 0
      %489 = vmatpush1.bf16.msra.mxu0 0
      %490 = vmatprep.subr.bf16.mxu0 0
      %491 = vmatpush1.bf16.msra.mxu0 0
      %492 = vmatprep.subr.bf16.mxu0 0
      %493 = vmatpush1.bf16.msra.mxu0 0
      %494 = vmatprep.subr.bf16.mxu0 0
      %495 = vmatpush1.bf16.msra.mxu0 0
      %496 = vmatprep.subr.bf16.mxu0 0
      %497 = vmatpush1.bf16.msra.mxu0 0
      %498 = vmatprep.mubr.bf16.mxu0 0
      %499 = vmatmul.mubr.bf16.gmra.mrb[0].mxu0 %v275
      %v500 = vpop.f32.mrb[0].mxu0
      %v501 = vadd.f32 %v329, %v500
      %v502 = vpop.f32.mrb[0].mxu0
      %v503 = vadd.f32 %v333, %v502
      %v504 = vpop.f32.mrb[0].mxu0
      %v505 = vpop.f32.mrb[0].mxu0
      %506 = vdwg.mxu0
      %507 = vmatprep.subr.bf16.mxu0 0
      %508 = vmatpush1.bf16.msra.mxu0 %v420
      %509 = vmatprep.subr.bf16.mxu0 0
      %510 = vmatpush1.bf16.msra.mxu0 %v423
      %511 = vmatprep.subr.bf16.mxu0 0
      %512 = vmatpush1.bf16.msra.mxu0 %v426
      %513 = vmatprep.subr.bf16.mxu0 0
      %514 = vmatpush1.bf16.msra.mxu0 %v429
      %515 = vmatprep.subr.bf16.mxu0 0
      %516 = vmatpush1.bf16.msra.mxu0 %v432
      %517 = vmatprep.subr.bf16.mxu0 0
      %518 = vmatpush1.bf16.msra.mxu0 %v435
      %519 = vmatprep.subr.bf16.mxu0 0
      %520 = vmatpush1.bf16.msra.mxu0 %v438
      %521 = vmatprep.subr.bf16.mxu0 0
      %522 = vmatpush1.bf16.msra.mxu0 %v441
      %523 = vmatprep.subr.bf16.mxu0 0
      %524 = vmatpush1.bf16.msra.mxu0 0
      %525 = vmatprep.subr.bf16.mxu0 0
      %526 = vmatpush1.bf16.msra.mxu0 0
      %527 = vmatprep.subr.bf16.mxu0 0
      %528 = vmatpush1.bf16.msra.mxu0 0
      %529 = vmatprep.subr.bf16.mxu0 0
      %530 = vmatpush1.bf16.msra.mxu0 0
      %531 = vmatprep.subr.bf16.mxu0 0
      %532 = vmatpush1.bf16.msra.mxu0 0
      %533 = vmatprep.subr.bf16.mxu0 0
      %534 = vmatpush1.bf16.msra.mxu0 0
      %535 = vmatprep.subr.bf16.mxu0 0
      %536 = vmatpush1.bf16.msra.mxu0 0
      %537 = vmatprep.subr.bf16.mxu0 0
      %538 = vmatpush1.bf16.msra.mxu0 0
      %539 = vmatprep.mubr.bf16.mxu0 0
      %540 = vmatmul.mubr.bf16.gmra.mrb[0].mxu0 %v275
      %v541 = vpop.f32.mrb[0].mxu0
      %v542 = vadd.f32 %v337, %v541
      %v543 = vpop.f32.mrb[0].mxu0
      %v544 = vpop.f32.mrb[0].mxu0
      %v545 = vpop.f32.mrb[0].mxu0
      %546 = vdwg.mxu0
      %v547 = vpack.c.bf16 %v501, %v501
      %v548 = vpack.c.bf16 %v503, %v503
      %v549 = vpack.c.bf16 %v542, %v542
      %vm550 = vcmask 261120
      %v552 = vsel %vm550, %v547, 0
      %v555 = vsel %vm550, %v548, 0
      %557 = vmatprep.subr.bf16.mxu0 0
      %558 = vmatpush1.bf16.xpose.msra.mxu0 %v555
      %559 = vmatprep.subr.bf16.mxu0 0
      %560 = vmatpush1.bf16.xpose.msra.mxu0 0
      %561 = vmatprep.subr.bf16.mxu0 0
      %562 = vmatpush1.bf16.xpose.msra.mxu0 0
      %563 = vmatprep.subr.bf16.mxu0 0
      %564 = vmatpush1.bf16.xpose.msra.mxu0 0
      %565 = vmatprep.subr.bf16.mxu0 0
      %566 = vmatpush1.bf16.xpose.msra.mxu0 0
      %567 = vmatprep.subr.bf16.mxu0 0
      %568 = vmatpush1.bf16.xpose.msra.mxu0 0
      %569 = vmatprep.subr.bf16.mxu0 0
      %570 = vmatpush1.bf16.xpose.msra.mxu0 0
      %571 = vmatprep.subr.bf16.mxu0 0
      %572 = vmatpush1.bf16.xpose.msra.mxu0 0
      %573 = vmatprep.subr.bf16.mxu0 0
      %574 = vmatpush1.bf16.xpose.msra.mxu0 0
      %575 = vmatprep.subr.bf16.mxu0 0
      %576 = vmatpush1.bf16.xpose.msra.mxu0 0
      %577 = vmatprep.subr.bf16.mxu0 0
      %578 = vmatpush1.bf16.xpose.msra.mxu0 0
      %579 = vmatprep.subr.bf16.mxu0 0
      %580 = vmatpush1.bf16.xpose.msra.mxu0 0
      %581 = vmatprep.subr.bf16.mxu0 0
      %582 = vmatpush1.bf16.xpose.msra.mxu0 0
      %583 = vmatprep.subr.bf16.mxu0 0
      %584 = vmatpush1.bf16.xpose.msra.mxu0 0
      %585 = vmatprep.subr.bf16.mxu0 0
      %586 = vmatpush1.bf16.xpose.msra.mxu0 0
      %587 = vmatprep.subr.bf16.mxu0 0
      %588 = vmatpush1.bf16.xpose.msra.mxu0 0
      %589 = vmatprep.mubr.bf16.mxu0 0
      %590 = vmatmul.mubr.bf16.gmra.mrb[0].mxu0 %v552
      %v591 = vpop.f32.mrb[0].mxu0
      %v592 = vadd.f32 0.0, %v591
      %v593 = vpop.f32.mrb[0].mxu0
      %v594 = vpop.f32.mrb[0].mxu0
      %v595 = vpop.f32.mrb[0].mxu0
      %596 = vdwg.mxu0
      %vm597 = vcmask 64512
      %v598 = vsel %vm597, %v592, -inf
      %599 = vmax.xlane.f32.xlu0 %v598
      %v600 = vpop.xlane.xlu0 %599
      %v601 = vsub.f32 %v592, %v600
      %v602 = vmul.f32 %v601, 1.442695
      %v603 = vpow.pop %v602
      %v604 = vsel %vm597, %v603, 0.0
      %605 = vadd.xlane.f32.xlu0 %v604
      %v606 = vpop.xlane.xlu0 %605
      %v607 = vpack.c.bf16 %v603, %v603
      %v609 = vsel %vm597, %v607, 0
      %vm611 = vcmask 1043456
      %v613 = vsel %vm611, %v549, 0
      %615 = vmatprep.subr.bf16.mxu0 0
      %616 = vmatpush1.bf16.msra.mxu0 %v613
      %617 = vmatprep.subr.bf16.mxu0 0
      %618 = vmatpush1.bf16.msra.mxu0 0
      %619 = vmatprep.subr.bf16.mxu0 0
      %620 = vmatpush1.bf16.msra.mxu0 0
      %621 = vmatprep.subr.bf16.mxu0 0
      %622 = vmatpush1.bf16.msra.mxu0 0
      %623 = vmatprep.subr.bf16.mxu0 0
      %624 = vmatpush1.bf16.msra.mxu0 0
      %625 = vmatprep.subr.bf16.mxu0 0
      %626 = vmatpush1.bf16.msra.mxu0 0
      %627 = vmatprep.subr.bf16.mxu0 0
      %628 = vmatpush1.bf16.msra.mxu0 0
      %629 = vmatprep.subr.bf16.mxu0 0
      %630 = vmatpush1.bf16.msra.mxu0 0
      %631 = vmatprep.subr.bf16.mxu0 0
      %632 = vmatpush1.bf16.msra.mxu0 0
      %633 = vmatprep.subr.bf16.mxu0 0
      %634 = vmatpush1.bf16.msra.mxu0 0
      %635 = vmatprep.subr.bf16.mxu0 0
      %636 = vmatpush1.bf16.msra.mxu0 0
      %637 = vmatprep.subr.bf16.mxu0 0
      %638 = vmatpush1.bf16.msra.mxu0 0
      %639 = vmatprep.subr.bf16.mxu0 0
      %640 = vmatpush1.bf16.msra.mxu0 0
      %641 = vmatprep.subr.bf16.mxu0 0
      %642 = vmatpush1.bf16.msra.mxu0 0
      %643 = vmatprep.subr.bf16.mxu0 0
      %644 = vmatpush1.bf16.msra.mxu0 0
      %645 = vmatprep.subr.bf16.mxu0 0
      %646 = vmatpush1.bf16.msra.mxu0 0
      %647 = vmatprep.mubr.bf16.mxu0 0
      %648 = vmatmul.mubr.bf16.gmra.mrb[0].mxu0 %v609
      %v649 = vpop.f32.mrb[0].mxu0
      %v650 = vadd.f32 0.0, %v649
      %v651 = vpop.f32.mrb[0].mxu0
      %v652 = vpop.f32.mrb[0].mxu0
      %v653 = vpop.f32.mrb[0].mxu0
      %654 = vdwg.mxu0
      %v655 = vrcp.pop %v606
      %v656 = vmul.f32 %v650, %v655
      %658 = vrot.lane.b32.xlu0 %v547, 96
      %v659 = vpop.permute.xlu0 %658
      %661 = vrot.lane.b32.xlu0 %v548, 96
      %v662 = vpop.permute.xlu0 %661
      %v664 = vsel %vm550, %v659, 0
      %v667 = vsel %vm550, %v662, 0
      %669 = vmatprep.subr.bf16.mxu0 0
      %670 = vmatpush1.bf16.xpose.msra.mxu0 %v667
      %671 = vmatprep.subr.bf16.mxu0 0
      %672 = vmatpush1.bf16.xpose.msra.mxu0 0
      %673 = vmatprep.subr.bf16.mxu0 0
      %674 = vmatpush1.bf16.xpose.msra.mxu0 0
      %675 = vmatprep.subr.bf16.mxu0 0
      %676 = vmatpush1.bf16.xpose.msra.mxu0 0
      %677 = vmatprep.subr.bf16.mxu0 0
      %678 = vmatpush1.bf16.xpose.msra.mxu0 0
      %679 = vmatprep.subr.bf16.mxu0 0
      %680 = vmatpush1.bf16.xpose.msra.mxu0 0
      %681 = vmatprep.subr.bf16.mxu0 0
      %682 = vmatpush1.bf16.xpose.msra.mxu0 0
      %683 = vmatprep.subr.bf16.mxu0 0
      %684 = vmatpush1.bf16.xpose.msra.mxu0 0
      %685 = vmatprep.subr.bf16.mxu0 0
      %686 = vmatpush1.bf16.xpose.msra.mxu0 0
      %687 = vmatprep.subr.bf16.mxu0 0
      %688 = vmatpush1.bf16.xpose.msra.mxu0 0
      %689 = vmatprep.subr.bf16.mxu0 0
      %690 = vmatpush1.bf16.xpose.msra.mxu0 0
      %691 = vmatprep.subr.bf16.mxu0 0
      %692 = vmatpush1.bf16.xpose.msra.mxu0 0
      %693 = vmatprep.subr.bf16.mxu0 0
      %694 = vmatpush1.bf16.xpose.msra.mxu0 0
      %695 = vmatprep.subr.bf16.mxu0 0
      %696 = vmatpush1.bf16.xpose.msra.mxu0 0
      %697 = vmatprep.subr.bf16.mxu0 0
      %698 = vmatpush1.bf16.xpose.msra.mxu0 0
      %699 = vmatprep.subr.bf16.mxu0 0
      %700 = vmatpush1.bf16.xpose.msra.mxu0 0
      %701 = vmatprep.mubr.bf16.mxu0 0
      %702 = vmatmul.mubr.bf16.gmra.mrb[0].mxu0 %v664
      %v703 = vpop.f32.mrb[0].mxu0
      %v704 = vadd.f32 0.0, %v703
      %v705 = vpop.f32.mrb[0].mxu0
      %v706 = vpop.f32.mrb[0].mxu0
      %v707 = vpop.f32.mrb[0].mxu0
      %708 = vdwg.mxu0
      %v709 = vsel %vm597, %v704, -inf
      %710 = vmax.xlane.f32.xlu0 %v709
      %v711 = vpop.xlane.xlu0 %710
      %v712 = vsub.f32 %v704, %v711
      %v713 = vmul.f32 %v712, 1.442695
      %v714 = vpow.pop %v713
      %v715 = vsel %vm597, %v714, 0.0
      %716 = vadd.xlane.f32.xlu0 %v715
      %v717 = vpop.xlane.xlu0 %716
      %v718 = vpack.c.bf16 %v714, %v714
      %720 = vrot.lane.b32.xlu0 %v549, 96
      %v721 = vpop.permute.xlu0 %720
      %v723 = vsel %vm597, %v718, 0
      %v726 = vsel %vm611, %v721, 0
      %728 = vmatprep.subr.bf16.mxu0 0
      %729 = vmatpush1.bf16.msra.mxu0 %v726
      %730 = vmatprep.subr.bf16.mxu0 0
      %731 = vmatpush1.bf16.msra.mxu0 0
      %732 = vmatprep.subr.bf16.mxu0 0
      %733 = vmatpush1.bf16.msra.mxu0 0
      %734 = vmatprep.subr.bf16.mxu0 0
      %735 = vmatpush1.bf16.msra.mxu0 0
      %736 = vmatprep.subr.bf16.mxu0 0
      %737 = vmatpush1.bf16.msra.mxu0 0
      %738 = vmatprep.subr.bf16.mxu0 0
      %739 = vmatpush1.bf16.msra.mxu0 0
      %740 = vmatprep.subr.bf16.mxu0 0
      %741 = vmatpush1.bf16.msra.mxu0 0
      %742 = vmatprep.subr.bf16.mxu0 0
      %743 = vmatpush1.bf16.msra.mxu0 0
      %744 = vmatprep.subr.bf16.mxu0 0
      %745 = vmatpush1.bf16.msra.mxu0 0
      %746 = vmatprep.subr.bf16.mxu0 0
      %747 = vmatpush1.bf16.msra.mxu0 0
      %748 = vmatprep.subr.bf16.mxu0 0
      %749 = vmatpush1.bf16.msra.mxu0 0
      %750 = vmatprep.subr.bf16.mxu0 0
      %751 = vmatpush1.bf16.msra.mxu0 0
      %752 = vmatprep.subr.bf16.mxu0 0
      %753 = vmatpush1.bf16.msra.mxu0 0
      %754 = vmatprep.subr.bf16.mxu0 0
      %755 = vmatpush1.bf16.msra.mxu0 0
      %756 = vmatprep.subr.bf16.mxu0 0
      %757 = vmatpush1.bf16.msra.mxu0 0
      %758 = vmatprep.subr.bf16.mxu0 0
      %759 = vmatpush1.bf16.msra.mxu0 0
      %760 = vmatprep.mubr.bf16.mxu0 0
      %761 = vmatmul.mubr.bf16.gmra.mrb[0].mxu0 %v723
      %v762 = vpop.f32.mrb[0].mxu0
      %v763 = vadd.f32 0.0, %v762
      %v764 = vpop.f32.mrb[0].mxu0
      %v765 = vpop.f32.mrb[0].mxu0
      %v766 = vpop.f32.mrb[0].mxu0
      %767 = vdwg.mxu0
      %v768 = vrcp.pop %v717
      %v769 = vmul.f32 %v763, %v768
      %770 = vrot.lane.b32.xlu0 %v547, 64
      %v771 = vpop.permute.xlu0 %770
      %772 = vrot.lane.b32.xlu0 %v548, 64
      %v773 = vpop.permute.xlu0 %772
      %v775 = vsel %vm550, %v771, 0
      %v778 = vsel %vm550, %v773, 0
      %780 = vmatprep.subr.bf16.mxu0 0
      %781 = vmatpush1.bf16.xpose.msra.mxu0 %v778
      %782 = vmatprep.subr.bf16.mxu0 0
      %783 = vmatpush1.bf16.xpose.msra.mxu0 0
      %784 = vmatprep.subr.bf16.mxu0 0
      %785 = vmatpush1.bf16.xpose.msra.mxu0 0
      %786 = vmatprep.subr.bf16.mxu0 0
      %787 = vmatpush1.bf16.xpose.msra.mxu0 0
      %788 = vmatprep.subr.bf16.mxu0 0
      %789 = vmatpush1.bf16.xpose.msra.mxu0 0
      %790 = vmatprep.subr.bf16.mxu0 0
      %791 = vmatpush1.bf16.xpose.msra.mxu0 0
      %792 = vmatprep.subr.bf16.mxu0 0
      %793 = vmatpush1.bf16.xpose.msra.mxu0 0
      %794 = vmatprep.subr.bf16.mxu0 0
      %795 = vmatpush1.bf16.xpose.msra.mxu0 0
      %796 = vmatprep.subr.bf16.mxu0 0
      %797 = vmatpush1.bf16.xpose.msra.mxu0 0
      %798 = vmatprep.subr.bf16.mxu0 0
      %799 = vmatpush1.bf16.xpose.msra.mxu0 0
      %800 = vmatprep.subr.bf16.mxu0 0
      %801 = vmatpush1.bf16.xpose.msra.mxu0 0
      %802 = vmatprep.subr.bf16.mxu0 0
      %803 = vmatpush1.bf16.xpose.msra.mxu0 0
      %804 = vmatprep.subr.bf16.mxu0 0
      %805 = vmatpush1.bf16.xpose.msra.mxu0 0
      %806 = vmatprep.subr.bf16.mxu0 0
      %807 = vmatpush1.bf16.xpose.msra.mxu0 0
      %808 = vmatprep.subr.bf16.mxu0 0
      %809 = vmatpush1.bf16.xpose.msra.mxu0 0
      %810 = vmatprep.subr.bf16.mxu0 0
      %811 = vmatpush1.bf16.xpose.msra.mxu0 0
      %812 = vmatprep.mubr.bf16.mxu0 0
      %813 = vmatmul.mubr.bf16.gmra.mrb[0].mxu0 %v775
      %v814 = vpop.f32.mrb[0].mxu0
      %v815 = vadd.f32 0.0, %v814
      %v816 = vpop.f32.mrb[0].mxu0
      %v817 = vpop.f32.mrb[0].mxu0
      %v818 = vpop.f32.mrb[0].mxu0
      %819 = vdwg.mxu0
      %v820 = vsel %vm597, %v815, -inf
      %821 = vmax.xlane.f32.xlu0 %v820
      %v822 = vpop.xlane.xlu0 %821
      %v823 = vsub.f32 %v815, %v822
      %v824 = vmul.f32 %v823, 1.442695
      %v825 = vpow.pop %v824
      %v826 = vsel %vm597, %v825, 0.0
      %827 = vadd.xlane.f32.xlu0 %v826
      %v828 = vpop.xlane.xlu0 %827
      %v829 = vpack.c.bf16 %v825, %v825
      %830 = vrot.lane.b32.xlu0 %v549, 64
      %v831 = vpop.permute.xlu0 %830
      %v833 = vsel %vm597, %v829, 0
      %v836 = vsel %vm611, %v831, 0
      %838 = vmatprep.subr.bf16.mxu0 0
      %839 = vmatpush1.bf16.msra.mxu0 %v836
      %840 = vmatprep.subr.bf16.mxu0 0
      %841 = vmatpush1.bf16.msra.mxu0 0
      %842 = vmatprep.subr.bf16.mxu0 0
      %843 = vmatpush1.bf16.msra.mxu0 0
      %844 = vmatprep.subr.bf16.mxu0 0
      %845 = vmatpush1.bf16.msra.mxu0 0
      %846 = vmatprep.subr.bf16.mxu0 0
      %847 = vmatpush1.bf16.msra.mxu0 0
      %848 = vmatprep.subr.bf16.mxu0 0
      %849 = vmatpush1.bf16.msra.mxu0 0
      %850 = vmatprep.subr.bf16.mxu0 0
      %851 = vmatpush1.bf16.msra.mxu0 0
      %852 = vmatprep.subr.bf16.mxu0 0
      %853 = vmatpush1.bf16.msra.mxu0 0
      %854 = vmatprep.subr.bf16.mxu0 0
      %855 = vmatpush1.bf16.msra.mxu0 0
      %856 = vmatprep.subr.bf16.mxu0 0
      %857 = vmatpush1.bf16.msra.mxu0 0
      %858 = vmatprep.subr.bf16.mxu0 0
      %859 = vmatpush1.bf16.msra.mxu0 0
      %860 = vmatprep.subr.bf16.mxu0 0
      %861 = vmatpush1.bf16.msra.mxu0 0
      %862 = vmatprep.subr.bf16.mxu0 0
      %863 = vmatpush1.bf16.msra.mxu0 0
      %864 = vmatprep.subr.bf16.mxu0 0
      %865 = vmatpush1.bf16.msra.mxu0 0
      %866 = vmatprep.subr.bf16.mxu0 0
      %867 = vmatpush1.bf16.msra.mxu0 0
      %868 = vmatprep.subr.bf16.mxu0 0
      %869 = vmatpush1.bf16.msra.mxu0 0
      %870 = vmatprep.mubr.bf16.mxu0 0
      %871 = vmatmul.mubr.bf16.gmra.mrb[0].mxu0 %v833
      %v872 = vpop.f32.mrb[0].mxu0
      %v873 = vadd.f32 0.0, %v872
      %v874 = vpop.f32.mrb[0].mxu0
      %v875 = vpop.f32.mrb[0].mxu0
      %v876 = vpop.f32.mrb[0].mxu0
      %877 = vdwg.mxu0
      %v878 = vrcp.pop %v828
      %v879 = vmul.f32 %v873, %v878
      %880 = vrot.lane.b32.xlu0 %v547, 32
      %v881 = vpop.permute.xlu0 %880
      %882 = vrot.lane.b32.xlu0 %v548, 32
      %v883 = vpop.permute.xlu0 %882
      %v885 = vsel %vm550, %v881, 0
      %v888 = vsel %vm550, %v883, 0
      %890 = vmatprep.subr.bf16.mxu0 0
      %891 = vmatpush1.bf16.xpose.msra.mxu0 %v888
      %892 = vmatprep.subr.bf16.mxu0 0
      %893 = vmatpush1.bf16.xpose.msra.mxu0 0
      %894 = vmatprep.subr.bf16.mxu0 0
      %895 = vmatpush1.bf16.xpose.msra.mxu0 0
      %896 = vmatprep.subr.bf16.mxu0 0
      %897 = vmatpush1.bf16.xpose.msra.mxu0 0
      %898 = vmatprep.subr.bf16.mxu0 0
      %899 = vmatpush1.bf16.xpose.msra.mxu0 0
      %900 = vmatprep.subr.bf16.mxu0 0
      %901 = vmatpush1.bf16.xpose.msra.mxu0 0
      %902 = vmatprep.subr.bf16.mxu0 0
      %903 = vmatpush1.bf16.xpose.msra.mxu0 0
      %904 = vmatprep.subr.bf16.mxu0 0
      %905 = vmatpush1.bf16.xpose.msra.mxu0 0
      %906 = vmatprep.subr.bf16.mxu0 0
      %907 = vmatpush1.bf16.xpose.msra.mxu0 0
      %908 = vmatprep.subr.bf16.mxu0 0
      %909 = vmatpush1.bf16.xpose.msra.mxu0 0
      %910 = vmatprep.subr.bf16.mxu0 0
      %911 = vmatpush1.bf16.xpose.msra.mxu0 0
      %912 = vmatprep.subr.bf16.mxu0 0
      %913 = vmatpush1.bf16.xpose.msra.mxu0 0
      %914 = vmatprep.subr.bf16.mxu0 0
      %915 = vmatpush1.bf16.xpose.msra.mxu0 0
      %916 = vmatprep.subr.bf16.mxu0 0
      %917 = vmatpush1.bf16.xpose.msra.mxu0 0
      %918 = vmatprep.subr.bf16.mxu0 0
      %919 = vmatpush1.bf16.xpose.msra.mxu0 0
      %920 = vmatprep.subr.bf16.mxu0 0
      %921 = vmatpush1.bf16.xpose.msra.mxu0 0
      %922 = vmatprep.mubr.bf16.mxu0 0
      %923 = vmatmul.mubr.bf16.gmra.mrb[0].mxu0 %v885
      %v924 = vpop.f32.mrb[0].mxu0
      %v925 = vadd.f32 0.0, %v924
      %v926 = vpop.f32.mrb[0].mxu0
      %v927 = vpop.f32.mrb[0].mxu0
      %v928 = vpop.f32.mrb[0].mxu0
      %929 = vdwg.mxu0
      %v930 = vsel %vm597, %v925, -inf
      %931 = vmax.xlane.f32.xlu0 %v930
      %v932 = vpop.xlane.xlu0 %931
      %v933 = vsub.f32 %v925, %v932
      %v934 = vmul.f32 %v933, 1.442695
      %v935 = vpow.pop %v934
      %v936 = vsel %vm597, %v935, 0.0
      %937 = vadd.xlane.f32.xlu0 %v936
      %v938 = vpop.xlane.xlu0 %937
      %v939 = vpack.c.bf16 %v935, %v935
      %940 = vrot.lane.b32.xlu0 %v549, 32
      %v941 = vpop.permute.xlu0 %940
      %v943 = vsel %vm597, %v939, 0
      %v946 = vsel %vm611, %v941, 0
      %948 = vmatprep.subr.bf16.mxu0 0
      %949 = vmatpush1.bf16.msra.mxu0 %v946
      %950 = vmatprep.subr.bf16.mxu0 0
      %951 = vmatpush1.bf16.msra.mxu0 0
      %952 = vmatprep.subr.bf16.mxu0 0
      %953 = vmatpush1.bf16.msra.mxu0 0
      %954 = vmatprep.subr.bf16.mxu0 0
      %955 = vmatpush1.bf16.msra.mxu0 0
      %956 = vmatprep.subr.bf16.mxu0 0
      %957 = vmatpush1.bf16.msra.mxu0 0
      %958 = vmatprep.subr.bf16.mxu0 0
      %959 = vmatpush1.bf16.msra.mxu0 0
      %960 = vmatprep.subr.bf16.mxu0 0
      %961 = vmatpush1.bf16.msra.mxu0 0
      %962 = vmatprep.subr.bf16.mxu0 0
      %963 = vmatpush1.bf16.msra.mxu0 0
      %964 = vmatprep.subr.bf16.mxu0 0
      %965 = vmatpush1.bf16.msra.mxu0 0
      %966 = vmatprep.subr.bf16.mxu0 0
      %967 = vmatpush1.bf16.msra.mxu0 0
      %968 = vmatprep.subr.bf16.mxu0 0
      %969 = vmatpush1.bf16.msra.mxu0 0
      %970 = vmatprep.subr.bf16.mxu0 0
      %971 = vmatpush1.bf16.msra.mxu0 0
      %972 = vmatprep.subr.bf16.mxu0 0
      %973 = vmatpush1.bf16.msra.mxu0 0
      %974 = vmatprep.subr.bf16.mxu0 0
      %975 = vmatpush1.bf16.msra.mxu0 0
      %976 = vmatprep.subr.bf16.mxu0 0
      %977 = vmatpush1.bf16.msra.mxu0 0
      %978 = vmatprep.subr.bf16.mxu0 0
      %979 = vmatpush1.bf16.msra.mxu0 0
      %980 = vmatprep.mubr.bf16.mxu0 0
      %981 = vmatmul.mubr.bf16.gmra.mrb[0].mxu0 %v943
      %v982 = vpop.f32.mrb[0].mxu0
      %v983 = vadd.f32 0.0, %v982
      %v984 = vpop.f32.mrb[0].mxu0
      %v985 = vpop.f32.mrb[0].mxu0
      %v986 = vpop.f32.mrb[0].mxu0
      %987 = vdwg.mxu0
      %v988 = vrcp.pop %v938
      %v989 = vmul.f32 %v983, %v988
      %991 = vrot.lane.b32.xlu0 %v769, 32
      %v992 = vpop.permute.xlu0 %991
      %995 = vrot.lane.b32.xlu0 %v879, 64
      %v996 = vpop.permute.xlu0 %995
      %999 = vrot.lane.b32.xlu0 %v989, 96
      %v1000 = vpop.permute.xlu0 %999
      %v1002 = vsel %vm550, %v656, %v992
      %vm1003 = vcmask 523264
      %v1004 = vsel %vm1003, %v1002, %v996
      %vm1005 = vcmask 785408
      %v1006 = vsel %vm1005, %v1004, %v1000
      %v1007 = vpack.c.bf16 %v1006, %v1006
      %v1008 = vld [vmem:[%s3] sm:$0xf]
      %v1009 = vld [vmem:[%s3 + $0x4] sm:$0xf]
      %v1010 = vld [vmem:[%s3 + $0x8] sm:$0xf]
      %v1011 = vld [vmem:[%s3 + $0xc] sm:$0xf]
      %v1012 = vld [vmem:[%s3 + $0x10] sm:$0xf]
      %v1013 = vld [vmem:[%s3 + $0x14] sm:$0xf]
      %v1014 = vld [vmem:[%s3 + $0x18] sm:$0xf]
      %v1015 = vld [vmem:[%s3 + $0x1c] sm:$0xf]
      %v1016 = vld [vmem:[%s3 + $0x20] sm:$0xf]
      %v1017 = vld [vmem:[%s3 + $0x24] sm:$0xf]
      %v1018 = vld [vmem:[%s3 + $0x28] sm:$0xf]
      %v1019 = vld [vmem:[%s3 + $0x2c] sm:$0xf]
      %v1020 = vld [vmem:[%s3 + $0x30] sm:$0xf]
      %v1021 = vld [vmem:[%s3 + $0x34] sm:$0xf]
      %v1022 = vld [vmem:[%s3 + $0x38] sm:$0xf]
      %v1023 = vld [vmem:[%s3 + $0x3c] sm:$0xf]
      %v1024 = vld [vmem:[%s4] sm:$0x1]
      %v1025 = vunpack.c.l.bf16 %v1024
      %v1026 = vlaneseq
      %v1027 = vshrl.u32 %v1026, 7
      %v1028 = vsub.s32 0, %v1027
      %v1029 = vrot.slane %v1025, %v1028
      %v1046 = vunpack.c.l.b16 %v1008
      %v1047 = vunpack.c.l.b16 %v1009
      %v1048 = vunpack.c.l.b16 %v1010
      %v1049 = vunpack.c.l.b16 %v1011
      %v1050 = vunpack.c.l.b16 %v1012
      %v1051 = vunpack.c.l.b16 %v1013
      %v1052 = vunpack.c.l.b16 %v1014
      %v1053 = vunpack.c.l.b16 %v1015
      %v1054 = vunpack.c.l.b16 %v1016
      %v1055 = vunpack.c.l.b16 %v1017
      %v1056 = vunpack.c.l.b16 %v1018
      %v1057 = vunpack.c.l.b16 %v1019
      %v1058 = vunpack.c.l.b16 %v1020
      %v1059 = vunpack.c.l.b16 %v1021
      %v1060 = vunpack.c.l.b16 %v1022
      %v1061 = vunpack.c.l.b16 %v1023
      %v1062 = vpack.c.b16 %v1047, %v1046
      %v1063 = vpack.c.b16 %v1049, %v1048
      %v1064 = vpack.c.b16 %v1051, %v1050
      %v1065 = vpack.c.b16 %v1053, %v1052
      %v1066 = vpack.c.b16 %v1055, %v1054
      %v1067 = vpack.c.b16 %v1057, %v1056
      %v1068 = vpack.c.b16 %v1059, %v1058
      %v1069 = vpack.c.b16 %v1061, %v1060
      %1078 = vmatprep.subr.bf16.mxu0 0
      %1079 = vmatpush1.bf16.msra.mxu0 %v1062
      %1080 = vmatprep.subr.bf16.mxu0 0
      %1081 = vmatpush1.bf16.msra.mxu0 %v1063
      %1082 = vmatprep.subr.bf16.mxu0 0
      %1083 = vmatpush1.bf16.msra.mxu0 %v1064
      %1084 = vmatprep.subr.bf16.mxu0 0
      %1085 = vmatpush1.bf16.msra.mxu0 %v1065
      %1086 = vmatprep.subr.bf16.mxu0 0
      %1087 = vmatpush1.bf16.msra.mxu0 %v1066
      %1088 = vmatprep.subr.bf16.mxu0 0
      %1089 = vmatpush1.bf16.msra.mxu0 %v1067
      %1090 = vmatprep.subr.bf16.mxu0 0
      %1091 = vmatpush1.bf16.msra.mxu0 %v1068
      %1092 = vmatprep.subr.bf16.mxu0 0
      %1093 = vmatpush1.bf16.msra.mxu0 %v1069
      %1094 = vmatprep.subr.bf16.mxu0 0
      %1095 = vmatpush1.bf16.msra.mxu0 0
      %1096 = vmatprep.subr.bf16.mxu0 0
      %1097 = vmatpush1.bf16.msra.mxu0 0
      %1098 = vmatprep.subr.bf16.mxu0 0
      %1099 = vmatpush1.bf16.msra.mxu0 0
      %1100 = vmatprep.subr.bf16.mxu0 0
      %1101 = vmatpush1.bf16.msra.mxu0 0
      %1102 = vmatprep.subr.bf16.mxu0 0
      %1103 = vmatpush1.bf16.msra.mxu0 0
      %1104 = vmatprep.subr.bf16.mxu0 0
      %1105 = vmatpush1.bf16.msra.mxu0 0
      %1106 = vmatprep.subr.bf16.mxu0 0
      %1107 = vmatpush1.bf16.msra.mxu0 0
      %1108 = vmatprep.subr.bf16.mxu0 0
      %1109 = vmatpush1.bf16.msra.mxu0 0
      %1110 = vmatprep.mubr.bf16.mxu0 0
      %1111 = vmatmul.mubr.bf16.gmra.mrb[0].mxu0 %v1007
      %v1112 = vpop.f32.mrb[0].mxu0
      %v1113 = vadd.f32 %v1029, %v1112
      %v1114 = vpop.f32.mrb[0].mxu0
      %v1115 = vpop.f32.mrb[0].mxu0
      %v1116 = vpop.f32.mrb[0].mxu0
      %1117 = vdwg.mxu0
      %v1118 = vunpack.c.l.bf16 %v275
      %v1119 = vadd.f32 %v1113, %v1118
      %1120 = vadd.xlane.f32.xlu0 %v1119
      %v1121 = vpop.xlane.xlu0 %1120
      %v1122 = vrcp.pop 128.0
      %v1123 = vmul.f32 %v1121, %v1122
      %v1124 = vsub.f32 %v1119, %v1123
      %v1125 = vmul.f32 %v1124, %v1124
      %1126 = vadd.xlane.f32.xlu0 %v1125
      %v1127 = vpop.xlane.xlu0 %1126
      %v1128 = vmul.f32 %v1127, %v1122
      %v1129 = vadd.f32 %v1128, 1e-05
      %v1130 = vrsqrt.pop %v1129
      %v1131 = vmul.f32 %v1124, %v1130
      %v1132 = vld [vmem:[%s5] sm:$0x1]
      %v1134 = vlaneseq
      %v1135 = vshrl.u32 %v1134, 7
      %v1136 = vsub.s32 0, %v1135
      %v1137 = vrot.slane %v1132, %v1136
      %v1139 = vmul.f32 %v1131, %v1137
      %v1140 = vld [vmem:[%s6] sm:$0x1]
      %v1142 = vlaneseq
      %v1143 = vshrl.u32 %v1142, 7
      %v1144 = vsub.s32 0, %v1143
      %v1145 = vrot.slane %v1140, %v1144
      %v1147 = vadd.f32 %v1139, %v1145
      %v1148 = vpack.c.bf16 %v1147, %v1147
      %1149 = vst [vmem:[%s273] sm:$0xf] %v1148
      %p1150 = scmp.lt.s32.totalorder %s18, 1
      %s1151 = scalar_select %p1150, %s18, 1
      %s1152 = smul.addr %s1151, 4
      %s1153 = scalar_lea.vmem %s7, %s1152
      // Predicated region
      $region49: #{transformer_forward.10} parent=47 // pred_check
        %p1154 = pneg %p188
      $region50: #{transformer_forward.10} parent=47 // pred_check_branch
        %1156 = sbr.rel (%p1154) target = $region52
      $region51: #{transformer_forward.10} parent=47 // pred_region
        _
      $region52: #{transformer_forward.10} parent=47 // pred_fallthru
        _
    $region48: #{transformer_forward.10} parent=5 // pred_fallthru
      _
    %p1157 = scmp.le.s32.totalorder 2, %s13
    // Predicated region
    $region53: #{transformer_forward.10} parent=5 // pred_check
      %p1158 = pneg %p1157
    $region54: #{transformer_forward.10} parent=5 // pred_check_branch
      %1160 = sbr.rel (%p1158) target = $region56
    $region55: #{transformer_forward.10} parent=5 // pred_region
      %s1161 = ssub.s32 %s13, 2
      // Predicated region
      $region57: #{transformer_forward.10} parent=55 // pred_check
        %p1162 = pneg %p194
      $region58: #{transformer_forward.10} parent=55 // pred_check_branch
        %1164 = sbr.rel (%p1162) target = $region60
      $region59: #{transformer_forward.10} parent=55 // pred_region
        %p1165 = scmp.lt.s32.totalorder %s19, 1
        %s1166 = scalar_select %p1165, %s19, 1
        %s1167 = smul.addr %s1166, 4
        %s1168 = scalar_lea.vmem %s7, %s1167
      $region60: #{transformer_forward.10} parent=55 // pred_fallthru
        _
    $region56: #{transformer_forward.10} parent=5 // pred_fallthru
      _
  $region6: #{transformer_forward.10} parent=0 // loop_footer
    %s17 = sadd.s32 1, %s13
  $region7: #{transformer_forward.10} parent=0 // loop_footer_branch
    %12 = sbr.rel target = $region3
  $region8: #{transformer_forward.10} parent=0 // loop_exit
    _

// kernel: transformer_forward.13
$region0: #{transformer_forward.13}
  #allocation0 [shape = 'u32[]', space=smem, size = 0x4, offset = 0x4, fixed_abs, tag = 'smem constant byte address 0x4 - core index']
  #allocation1 [shape = 'u32[144,128]{1,0:T(1,128)}', space=vmem, size = 0x12000, scoped, tag = 'internal scratch']
  #allocation2 [shape = 'f32[16,512]{1,0:T(8,128)}', space=vmem, size = 0x8000, scoped, tag = 'scratch operand']
  %s0 = inlined_call_operand.vmem [shape: bf16[16,128], index: 0, kind: input, shape index: {}]
  %s1 = inlined_call_operand.vmem [shape: bf16[128,512], index: 1, kind: input, shape index: {}]
  %s2 = inlined_call_operand.vmem [shape: bf16[1,512], index: 2, kind: input, shape index: {}]
  %s3 = inlined_call_operand.hbm [shape: f32[16,512], index: 3, kind: output, shape index: {}]
  %s4 = sld [smem:[#allocation0]]
  $region30: #{transformer_forward.13} parent=0
    _
  %s6 = ssub.s32 1, %s4
  %s7 = scalar_select 0, %s6, %s4
  $region1: #{transformer_forward.13} parent=0
    #allocation3 [shape = 'u8[32768]{0}', space=vmem, size = 0x8000, scoped, tag = 'output window, operand 0, single buffered']
    #allocation4 [shape = 's32[1]{0}', space=sflag, size = 0x4, scoped, tag = 'scoped memory for transformer_forward.13']
    %8 = vsyncpa [#allocation4], 0
    // Predicated region
    $region2: #{transformer_forward.13} parent=1 // pred_check
      _
    $region3: #{transformer_forward.13} parent=1 // pred_check_branch
      %10 = sbr.rel (0) target = $region5
    $region4: #{transformer_forward.13} parent=1 // pred_region
      _
    $region5: #{transformer_forward.13} parent=1 // pred_fallthru
      _
    // Predicated region
    $region6: #{transformer_forward.13} parent=1 // pred_check
      _
    $region7: #{transformer_forward.13} parent=1 // pred_check_branch
      %12 = sbr.rel (0) target = $region9
    $region8: #{transformer_forward.13} parent=1 // pred_region
      _
    $region9: #{transformer_forward.13} parent=1 // pred_fallthru
      _
    // Predicated region
    $region10: #{transformer_forward.13} parent=1 // pred_check
      _
    $region11: #{transformer_forward.13} parent=1 // pred_check_branch
      %14 = sbr.rel (0) target = $region13
    $region12: #{transformer_forward.13} parent=1 // pred_region
      _
    $region13: #{transformer_forward.13} parent=1 // pred_fallthru
      _
    %p16 = scmp.eq.s32.totalorder 0, 0
    // Predicated region
    $region14: #{transformer_forward.13} parent=1 // pred_check
      %p17 = pneg %p16
    $region15: #{transformer_forward.13} parent=1 // pred_check_branch
      %19 = sbr.rel (%p17) target = $region17
    $region16: #{transformer_forward.13} parent=1 // pred_region
      %20 = vst [vmem:[#allocation2] sm:$0xff] 0.0
      %21 = vst [vmem:[#allocation2 + $0x8] sm:$0xff] 0.0
      %22 = vst [vmem:[#allocation2 + $0x10] sm:$0xff] 0.0
      %23 = vst [vmem:[#allocation2 + $0x18] sm:$0xff] 0.0
      %24 = vst [vmem:[#allocation2 + $0x20] sm:$0xff] 0.0
      %25 = vst [vmem:[#allocation2 + $0x28] sm:$0xff] 0.0
      %26 = vst [vmem:[#allocation2 + $0x30] sm:$0xff] 0.0
      %27 = vst [vmem:[#allocation2 + $0x38] sm:$0xff] 0.0
    $region17: #{transformer_forward.13} parent=1 // pred_fallthru
      _
    %v28 = vld [vmem:[#allocation2] sm:$0xff]
    %v29 = vld [vmem:[#allocation2 + $0x8] sm:$0xff]
    %v30 = vld [vmem:[#allocation2 + $0x10] sm:$0xff]
    %v31 = vld [vmem:[#allocation2 + $0x18] sm:$0xff]
    %v32 = vld [vmem:[#allocation2 + $0x20] sm:$0xff]
    %v33 = vld [vmem:[#allocation2 + $0x28] sm:$0xff]
    %v34 = vld [vmem:[#allocation2 + $0x30] sm:$0xff]
    %v35 = vld [vmem:[#allocation2 + $0x38] sm:$0xff]
    %v36 = vld [vmem:[%s0] sm:$0xf]
    %v37 = vld [vmem:[%s0 + $0x4] sm:$0xf]
    %v38 = vld [vmem:[%s1] sm:$0xff]
    %v39 = vld [vmem:[%s1 + $0x8] sm:$0xff]
    %v40 = vld [vmem:[%s1 + $0x10] sm:$0xff]
    %v41 = vld [vmem:[%s1 + $0x18] sm:$0xff]
    %v42 = vld [vmem:[%s1 + $0x20] sm:$0xff]
    %v43 = vld [vmem:[%s1 + $0x28] sm:$0xff]
    %v44 = vld [vmem:[%s1 + $0x30] sm:$0xff]
    %v45 = vld [vmem:[%s1 + $0x38] sm:$0xff]
    %v46 = vld [vmem:[%s1 + $0x40] sm:$0xff]
    %v47 = vld [vmem:[%s1 + $0x48] sm:$0xff]
    %v48 = vld [vmem:[%s1 + $0x50] sm:$0xff]
    %v49 = vld [vmem:[%s1 + $0x58] sm:$0xff]
    %v50 = vld [vmem:[%s1 + $0x60] sm:$0xff]
    %v51 = vld [vmem:[%s1 + $0x68] sm:$0xff]
    %v52 = vld [vmem:[%s1 + $0x70] sm:$0xff]
    %v53 = vld [vmem:[%s1 + $0x78] sm:$0xff]
    %v54 = vld [vmem:[%s1 + $0x80] sm:$0xff]
    %v55 = vld [vmem:[%s1 + $0x88] sm:$0xff]
    %v56 = vld [vmem:[%s1 + $0x90] sm:$0xff]
    %v57 = vld [vmem:[%s1 + $0x98] sm:$0xff]
    %v58 = vld [vmem:[%s1 + $0xa0] sm:$0xff]
    %v59 = vld [vmem:[%s1 + $0xa8] sm:$0xff]
    %v60 = vld [vmem:[%s1 + $0xb0] sm:$0xff]
    %v61 = vld [vmem:[%s1 + $0xb8] sm:$0xff]
    %v62 = vld [vmem:[%s1 + $0xc0] sm:$0xff]
    %v63 = vld [vmem:[%s1 + $0xc8] sm:$0xff]
    %v64 = vld [vmem:[%s1 + $0xd0] sm:$0xff]
    %v65 = vld [vmem:[%s1 + $0xd8] sm:$0xff]
    %v66 = vld [vmem:[%s1 + $0xe0] sm:$0xff]
    %v67 = vld [vmem:[%s1 + $0xe8] sm:$0xff]
    %v68 = vld [vmem:[%s1 + $0xf0] sm:$0xff]
    %v69 = vld [vmem:[%s1 + $0xf8] sm:$0xff]
    %v72 = vunpack.c.l.b16 %v36
    %v73 = vunpack.c.l.b16 %v37
    %v74 = vpack.c.b16 %v73, %v72
    %v108 = vunpack.c.l.b16 %v38
    %v109 = vunpack.c.h.b16 %v38
    %v110 = vunpack.c.l.b16 %v39
    %v111 = vunpack.c.h.b16 %v39
    %v112 = vunpack.c.l.b16 %v40
    %v113 = vunpack.c.h.b16 %v40
    %v114 = vunpack.c.l.b16 %v41
    %v115 = vunpack.c.h.b16 %v41
    %v116 = vunpack.c.l.b16 %v42
    %v117 = vunpack.c.h.b16 %v42
    %v118 = vunpack.c.l.b16 %v43
    %v119 = vunpack.c.h.b16 %v43
    %v120 = vunpack.c.l.b16 %v44
    %v121 = vunpack.c.h.b16 %v44
    %v122 = vunpack.c.l.b16 %v45
    %v123 = vunpack.c.h.b16 %v45
    %v124 = vunpack.c.l.b16 %v46
    %v125 = vunpack.c.h.b16 %v46
    %v126 = vunpack.c.l.b16 %v47
    %v127 = vunpack.c.h.b16 %v47
    %v128 = vunpack.c.l.b16 %v48
    %v129 = vunpack.c.h.b16 %v48
    %v130 = vunpack.c.l.b16 %v49
    %v131 = vunpack.c.h.b16 %v49
    %v132 = vunpack.c.l.b16 %v50
    %v133 = vunpack.c.h.b16 %v50
    %v134 = vunpack.c.l.b16 %v51
    %v135 = vunpack.c.h.b16 %v51
    %v136 = vunpack.c.l.b16 %v52
    %v137 = vunpack.c.h.b16 %v52
    %v138 = vunpack.c.l.b16 %v53
    %v139 = vunpack.c.h.b16 %v53
    %v140 = vunpack.c.l.b16 %v54
    %v141 = vunpack.c.h.b16 %v54
    %v142 = vunpack.c.l.b16 %v55
    %v143 = vunpack.c.h.b16 %v55
    %v144 = vunpack.c.l.b16 %v56
    %v145 = vunpack.c.h.b16 %v56
    %v146 = vunpack.c.l.b16 %v57
    %v147 = vunpack.c.h.b16 %v57
    %v148 = vunpack.c.l.b16 %v58
    %v149 = vunpack.c.h.b16 %v58
    %v150 = vunpack.c.l.b16 %v59
    %v151 = vunpack.c.h.b16 %v59
    %v152 = vunpack.c.l.b16 %v60
    %v153 = vunpack.c.h.b16 %v60
    %v154 = vunpack.c.l.b16 %v61
    %v155 = vunpack.c.h.b16 %v61
    %v156 = vunpack.c.l.b16 %v62
    %v157 = vunpack.c.h.b16 %v62
    %v158 = vunpack.c.l.b16 %v63
    %v159 = vunpack.c.h.b16 %v63
    %v160 = vunpack.c.l.b16 %v64
    %v161 = vunpack.c.h.b16 %v64
    %v162 = vunpack.c.l.b16 %v65
    %v163 = vunpack.c.h.b16 %v65
    %v164 = vunpack.c.l.b16 %v66
    %v165 = vunpack.c.h.b16 %v66
    %v166 = vunpack.c.l.b16 %v67
    %v167 = vunpack.c.h.b16 %v67
    %v168 = vunpack.c.l.b16 %v68
    %v169 = vunpack.c.h.b16 %v68
    %v170 = vunpack.c.l.b16 %v69
    %v171 = vunpack.c.h.b16 %v69
    %v172 = vpack.c.b16 %v112, %v108
    %v173 = vpack.c.b16 %v113, %v109
    %v174 = vpack.c.b16 %v114, %v110
    %v175 = vpack.c.b16 %v115, %v111
    %v176 = vpack.c.b16 %v120, %v116
    %v177 = vpack.c.b16 %v121, %v117
    %v178 = vpack.c.b16 %v122, %v118
    %v179 = vpack.c.b16 %v123, %v119
    %v180 = vpack.c.b16 %v128, %v124
    %v181 = vpack.c.b16 %v129, %v125
    %v182 = vpack.c.b16 %v130, %v126
    %v183 = vpack.c.b16 %v131, %v127
    %v184 = vpack.c.b16 %v136, %v132
    %v185 = vpack.c.b16 %v137, %v133
    %v186 = vpack.c.b16 %v138, %v134
    %v187 = vpack.c.b16 %v139, %v135
    %v188 = vpack.c.b16 %v144, %v140
    %v189 = vpack.c.b16 %v145, %v141
    %v190 = vpack.c.b16 %v146, %v142
    %v191 = vpack.c.b16 %v147, %v143
    %v192 = vpack.c.b16 %v152, %v148
    %v193 = vpack.c.b16 %v153, %v149
    %v194 = vpack.c.b16 %v154, %v150
    %v195 = vpack.c.b16 %v155, %v151
    %v196 = vpack.c.b16 %v160, %v156
    %v197 = vpack.c.b16 %v161, %v157
    %v198 = vpack.c.b16 %v162, %v158
    %v199 = vpack.c.b16 %v163, %v159
    %v200 = vpack.c.b16 %v168, %v164
    %v201 = vpack.c.b16 %v169, %v165
    %v202 = vpack.c.b16 %v170, %v166
    %v203 = vpack.c.b16 %v171, %v167
    %236 = vmatprep.subr.bf16.mxu0 %v173
    %237 = vmatpush1.bf16.msra.mxu0 %v172
    %238 = vmatprep.subr.bf16.mxu0 %v177
    %239 = vmatpush1.bf16.msra.mxu0 %v176
    %240 = vmatprep.subr.bf16.mxu0 %v181
    %241 = vmatpush1.bf16.msra.mxu0 %v180
    %242 = vmatprep.subr.bf16.mxu0 %v185
    %243 = vmatpush1.bf16.msra.mxu0 %v184
    %244 = vmatprep.subr.bf16.mxu0 %v189
    %245 = vmatpush1.bf16.msra.mxu0 %v188
    %246 = vmatprep.subr.bf16.mxu0 %v193
    %247 = vmatpush1.bf16.msra.mxu0 %v192
    %248 = vmatprep.subr.bf16.mxu0 %v197
    %249 = vmatpush1.bf16.msra.mxu0 %v196
    %250 = vmatprep.subr.bf16.mxu0 %v201
    %251 = vmatpush1.bf16.msra.mxu0 %v200
    %252 = vmatprep.subr.bf16.mxu0 0
    %253 = vmatpush1.bf16.msra.mxu0 0
    %254 = vmatprep.subr.bf16.mxu0 0
    %255 = vmatpush1.bf16.msra.mxu0 0
    %256 = vmatprep.subr.bf16.mxu0 0
    %257 = vmatpush1.bf16.msra.mxu0 0
    %258 = vmatprep.subr.bf16.mxu0 0
    %259 = vmatpush1.bf16.msra.mxu0 0
    %260 = vmatprep.subr.bf16.mxu0 0
    %261 = vmatpush1.bf16.msra.mxu0 0
    %262 = vmatprep.subr.bf16.mxu0 0
    %263 = vmatpush1.bf16.msra.mxu0 0
    %264 = vmatprep.subr.bf16.mxu0 0
    %265 = vmatpush1.bf16.msra.mxu0 0
    %266 = vmatprep.subr.bf16.mxu0 0
    %267 = vmatpush1.bf16.msra.mxu0 0
    %268 = vmatprep.mubr.bf16.mxu0 0
    %269 = vmatmul.mubr.bf16.gmra.mrb[0].mxu0 %v74
    %v270 = vpop.f32.mrb[0].mxu0
    %v271 = vadd.f32 0.0, %v270
    %v272 = vpop.f32.mrb[0].mxu0
    %v273 = vadd.f32 0.0, %v272
    %v274 = vpop.f32.mrb[0].mxu0
    %v275 = vadd.f32 0.0, %v274
    %v276 = vpop.f32.mrb[0].mxu0
    %v277 = vadd.f32 0.0, %v276
    %278 = vdwg.mxu0
    %279 = vmatprep.subr.bf16.mxu0 %v175
    %280 = vmatpush1.bf16.msra.mxu0 %v174
    %281 = vmatprep.subr.bf16.mxu0 %v179
    %282 = vmatpush1.bf16.msra.mxu0 %v178
    %283 = vmatprep.subr.bf16.mxu0 %v183
    %284 = vmatpush1.bf16.msra.mxu0 %v182
    %285 = vmatprep.subr.bf16.mxu0 %v187
    %286 = vmatpush1.bf16.msra.mxu0 %v186
    %287 = vmatprep.subr.bf16.mxu0 %v191
    %288 = vmatpush1.bf16.msra.mxu0 %v190
    %289 = vmatprep.subr.bf16.mxu0 %v195
    %290 = vmatpush1.bf16.msra.mxu0 %v194
    %291 = vmatprep.subr.bf16.mxu0 %v199
    %292 = vmatpush1.bf16.msra.mxu0 %v198
    %293 = vmatprep.subr.bf16.mxu0 %v203
    %294 = vmatpush1.bf16.msra.mxu0 %v202
    %295 = vmatprep.subr.bf16.mxu0 0
    %296 = vmatpush1.bf16.msra.mxu0 0
    %297 = vmatprep.subr.bf16.mxu0 0
    %298 = vmatpush1.bf16.msra.mxu0 0
    %299 = vmatprep.subr.bf16.mxu0 0
    %300 = vmatpush1.bf16.msra.mxu0 0
    %301 = vmatprep.subr.bf16.mxu0 0
    %302 = vmatpush1.bf16.msra.mxu0 0
    %303 = vmatprep.subr.bf16.mxu0 0
    %304 = vmatpush1.bf16.msra.mxu0 0
    %305 = vmatprep.subr.bf16.mxu0 0
    %306 = vmatpush1.bf16.msra.mxu0 0
    %307 = vmatprep.subr.bf16.mxu0 0
    %308 = vmatpush1.bf16.msra.mxu0 0
    %309 = vmatprep.subr.bf16.mxu0 0
    %310 = vmatpush1.bf16.msra.mxu0 0
    %311 = vmatprep.mubr.bf16.mxu0 0
    %312 = vmatmul.mubr.bf16.gmra.mrb[0].mxu0 %v74
    %v313 = vpop.f32.mrb[0].mxu0
    %v314 = vadd.f32 0.0, %v313
    %v315 = vpop.f32.mrb[0].mxu0
    %v316 = vadd.f32 0.0, %v315
    %v317 = vpop.f32.mrb[0].mxu0
    %v318 = vadd.f32 0.0, %v317
    %v319 = vpop.f32.mrb[0].mxu0
    %v320 = vadd.f32 0.0, %v319
    %321 = vdwg.mxu0
    %v322 = vadd.f32 %v28, %v271
    %v323 = vadd.f32 %v29, %v273
    %v324 = vadd.f32 %v30, %v314
    %v325 = vadd.f32 %v31, %v316
    %v326 = vadd.f32 %v32, %v275
    %v327 = vadd.f32 %v33, %v277
    %v328 = vadd.f32 %v34, %v318
    %v329 = vadd.f32 %v35, %v320
    %330 = vst [vmem:[#allocation2] sm:$0xff] %v322
    %331 = vst [vmem:[#allocation2 + $0x8] sm:$0xff] %v323
    %332 = vst [vmem:[#allocation2 + $0x10] sm:$0xff] %v324
    %333 = vst [vmem:[#allocation2 + $0x18] sm:$0xff] %v325
    %334 = vst [vmem:[#allocation2 + $0x20] sm:$0xff] %v326
    %335 = vst [vmem:[#allocation2 + $0x28] sm:$0xff] %v327
    %336 = vst [vmem:[#allocation2 + $0x30] sm:$0xff] %v328
    %337 = vst [vmem:[#allocation2 + $0x38] sm:$0xff] %v329
    // Predicated region
    $region18: #{transformer_forward.13} parent=1 // pred_check
      %p338 = pneg %p16
    $region19: #{transformer_forward.13} parent=1 // pred_check_branch
      %340 = sbr.rel (%p338) target = $region21
    $region20: #{transformer_forward.13} parent=1 // pred_region
      %v341 = vld [vmem:[#allocation2] sm:$0xff]
      %v342 = vld [vmem:[#allocation2 + $0x8] sm:$0xff]
      %v343 = vld [vmem:[#allocation2 + $0x10] sm:$0xff]
      %v344 = vld [vmem:[#allocation2 + $0x18] sm:$0xff]
      %v345 = vld [vmem:[#allocation2 + $0x20] sm:$0xff]
      %v346 = vld [vmem:[#allocation2 + $0x28] sm:$0xff]
      %v347 = vld [vmem:[#allocation2 + $0x30] sm:$0xff]
      %v348 = vld [vmem:[#allocation2 + $0x38] sm:$0xff]
      %v349 = vld [vmem:[%s2] sm:$0xf]
      %v350 = vunpack.c.l.bf16 %v349
      %v352 = vlaneseq
      %v353 = vshrl.u32 %v352, 7
      %v354 = vsub.s32 0, %v353
      %v355 = vrot.slane %v350, %v354
      %v356 = vlaneseq
      %v357 = vshrl.u32 %v356, 7
      %v358 = vsub.s32 2, %v357
      %v359 = vrot.slane %v350, %v358
      %v360 = vlaneseq
      %v361 = vshrl.u32 %v360, 7
      %v362 = vsub.s32 4, %v361
      %v363 = vrot.slane %v350, %v362
      %v364 = vlaneseq
      %v365 = vshrl.u32 %v364, 7
      %v366 = vsub.s32 6, %v365
      %v367 = vrot.slane %v350, %v366
      %v372 = vlaneseq
      %v373 = vshrl.u32 %v372, 7
      %v374 = vsub.s32 0, %v373
      %v375 = vrot.slane %v355, %v374
      %v376 = vlaneseq
      %v377 = vshrl.u32 %v376, 7
      %v378 = vsub.s32 0, %v377
      %v379 = vrot.slane %v359, %v378
      %v380 = vlaneseq
      %v381 = vshrl.u32 %v380, 7
      %v382 = vsub.s32 0, %v381
      %v383 = vrot.slane %v363, %v382
      %v384 = vlaneseq
      %v385 = vshrl.u32 %v384, 7
      %v386 = vsub.s32 0, %v385
      %v387 = vrot.slane %v367, %v386
      %v388 = vadd.f32 %v341, %v375
      %v389 = vadd.f32 %v342, %v379
      %v390 = vadd.f32 %v343, %v383
      %v391 = vadd.f32 %v344, %v387
      %v392 = vadd.f32 %v345, %v375
      %v393 = vadd.f32 %v346, %v379
      %v394 = vadd.f32 %v347, %v383
      %v395 = vadd.f32 %v348, %v387
      %396 = vst [vmem:[#allocation3] sm:$0xff] %v388
      %397 = vst [vmem:[#allocation3 + $0x8] sm:$0xff] %v389
      %398 = vst [vmem:[#allocation3 + $0x10] sm:$0xff] %v390
      %399 = vst [vmem:[#allocation3 + $0x18] sm:$0xff] %v391
      %400 = vst [vmem:[#allocation3 + $0x20] sm:$0xff] %v392
      %401 = vst [vmem:[#allocation3 + $0x28] sm:$0xff] %v393
      %402 = vst [vmem:[#allocation3 + $0x30] sm:$0xff] %v394
      %403 = vst [vmem:[#allocation3 + $0x38] sm:$0xff] %v395
    $region21: #{transformer_forward.13} parent=1 // pred_fallthru
      _
    // Predicated region
    $region22: #{transformer_forward.13} parent=1 // pred_check
      _
    $region23: #{transformer_forward.13} parent=1 // pred_check_branch
      %405 = sbr.rel (0) target = $region25
    $region24: #{transformer_forward.13} parent=1 // pred_region
      %s407 = ssub.s32 1024, 1024
      %408 = vsyncadd [#allocation4], %s407
      %s409 = sshll.u32 [#allocation3], 4
      %s410 = int_to_ptr.vmem [resolvable:$true] %s409
      %415 = dma.vmem_to_hbm [thread:$0]  %s410, 1024, %s3, [#allocation4], 512, 512, 32
    $region25: #{transformer_forward.13} parent=1 // pred_fallthru
      _
    // Predicated region
    $region26: #{transformer_forward.13} parent=1 // pred_check
      _
    $region27: #{transformer_forward.13} parent=1 // pred_check_branch
      %417 = sbr.rel (0) target = $region29
    $region28: #{transformer_forward.13} parent=1 // pred_region
      %418 = dma.done [#allocation4], 1024
    $region29: #{transformer_forward.13} parent=1 // pred_fallthru
      _
    %419 = vsyncpa [#allocation4], 1

</llo_original>
